<compile_context>
chip_gen: v6e
topology: v6e:2x2x1
jax: 0.10.0
libtpu: 0.0.40
codegen_flags: <defaults>
</compile_context>

<pallas_src>
import jax
import jax.numpy as jnp
from jax import lax
from jax.experimental import pallas as pl
from jax.experimental.pallas import tpu as pltpu

KSIZE = 7
PAD = KSIZE // 2


def _channel_chunk(c, cap=8):
    """Largest divisor of C that is <= cap; chunk size for streaming over C."""
    for d in range(min(c, cap), 0, -1):
        if c % d == 0:
            return d
    return 1


def _toeplitz_weights(weight, W):
    """(1, 2, K, K) conv weight -> (K, 2W, W) banded matrices.

    T[i, c*W + w', w] = weight[0, c, i, w' - w + PAD] inside the band, else 0,
    so for kernel row i:
        sum_{w'} pool_pad[h + i, c*W + w'] * T[i, c*W + w', w]
    is the cross-correlation along W with the W zero padding folded in.
    """
    wt = weight.reshape(2, KSIZE, KSIZE).astype(jnp.float32)
    wp = jnp.arange(W)[:, None]              # w'
    wc = jnp.arange(W)[None, :]              # w
    j = wp - wc + PAD                        # (W, W) tap index
    valid = (j >= 0) & (j < KSIZE)
    jc = jnp.clip(j, 0, KSIZE - 1)
    rows = []
    for i in range(KSIZE):
        per_c = [jnp.where(valid, wt[c, i][jc], 0.0) for c in range(2)]
        rows.append(jnp.concatenate(per_c, axis=0))      # (2W, W)
    return jnp.stack(rows, axis=0)                       # (K, 2W, W)


def _make_kernel(C, H, W, c_chunk):
    HW = H * W
    n_chunks = C // c_chunk
    HIGHEST = jax.lax.Precision.HIGHEST

    def kernel(x_ref, t_ref, o_ref, pool_ref, flat_ref, acc_ref):
        # x_ref   : (C, H*W)           lane-dense activation slab (VMEM)
        # t_ref   : (K, 2W, W)         banded conv matrices (VMEM, resident)
        # o_ref   : (C, H*W)
        # pool_ref: (H + 2*PAD, 2W)    H-padded [avg | max] pooled maps
        # flat_ref: (2, H*W)           flat pooled maps / flat attention map
        # acc_ref : (H, W)             conv accumulator

        # -- 1) channel mean / max, streamed over C in lane-dense chunks ----
        def red_body(k, carry):
            s, m = carry
            start = pl.multiple_of(k * c_chunk, c_chunk)
            xk = x_ref[pl.ds(start, c_chunk), :].astype(jnp.float32)
            return (s + jnp.sum(xk, axis=0, keepdims=True),
                    jnp.maximum(m, jnp.max(xk, axis=0, keepdims=True)))

        ssum, smax = lax.fori_loop(
            0, n_chunks, red_body,
            (jnp.zeros((1, HW), jnp.float32),
             jnp.full((1, HW), -jnp.inf, jnp.float32)))
        flat_ref[0:1, :] = ssum * (1.0 / C)          # flat channel mean
        flat_ref[1:2, :] = smax                      # flat channel max

        # -- 2) scatter tiny pooled maps into (H, W) layout (H-padded) ------
        # Border rows are re-zeroed every step (only 2*PAD tiny rows), so the
        # kernel stays correct when the batch axis is sharded across cores.
        pool_ref[0:PAD, :] = jnp.zeros((PAD, 2 * W), jnp.float32)
        pool_ref[PAD + H:H + 2 * PAD, :] = jnp.zeros((PAD, 2 * W), jnp.float32)
        for h in range(H):                           # tiny data, static loop
            pool_ref[PAD + h:PAD + h + 1, 0:W] = flat_ref[0:1, h * W:(h + 1) * W]
            pool_ref[PAD + h:PAD + h + 1, W:2 * W] = flat_ref[1:2, h * W:(h + 1) * W]

        # -- 3) 7x7 depth-2 conv as 7 small MXU matmuls ---------------------
        acc = jnp.zeros((H, W), jnp.float32)
        for i in range(KSIZE):                       # 7 matmul pushes
            acc = acc + jnp.dot(pool_ref[i:i + H, :], t_ref[i],
                                preferred_element_type=jnp.float32,
                                precision=HIGHEST)
        acc_ref[...] = acc

        # -- 4) flatten conv output back to (1, H*W), then sigmoid ----------
        for h in range(H):
            flat_ref[0:1, h * W:(h + 1) * W] = acc_ref[h:h + 1, :]
        attn = jax.nn.sigmoid(flat_ref[0:1, :])      # (1, HW), EUP

        # -- 5) apply attention, streamed over C in lane-dense chunks -------
        def apply_body(k, carry):
            start = pl.multiple_of(k * c_chunk, c_chunk)
            xk = x_ref[pl.ds(start, c_chunk), :].astype(jnp.float32)
            o_ref[pl.ds(start, c_chunk), :] = (xk * attn).astype(o_ref.dtype)
            return carry

        lax.fori_loop(0, n_chunks, apply_body, 0)

    return kernel


def spatial_attention(x, weight):
    """x: (N, C, H, W); weight: (1, 2, K, K) float32, no bias."""
    N, C, H, W = x.shape
    HW = H * W
    c_chunk = _channel_chunk(C)

    x_flat = x.reshape(N, C, HW)              # lane-dense view of the slab
    t_mats = _toeplitz_weights(weight, W)     # (K, 2W, W)

    block_bytes = C * HW * x_flat.dtype.itemsize
    aux_bytes = t_mats.size * 4 + (H + 2 * PAD) * 2 * W * 4 + 2 * HW * 4 + H * W * 4
    # in + out blocks double-buffered, plus weights/scratch and slack; clamp
    # into a range that is safe on v5e/v6e (128 MiB) and v7x (64 MiB) VMEM.
    vmem_limit = int(min(max(4 * block_bytes + aux_bytes + (2 << 20), 16 << 20),
                         48 << 20))

    out_flat = pl.pallas_call(
        _make_kernel(C, H, W, c_chunk),
        out_shape=jax.ShapeDtypeStruct((N, C, HW), x.dtype),
        grid_spec=pltpu.PrefetchScalarGridSpec(
            num_scalar_prefetch=0,
            grid=(N,),
            in_specs=[
                pl.BlockSpec((pl.Squeezed(), C, HW), lambda n: (n, 0, 0)),
                pl.BlockSpec((KSIZE, 2 * W, W), lambda n: (0, 0, 0)),
            ],
            out_specs=pl.BlockSpec((pl.Squeezed(), C, HW),
                                   lambda n: (n, 0, 0)),
            scratch_shapes=[
                pltpu.VMEM((H + 2 * PAD, 2 * W), jnp.float32),
                pltpu.VMEM((2, HW), jnp.float32),
                pltpu.VMEM((H, W), jnp.float32),
            ],
        ),
        compiler_params=pltpu.CompilerParams(
            dimension_semantics=("parallel",),
            vmem_limit_bytes=vmem_limit,
        ),
    )(x_flat, t_mats)
    # TODO(synk): for very large C*H*W, add an H-tiled grid axis with a PAD
    # halo (or a pooled-map pass + apply pass) so each block stays a few MiB.
    return out_flat.reshape(N, C, H, W)


def spatial_attention_ref(x, weight):
    # Pure-JAX reference matching the PyTorch forward exactly.
    avg = jnp.mean(x, axis=1, keepdims=True)
    mx = jnp.max(x, axis=1, keepdims=True)
    x1 = jnp.concatenate([avg, mx], axis=1)
    conv = jax.lax.conv_general_dilated(
        x1, weight, window_strides=(1, 1),
        padding=((PAD, PAD), (PAD, PAD)),
        dimension_numbers=("NCHW", "OIHW", "NCHW"),
        precision=jax.lax.Precision.HIGHEST)
    return jax.nn.sigmoid(conv) * x


if __name__ == "__main__":
    key = jax.random.PRNGKey(0)
    kx, kw = jax.random.split(key)

    N, C, H, W = 2, 4, 16, 16
    x = jax.random.normal(kx, (N, C, H, W), dtype=jnp.float32)
    # Deterministic synthetic conv weight, shape (out=1, in=2, K, K), no bias.
    weight = 0.1 * jax.random.normal(kw, (1, 2, KSIZE, KSIZE), dtype=jnp.float32)

    out = jax.block_until_ready(spatial_attention(x, weight))
    ref = spatial_attention_ref(x, weight)

    assert out.shape == ref.shape == (N, C, H, W)
    max_err = float(jnp.max(jnp.abs(out - ref)))
    assert jnp.allclose(out, ref, atol=2e-3, rtol=2e-3), max_err

    print("KERNEL_OK")
</pallas_src>

<mosaic_0001>
module attributes {stable_mosaic.version = 11 : i64} {
  func.func @kernel(%arg0: i32, %arg1: memref<1x4x256xf32, #tpu.memory_space<vmem>>, %arg2: memref<7x32x16xf32, #tpu.memory_space<vmem>>, %arg3: memref<1x4x256xf32, #tpu.memory_space<vmem>>, %arg4: memref<22x32xf32, #tpu.memory_space<vmem>>, %arg5: memref<2x256xf32, #tpu.memory_space<vmem>>, %arg6: memref<16x16xf32, #tpu.memory_space<vmem>>) attributes {dimension_semantics = [#tpu.dimension_semantics<parallel>], iteration_bounds = array<i64: 2>, scalar_prefetch = 0 : i64, scratch_operands = 3 : i64, tpu.core_type = #tpu.core_type<tc>, window_params = [{transform_indices = @transform_0, window_bounds = array<i64: 1, 4, 256>}, {pipeline_mode = #tpu.pipeline_mode<synchronous>, transform_indices = @transform_1, window_bounds = array<i64: 7, 32, 16>}, {transform_indices = @transform_2, window_bounds = array<i64: 1, 4, 256>}]} {
    %cst = arith.constant 0.000000e+00 : f32
    %0 = vector.broadcast %cst : f32 to vector<1x256xf32>
    %cst_0 = arith.constant 0xFF800000 : f32
    %1 = vector.broadcast %cst_0 : f32 to vector<1x256xf32>
    %c0_i32 = arith.constant 0 : i32
    %c4_i32 = arith.constant 4 : i32
    %2 = arith.muli %c0_i32, %c4_i32 : i32
    %3 = tpu.assume_multiple %2, 4 : i32
    %c0 = arith.constant 0 : index
    %4 = arith.index_cast %3 : i32 to index
    %c0_1 = arith.constant 0 : index
    %5 = vector.load %arg1[%c0, %4, %c0_1] : memref<1x4x256xf32, #tpu.memory_space<vmem>>, vector<1x4x256xf32>
    %6 = vector.shape_cast %5 : vector<1x4x256xf32> to vector<4x256xf32>
    %cst_2 = arith.constant dense<0.000000e+00> : vector<256xf32>
    %7 = vector.multi_reduction <add>, %6, %cst_2 [0] : vector<4x256xf32> to vector<256xf32>
    %8 = vector.shape_cast %7 : vector<256xf32> to vector<1x256xf32>
    %9 = arith.addf %0, %8 : vector<1x256xf32>
    %cst_3 = arith.constant dense<0xFF800000> : vector<256xf32>
    %10 = vector.multi_reduction <maximumf>, %6, %cst_3 [0] : vector<4x256xf32> to vector<256xf32>
    %11 = vector.shape_cast %10 : vector<256xf32> to vector<1x256xf32>
    %12 = arith.maximumf %1, %11 : vector<1x256xf32>
    %c1_i32 = arith.constant 1 : i32
    %cst_4 = arith.constant 2.500000e-01 : f32
    %13 = vector.broadcast %cst_4 : f32 to vector<1x256xf32>
    %14 = arith.mulf %9, %13 : vector<1x256xf32>
    %c0_5 = arith.constant 0 : index
    %c0_6 = arith.constant 0 : index
    %15 = vector.load %arg5[%c0_5, %c0_6] : memref<2x256xf32, #tpu.memory_space<vmem>>, vector<1x256xf32>
    tpu.vector_store %arg5[%c0_5, %c0_6], %14 {strides = array<i32>} : memref<2x256xf32, #tpu.memory_space<vmem>>, vector<1x256xf32>,
    %c1 = arith.constant 1 : index
    %c0_7 = arith.constant 0 : index
    %16 = vector.load %arg5[%c1, %c0_7] : memref<2x256xf32, #tpu.memory_space<vmem>>, vector<1x256xf32>
    tpu.vector_store %arg5[%c1, %c0_7], %12 {strides = array<i32>} : memref<2x256xf32, #tpu.memory_space<vmem>>, vector<1x256xf32>,
    %cst_8 = arith.constant 0.000000e+00 : f32
    %17 = vector.broadcast %cst_8 : f32 to vector<3x32xf32>
    %c0_9 = arith.constant 0 : index
    %c0_10 = arith.constant 0 : index
    %18 = vector.load %arg4[%c0_9, %c0_10] : memref<22x32xf32, #tpu.memory_space<vmem>>, vector<3x32xf32>
    tpu.vector_store %arg4[%c0_9, %c0_10], %17 {strides = array<i32>} : memref<22x32xf32, #tpu.memory_space<vmem>>, vector<3x32xf32>,
    %cst_11 = arith.constant 0.000000e+00 : f32
    %19 = vector.broadcast %cst_11 : f32 to vector<3x32xf32>
    %c19 = arith.constant 19 : index
    %c0_12 = arith.constant 0 : index
    %20 = vector.load %arg4[%c19, %c0_12] : memref<22x32xf32, #tpu.memory_space<vmem>>, vector<3x32xf32>
    tpu.vector_store %arg4[%c19, %c0_12], %19 {strides = array<i32>} : memref<22x32xf32, #tpu.memory_space<vmem>>, vector<3x32xf32>,
    %c0_13 = arith.constant 0 : index
    %c0_14 = arith.constant 0 : index
    %21 = vector.load %arg5[%c0_13, %c0_14] : memref<2x256xf32, #tpu.memory_space<vmem>>, vector<1x16xf32>
    %c3 = arith.constant 3 : index
    %c0_15 = arith.constant 0 : index
    %22 = vector.load %arg4[%c3, %c0_15] : memref<22x32xf32, #tpu.memory_space<vmem>>, vector<1x16xf32>
    tpu.vector_store %arg4[%c3, %c0_15], %21 {strides = array<i32>} : memref<22x32xf32, #tpu.memory_space<vmem>>, vector<1x16xf32>,
    %c1_16 = arith.constant 1 : index
    %c0_17 = arith.constant 0 : index
    %23 = vector.load %arg5[%c1_16, %c0_17] : memref<2x256xf32, #tpu.memory_space<vmem>>, vector<1x16xf32>
    %c3_18 = arith.constant 3 : index
    %c16 = arith.constant 16 : index
    %24 = vector.load %arg4[%c3_18, %c16] : memref<22x32xf32, #tpu.memory_space<vmem>>, vector<1x16xf32>
    tpu.vector_store %arg4[%c3_18, %c16], %23 {strides = array<i32>} : memref<22x32xf32, #tpu.memory_space<vmem>>, vector<1x16xf32>,
    %c0_19 = arith.constant 0 : index
    %c16_20 = arith.constant 16 : index
    %25 = vector.load %arg5[%c0_19, %c16_20] : memref<2x256xf32, #tpu.memory_space<vmem>>, vector<1x16xf32>
    %c4 = arith.constant 4 : index
    %c0_21 = arith.constant 0 : index
    %26 = vector.load %arg4[%c4, %c0_21] : memref<22x32xf32, #tpu.memory_space<vmem>>, vector<1x16xf32>
    tpu.vector_store %arg4[%c4, %c0_21], %25 {strides = array<i32>} : memref<22x32xf32, #tpu.memory_space<vmem>>, vector<1x16xf32>,
    %c1_22 = arith.constant 1 : index
    %c16_23 = arith.constant 16 : index
    %27 = vector.load %arg5[%c1_22, %c16_23] : memref<2x256xf32, #tpu.memory_space<vmem>>, vector<1x16xf32>
    %c4_24 = arith.constant 4 : index
    %c16_25 = arith.constant 16 : index
    %28 = vector.load %arg4[%c4_24, %c16_25] : memref<22x32xf32, #tpu.memory_space<vmem>>, vector<1x16xf32>
    tpu.vector_store %arg4[%c4_24, %c16_25], %27 {strides = array<i32>} : memref<22x32xf32, #tpu.memory_space<vmem>>, vector<1x16xf32>,
    %c0_26 = arith.constant 0 : index
    %c32 = arith.constant 32 : index
    %29 = vector.load %arg5[%c0_26, %c32] : memref<2x256xf32, #tpu.memory_space<vmem>>, vector<1x16xf32>
    %c5 = arith.constant 5 : index
    %c0_27 = arith.constant 0 : index
    %30 = vector.load %arg4[%c5, %c0_27] : memref<22x32xf32, #tpu.memory_space<vmem>>, vector<1x16xf32>
    tpu.vector_store %arg4[%c5, %c0_27], %29 {strides = array<i32>} : memref<22x32xf32, #tpu.memory_space<vmem>>, vector<1x16xf32>,
    %c1_28 = arith.constant 1 : index
    %c32_29 = arith.constant 32 : index
    %31 = vector.load %arg5[%c1_28, %c32_29] : memref<2x256xf32, #tpu.memory_space<vmem>>, vector<1x16xf32>
    %c5_30 = arith.constant 5 : index
    %c16_31 = arith.constant 16 : index
    %32 = vector.load %arg4[%c5_30, %c16_31] : memref<22x32xf32, #tpu.memory_space<vmem>>, vector<1x16xf32>
    tpu.vector_store %arg4[%c5_30, %c16_31], %31 {strides = array<i32>} : memref<22x32xf32, #tpu.memory_space<vmem>>, vector<1x16xf32>,
    %c0_32 = arith.constant 0 : index
    %c48 = arith.constant 48 : index
    %33 = vector.load %arg5[%c0_32, %c48] : memref<2x256xf32, #tpu.memory_space<vmem>>, vector<1x16xf32>
    %c6 = arith.constant 6 : index
    %c0_33 = arith.constant 0 : index
    %34 = vector.load %arg4[%c6, %c0_33] : memref<22x32xf32, #tpu.memory_space<vmem>>, vector<1x16xf32>
    tpu.vector_store %arg4[%c6, %c0_33], %33 {strides = array<i32>} : memref<22x32xf32, #tpu.memory_space<vmem>>, vector<1x16xf32>,
    %c1_34 = arith.constant 1 : index
    %c48_35 = arith.constant 48 : index
    %35 = vector.load %arg5[%c1_34, %c48_35] : memref<2x256xf32, #tpu.memory_space<vmem>>, vector<1x16xf32>
    %c6_36 = arith.constant 6 : index
    %c16_37 = arith.constant 16 : index
    %36 = vector.load %arg4[%c6_36, %c16_37] : memref<22x32xf32, #tpu.memory_space<vmem>>, vector<1x16xf32>
    tpu.vector_store %arg4[%c6_36, %c16_37], %35 {strides = array<i32>} : memref<22x32xf32, #tpu.memory_space<vmem>>, vector<1x16xf32>,
    %c0_38 = arith.constant 0 : index
    %c64 = arith.constant 64 : index
    %37 = vector.load %arg5[%c0_38, %c64] : memref<2x256xf32, #tpu.memory_space<vmem>>, vector<1x16xf32>
    %c7 = arith.constant 7 : index
    %c0_39 = arith.constant 0 : index
    %38 = vector.load %arg4[%c7, %c0_39] : memref<22x32xf32, #tpu.memory_space<vmem>>, vector<1x16xf32>
    tpu.vector_store %arg4[%c7, %c0_39], %37 {strides = array<i32>} : memref<22x32xf32, #tpu.memory_space<vmem>>, vector<1x16xf32>,
    %c1_40 = arith.constant 1 : index
    %c64_41 = arith.constant 64 : index
    %39 = vector.load %arg5[%c1_40, %c64_41] : memref<2x256xf32, #tpu.memory_space<vmem>>, vector<1x16xf32>
    %c7_42 = arith.constant 7 : index
    %c16_43 = arith.constant 16 : index
    %40 = vector.load %arg4[%c7_42, %c16_43] : memref<22x32xf32, #tpu.memory_space<vmem>>, vector<1x16xf32>
    tpu.vector_store %arg4[%c7_42, %c16_43], %39 {strides = array<i32>} : memref<22x32xf32, #tpu.memory_space<vmem>>, vector<1x16xf32>,
    %c0_44 = arith.constant 0 : index
    %c80 = arith.constant 80 : index
    %41 = vector.load %arg5[%c0_44, %c80] : memref<2x256xf32, #tpu.memory_space<vmem>>, vector<1x16xf32>
    %c8 = arith.constant 8 : index
    %c0_45 = arith.constant 0 : index
    %42 = vector.load %arg4[%c8, %c0_45] : memref<22x32xf32, #tpu.memory_space<vmem>>, vector<1x16xf32>
    tpu.vector_store %arg4[%c8, %c0_45], %41 {strides = array<i32>} : memref<22x32xf32, #tpu.memory_space<vmem>>, vector<1x16xf32>,
    %c1_46 = arith.constant 1 : index
    %c80_47 = arith.constant 80 : index
    %43 = vector.load %arg5[%c1_46, %c80_47] : memref<2x256xf32, #tpu.memory_space<vmem>>, vector<1x16xf32>
    %c8_48 = arith.constant 8 : index
    %c16_49 = arith.constant 16 : index
    %44 = vector.load %arg4[%c8_48, %c16_49] : memref<22x32xf32, #tpu.memory_space<vmem>>, vector<1x16xf32>
    tpu.vector_store %arg4[%c8_48, %c16_49], %43 {strides = array<i32>} : memref<22x32xf32, #tpu.memory_space<vmem>>, vector<1x16xf32>,
    %c0_50 = arith.constant 0 : index
    %c96 = arith.constant 96 : index
    %45 = vector.load %arg5[%c0_50, %c96] : memref<2x256xf32, #tpu.memory_space<vmem>>, vector<1x16xf32>
    %c9 = arith.constant 9 : index
    %c0_51 = arith.constant 0 : index
    %46 = vector.load %arg4[%c9, %c0_51] : memref<22x32xf32, #tpu.memory_space<vmem>>, vector<1x16xf32>
    tpu.vector_store %arg4[%c9, %c0_51], %45 {strides = array<i32>} : memref<22x32xf32, #tpu.memory_space<vmem>>, vector<1x16xf32>,
    %c1_52 = arith.constant 1 : index
    %c96_53 = arith.constant 96 : index
    %47 = vector.load %arg5[%c1_52, %c96_53] : memref<2x256xf32, #tpu.memory_space<vmem>>, vector<1x16xf32>
    %c9_54 = arith.constant 9 : index
    %c16_55 = arith.constant 16 : index
    %48 = vector.load %arg4[%c9_54, %c16_55] : memref<22x32xf32, #tpu.memory_space<vmem>>, vector<1x16xf32>
    tpu.vector_store %arg4[%c9_54, %c16_55], %47 {strides = array<i32>} : memref<22x32xf32, #tpu.memory_space<vmem>>, vector<1x16xf32>,
    %c0_56 = arith.constant 0 : index
    %c112 = arith.constant 112 : index
    %49 = vector.load %arg5[%c0_56, %c112] : memref<2x256xf32, #tpu.memory_space<vmem>>, vector<1x16xf32>
    %c10 = arith.constant 10 : index
    %c0_57 = arith.constant 0 : index
    %50 = vector.load %arg4[%c10, %c0_57] : memref<22x32xf32, #tpu.memory_space<vmem>>, vector<1x16xf32>
    tpu.vector_store %arg4[%c10, %c0_57], %49 {strides = array<i32>} : memref<22x32xf32, #tpu.memory_space<vmem>>, vector<1x16xf32>,
    %c1_58 = arith.constant 1 : index
    %c112_59 = arith.constant 112 : index
    %51 = vector.load %arg5[%c1_58, %c112_59] : memref<2x256xf32, #tpu.memory_space<vmem>>, vector<1x16xf32>
    %c10_60 = arith.constant 10 : index
    %c16_61 = arith.constant 16 : index
    %52 = vector.load %arg4[%c10_60, %c16_61] : memref<22x32xf32, #tpu.memory_space<vmem>>, vector<1x16xf32>
    tpu.vector_store %arg4[%c10_60, %c16_61], %51 {strides = array<i32>} : memref<22x32xf32, #tpu.memory_space<vmem>>, vector<1x16xf32>,
    %c0_62 = arith.constant 0 : index
    %c128 = arith.constant 128 : index
    %53 = vector.load %arg5[%c0_62, %c128] : memref<2x256xf32, #tpu.memory_space<vmem>>, vector<1x16xf32>
    %c11 = arith.constant 11 : index
    %c0_63 = arith.constant 0 : index
    %54 = vector.load %arg4[%c11, %c0_63] : memref<22x32xf32, #tpu.memory_space<vmem>>, vector<1x16xf32>
    tpu.vector_store %arg4[%c11, %c0_63], %53 {strides = array<i32>} : memref<22x32xf32, #tpu.memory_space<vmem>>, vector<1x16xf32>,
    %c1_64 = arith.constant 1 : index
    %c128_65 = arith.constant 128 : index
    %55 = vector.load %arg5[%c1_64, %c128_65] : memref<2x256xf32, #tpu.memory_space<vmem>>, vector<1x16xf32>
    %c11_66 = arith.constant 11 : index
    %c16_67 = arith.constant 16 : index
    %56 = vector.load %arg4[%c11_66, %c16_67] : memref<22x32xf32, #tpu.memory_space<vmem>>, vector<1x16xf32>
    tpu.vector_store %arg4[%c11_66, %c16_67], %55 {strides = array<i32>} : memref<22x32xf32, #tpu.memory_space<vmem>>, vector<1x16xf32>,
    %c0_68 = arith.constant 0 : index
    %c144 = arith.constant 144 : index
    %57 = vector.load %arg5[%c0_68, %c144] : memref<2x256xf32, #tpu.memory_space<vmem>>, vector<1x16xf32>
    %c12 = arith.constant 12 : index
    %c0_69 = arith.constant 0 : index
    %58 = vector.load %arg4[%c12, %c0_69] : memref<22x32xf32, #tpu.memory_space<vmem>>, vector<1x16xf32>
    tpu.vector_store %arg4[%c12, %c0_69], %57 {strides = array<i32>} : memref<22x32xf32, #tpu.memory_space<vmem>>, vector<1x16xf32>,
    %c1_70 = arith.constant 1 : index
    %c144_71 = arith.constant 144 : index
    %59 = vector.load %arg5[%c1_70, %c144_71] : memref<2x256xf32, #tpu.memory_space<vmem>>, vector<1x16xf32>
    %c12_72 = arith.constant 12 : index
    %c16_73 = arith.constant 16 : index
    %60 = vector.load %arg4[%c12_72, %c16_73] : memref<22x32xf32, #tpu.memory_space<vmem>>, vector<1x16xf32>
    tpu.vector_store %arg4[%c12_72, %c16_73], %59 {strides = array<i32>} : memref<22x32xf32, #tpu.memory_space<vmem>>, vector<1x16xf32>,
    %c0_74 = arith.constant 0 : index
    %c160 = arith.constant 160 : index
    %61 = vector.load %arg5[%c0_74, %c160] : memref<2x256xf32, #tpu.memory_space<vmem>>, vector<1x16xf32>
    %c13 = arith.constant 13 : index
    %c0_75 = arith.constant 0 : index
    %62 = vector.load %arg4[%c13, %c0_75] : memref<22x32xf32, #tpu.memory_space<vmem>>, vector<1x16xf32>
    tpu.vector_store %arg4[%c13, %c0_75], %61 {strides = array<i32>} : memref<22x32xf32, #tpu.memory_space<vmem>>, vector<1x16xf32>,
    %c1_76 = arith.constant 1 : index
    %c160_77 = arith.constant 160 : index
    %63 = vector.load %arg5[%c1_76, %c160_77] : memref<2x256xf32, #tpu.memory_space<vmem>>, vector<1x16xf32>
    %c13_78 = arith.constant 13 : index
    %c16_79 = arith.constant 16 : index
    %64 = vector.load %arg4[%c13_78, %c16_79] : memref<22x32xf32, #tpu.memory_space<vmem>>, vector<1x16xf32>
    tpu.vector_store %arg4[%c13_78, %c16_79], %63 {strides = array<i32>} : memref<22x32xf32, #tpu.memory_space<vmem>>, vector<1x16xf32>,
    %c0_80 = arith.constant 0 : index
    %c176 = arith.constant 176 : index
    %65 = vector.load %arg5[%c0_80, %c176] : memref<2x256xf32, #tpu.memory_space<vmem>>, vector<1x16xf32>
    %c14 = arith.constant 14 : index
    %c0_81 = arith.constant 0 : index
    %66 = vector.load %arg4[%c14, %c0_81] : memref<22x32xf32, #tpu.memory_space<vmem>>, vector<1x16xf32>
    tpu.vector_store %arg4[%c14, %c0_81], %65 {strides = array<i32>} : memref<22x32xf32, #tpu.memory_space<vmem>>, vector<1x16xf32>,
    %c1_82 = arith.constant 1 : index
    %c176_83 = arith.constant 176 : index
    %67 = vector.load %arg5[%c1_82, %c176_83] : memref<2x256xf32, #tpu.memory_space<vmem>>, vector<1x16xf32>
    %c14_84 = arith.constant 14 : index
    %c16_85 = arith.constant 16 : index
    %68 = vector.load %arg4[%c14_84, %c16_85] : memref<22x32xf32, #tpu.memory_space<vmem>>, vector<1x16xf32>
    tpu.vector_store %arg4[%c14_84, %c16_85], %67 {strides = array<i32>} : memref<22x32xf32, #tpu.memory_space<vmem>>, vector<1x16xf32>,
    %c0_86 = arith.constant 0 : index
    %c192 = arith.constant 192 : index
    %69 = vector.load %arg5[%c0_86, %c192] : memref<2x256xf32, #tpu.memory_space<vmem>>, vector<1x16xf32>
    %c15 = arith.constant 15 : index
    %c0_87 = arith.constant 0 : index
    %70 = vector.load %arg4[%c15, %c0_87] : memref<22x32xf32, #tpu.memory_space<vmem>>, vector<1x16xf32>
    tpu.vector_store %arg4[%c15, %c0_87], %69 {strides = array<i32>} : memref<22x32xf32, #tpu.memory_space<vmem>>, vector<1x16xf32>,
    %c1_88 = arith.constant 1 : index
    %c192_89 = arith.constant 192 : index
    %71 = vector.load %arg5[%c1_88, %c192_89] : memref<2x256xf32, #tpu.memory_space<vmem>>, vector<1x16xf32>
    %c15_90 = arith.constant 15 : index
    %c16_91 = arith.constant 16 : index
    %72 = vector.load %arg4[%c15_90, %c16_91] : memref<22x32xf32, #tpu.memory_space<vmem>>, vector<1x16xf32>
    tpu.vector_store %arg4[%c15_90, %c16_91], %71 {strides = array<i32>} : memref<22x32xf32, #tpu.memory_space<vmem>>, vector<1x16xf32>,
    %c0_92 = arith.constant 0 : index
    %c208 = arith.constant 208 : index
    %73 = vector.load %arg5[%c0_92, %c208] : memref<2x256xf32, #tpu.memory_space<vmem>>, vector<1x16xf32>
    %c16_93 = arith.constant 16 : index
    %c0_94 = arith.constant 0 : index
    %74 = vector.load %arg4[%c16_93, %c0_94] : memref<22x32xf32, #tpu.memory_space<vmem>>, vector<1x16xf32>
    tpu.vector_store %arg4[%c16_93, %c0_94], %73 {strides = array<i32>} : memref<22x32xf32, #tpu.memory_space<vmem>>, vector<1x16xf32>,
    %c1_95 = arith.constant 1 : index
    %c208_96 = arith.constant 208 : index
    %75 = vector.load %arg5[%c1_95, %c208_96] : memref<2x256xf32, #tpu.memory_space<vmem>>, vector<1x16xf32>
    %c16_97 = arith.constant 16 : index
    %c16_98 = arith.constant 16 : index
    %76 = vector.load %arg4[%c16_97, %c16_98] : memref<22x32xf32, #tpu.memory_space<vmem>>, vector<1x16xf32>
    tpu.vector_store %arg4[%c16_97, %c16_98], %75 {strides = array<i32>} : memref<22x32xf32, #tpu.memory_space<vmem>>, vector<1x16xf32>,
    %c0_99 = arith.constant 0 : index
    %c224 = arith.constant 224 : index
    %77 = vector.load %arg5[%c0_99, %c224] : memref<2x256xf32, #tpu.memory_space<vmem>>, vector<1x16xf32>
    %c17 = arith.constant 17 : index
    %c0_100 = arith.constant 0 : index
    %78 = vector.load %arg4[%c17, %c0_100] : memref<22x32xf32, #tpu.memory_space<vmem>>, vector<1x16xf32>
    tpu.vector_store %arg4[%c17, %c0_100], %77 {strides = array<i32>} : memref<22x32xf32, #tpu.memory_space<vmem>>, vector<1x16xf32>,
    %c1_101 = arith.constant 1 : index
    %c224_102 = arith.constant 224 : index
    %79 = vector.load %arg5[%c1_101, %c224_102] : memref<2x256xf32, #tpu.memory_space<vmem>>, vector<1x16xf32>
    %c17_103 = arith.constant 17 : index
    %c16_104 = arith.constant 16 : index
    %80 = vector.load %arg4[%c17_103, %c16_104] : memref<22x32xf32, #tpu.memory_space<vmem>>, vector<1x16xf32>
    tpu.vector_store %arg4[%c17_103, %c16_104], %79 {strides = array<i32>} : memref<22x32xf32, #tpu.memory_space<vmem>>, vector<1x16xf32>,
    %c0_105 = arith.constant 0 : index
    %c240 = arith.constant 240 : index
    %81 = vector.load %arg5[%c0_105, %c240] : memref<2x256xf32, #tpu.memory_space<vmem>>, vector<1x16xf32>
    %c18 = arith.constant 18 : index
    %c0_106 = arith.constant 0 : index
    %82 = vector.load %arg4[%c18, %c0_106] : memref<22x32xf32, #tpu.memory_space<vmem>>, vector<1x16xf32>
    tpu.vector_store %arg4[%c18, %c0_106], %81 {strides = array<i32>} : memref<22x32xf32, #tpu.memory_space<vmem>>, vector<1x16xf32>,
    %c1_107 = arith.constant 1 : index
    %c240_108 = arith.constant 240 : index
    %83 = vector.load %arg5[%c1_107, %c240_108] : memref<2x256xf32, #tpu.memory_space<vmem>>, vector<1x16xf32>
    %c18_109 = arith.constant 18 : index
    %c16_110 = arith.constant 16 : index
    %84 = vector.load %arg4[%c18_109, %c16_110] : memref<22x32xf32, #tpu.memory_space<vmem>>, vector<1x16xf32>
    tpu.vector_store %arg4[%c18_109, %c16_110], %83 {strides = array<i32>} : memref<22x32xf32, #tpu.memory_space<vmem>>, vector<1x16xf32>,
    %cst_111 = arith.constant 0.000000e+00 : f32
    %85 = vector.broadcast %cst_111 : f32 to vector<16x16xf32>
    %c0_112 = arith.constant 0 : index
    %c0_113 = arith.constant 0 : index
    %86 = vector.load %arg4[%c0_112, %c0_113] : memref<22x32xf32, #tpu.memory_space<vmem>>, vector<16x32xf32>
    %c0_114 = arith.constant 0 : index
    %c0_115 = arith.constant 0 : index
    %c0_116 = arith.constant 0 : index
    %87 = vector.load %arg2[%c0_114, %c0_115, %c0_116] : memref<7x32x16xf32, #tpu.memory_space<vmem>>, vector<1x32x16xf32>
    %88 = vector.shape_cast %87 : vector<1x32x16xf32> to vector<32x16xf32>
    %cst_117 = arith.constant dense<0.000000e+00> : vector<16x16xf32>
    %89 = tpu.matmul %86, %88, %cst_117 {dimension_numbers = #tpu.dot_dimension_numbers<[1], [0], [0], [1], [0, 0, 1, 1], [], []>, precision = #tpu.contract_precision<fp32>} : vector<16x32xf32>, vector<32x16xf32>, vector<16x16xf32> -> vector<16x16xf32>
    %90 = arith.addf %85, %89 : vector<16x16xf32>
    %c1_118 = arith.constant 1 : index
    %c0_119 = arith.constant 0 : index
    %91 = vector.load %arg4[%c1_118, %c0_119] : memref<22x32xf32, #tpu.memory_space<vmem>>, vector<16x32xf32>
    %c1_120 = arith.constant 1 : index
    %c0_121 = arith.constant 0 : index
    %c0_122 = arith.constant 0 : index
    %92 = vector.load %arg2[%c1_120, %c0_121, %c0_122] : memref<7x32x16xf32, #tpu.memory_space<vmem>>, vector<1x32x16xf32>
    %93 = vector.shape_cast %92 : vector<1x32x16xf32> to vector<32x16xf32>
    %cst_123 = arith.constant dense<0.000000e+00> : vector<16x16xf32>
    %94 = tpu.matmul %91, %93, %cst_123 {dimension_numbers = #tpu.dot_dimension_numbers<[1], [0], [0], [1], [0, 0, 1, 1], [], []>, precision = #tpu.contract_precision<fp32>} : vector<16x32xf32>, vector<32x16xf32>, vector<16x16xf32> -> vector<16x16xf32>
    %95 = arith.addf %90, %94 : vector<16x16xf32>
    %c2 = arith.constant 2 : index
    %c0_124 = arith.constant 0 : index
    %96 = vector.load %arg4[%c2, %c0_124] : memref<22x32xf32, #tpu.memory_space<vmem>>, vector<16x32xf32>
    %c2_125 = arith.constant 2 : index
    %c0_126 = arith.constant 0 : index
    %c0_127 = arith.constant 0 : index
    %97 = vector.load %arg2[%c2_125, %c0_126, %c0_127] : memref<7x32x16xf32, #tpu.memory_space<vmem>>, vector<1x32x16xf32>
    %98 = vector.shape_cast %97 : vector<1x32x16xf32> to vector<32x16xf32>
    %cst_128 = arith.constant dense<0.000000e+00> : vector<16x16xf32>
    %99 = tpu.matmul %96, %98, %cst_128 {dimension_numbers = #tpu.dot_dimension_numbers<[1], [0], [0], [1], [0, 0, 1, 1], [], []>, precision = #tpu.contract_precision<fp32>} : vector<16x32xf32>, vector<32x16xf32>, vector<16x16xf32> -> vector<16x16xf32>
    %100 = arith.addf %95, %99 : vector<16x16xf32>
    %c3_129 = arith.constant 3 : index
    %c0_130 = arith.constant 0 : index
    %101 = vector.load %arg4[%c3_129, %c0_130] : memref<22x32xf32, #tpu.memory_space<vmem>>, vector<16x32xf32>
    %c3_131 = arith.constant 3 : index
    %c0_132 = arith.constant 0 : index
    %c0_133 = arith.constant 0 : index
    %102 = vector.load %arg2[%c3_131, %c0_132, %c0_133] : memref<7x32x16xf32, #tpu.memory_space<vmem>>, vector<1x32x16xf32>
    %103 = vector.shape_cast %102 : vector<1x32x16xf32> to vector<32x16xf32>
    %cst_134 = arith.constant dense<0.000000e+00> : vector<16x16xf32>
    %104 = tpu.matmul %101, %103, %cst_134 {dimension_numbers = #tpu.dot_dimension_numbers<[1], [0], [0], [1], [0, 0, 1, 1], [], []>, precision = #tpu.contract_precision<fp32>} : vector<16x32xf32>, vector<32x16xf32>, vector<16x16xf32> -> vector<16x16xf32>
    %105 = arith.addf %100, %104 : vector<16x16xf32>
    %c4_135 = arith.constant 4 : index
    %c0_136 = arith.constant 0 : index
    %106 = vector.load %arg4[%c4_135, %c0_136] : memref<22x32xf32, #tpu.memory_space<vmem>>, vector<16x32xf32>
    %c4_137 = arith.constant 4 : index
    %c0_138 = arith.constant 0 : index
    %c0_139 = arith.constant 0 : index
    %107 = vector.load %arg2[%c4_137, %c0_138, %c0_139] : memref<7x32x16xf32, #tpu.memory_space<vmem>>, vector<1x32x16xf32>
    %108 = vector.shape_cast %107 : vector<1x32x16xf32> to vector<32x16xf32>
    %cst_140 = arith.constant dense<0.000000e+00> : vector<16x16xf32>
    %109 = tpu.matmul %106, %108, %cst_140 {dimension_numbers = #tpu.dot_dimension_numbers<[1], [0], [0], [1], [0, 0, 1, 1], [], []>, precision = #tpu.contract_precision<fp32>} : vector<16x32xf32>, vector<32x16xf32>, vector<16x16xf32> -> vector<16x16xf32>
    %110 = arith.addf %105, %109 : vector<16x16xf32>
    %c5_141 = arith.constant 5 : index
    %c0_142 = arith.constant 0 : index
    %111 = vector.load %arg4[%c5_141, %c0_142] : memref<22x32xf32, #tpu.memory_space<vmem>>, vector<16x32xf32>
    %c5_143 = arith.constant 5 : index
    %c0_144 = arith.constant 0 : index
    %c0_145 = arith.constant 0 : index
    %112 = vector.load %arg2[%c5_143, %c0_144, %c0_145] : memref<7x32x16xf32, #tpu.memory_space<vmem>>, vector<1x32x16xf32>
    %113 = vector.shape_cast %112 : vector<1x32x16xf32> to vector<32x16xf32>
    %cst_146 = arith.constant dense<0.000000e+00> : vector<16x16xf32>
    %114 = tpu.matmul %111, %113, %cst_146 {dimension_numbers = #tpu.dot_dimension_numbers<[1], [0], [0], [1], [0, 0, 1, 1], [], []>, precision = #tpu.contract_precision<fp32>} : vector<16x32xf32>, vector<32x16xf32>, vector<16x16xf32> -> vector<16x16xf32>
    %115 = arith.addf %110, %114 : vector<16x16xf32>
    %c6_147 = arith.constant 6 : index
    %c0_148 = arith.constant 0 : index
    %116 = vector.load %arg4[%c6_147, %c0_148] : memref<22x32xf32, #tpu.memory_space<vmem>>, vector<16x32xf32>
    %c6_149 = arith.constant 6 : index
    %c0_150 = arith.constant 0 : index
    %c0_151 = arith.constant 0 : index
    %117 = vector.load %arg2[%c6_149, %c0_150, %c0_151] : memref<7x32x16xf32, #tpu.memory_space<vmem>>, vector<1x32x16xf32>
    %118 = vector.shape_cast %117 : vector<1x32x16xf32> to vector<32x16xf32>
    %cst_152 = arith.constant dense<0.000000e+00> : vector<16x16xf32>
    %119 = tpu.matmul %116, %118, %cst_152 {dimension_numbers = #tpu.dot_dimension_numbers<[1], [0], [0], [1], [0, 0, 1, 1], [], []>, precision = #tpu.contract_precision<fp32>} : vector<16x32xf32>, vector<32x16xf32>, vector<16x16xf32> -> vector<16x16xf32>
    %120 = arith.addf %115, %119 : vector<16x16xf32>
    %c0_153 = arith.constant 0 : index
    %c0_154 = arith.constant 0 : index
    %121 = vector.load %arg6[%c0_153, %c0_154] : memref<16x16xf32, #tpu.memory_space<vmem>>, vector<16x16xf32>
    tpu.vector_store %arg6[%c0_153, %c0_154], %120 {strides = array<i32>} : memref<16x16xf32, #tpu.memory_space<vmem>>, vector<16x16xf32>,
    %c0_155 = arith.constant 0 : index
    %c0_156 = arith.constant 0 : index
    %122 = vector.load %arg6[%c0_155, %c0_156] : memref<16x16xf32, #tpu.memory_space<vmem>>, vector<1x16xf32>
    %c0_157 = arith.constant 0 : index
    %c0_158 = arith.constant 0 : index
    %123 = vector.load %arg5[%c0_157, %c0_158] : memref<2x256xf32, #tpu.memory_space<vmem>>, vector<1x16xf32>
    tpu.vector_store %arg5[%c0_157, %c0_158], %122 {strides = array<i32>} : memref<2x256xf32, #tpu.memory_space<vmem>>, vector<1x16xf32>,
    %c1_159 = arith.constant 1 : index
    %c0_160 = arith.constant 0 : index
    %124 = vector.load %arg6[%c1_159, %c0_160] : memref<16x16xf32, #tpu.memory_space<vmem>>, vector<1x16xf32>
    %c0_161 = arith.constant 0 : index
    %c16_162 = arith.constant 16 : index
    %125 = vector.load %arg5[%c0_161, %c16_162] : memref<2x256xf32, #tpu.memory_space<vmem>>, vector<1x16xf32>
    tpu.vector_store %arg5[%c0_161, %c16_162], %124 {strides = array<i32>} : memref<2x256xf32, #tpu.memory_space<vmem>>, vector<1x16xf32>,
    %c2_163 = arith.constant 2 : index
    %c0_164 = arith.constant 0 : index
    %126 = vector.load %arg6[%c2_163, %c0_164] : memref<16x16xf32, #tpu.memory_space<vmem>>, vector<1x16xf32>
    %c0_165 = arith.constant 0 : index
    %c32_166 = arith.constant 32 : index
    %127 = vector.load %arg5[%c0_165, %c32_166] : memref<2x256xf32, #tpu.memory_space<vmem>>, vector<1x16xf32>
    tpu.vector_store %arg5[%c0_165, %c32_166], %126 {strides = array<i32>} : memref<2x256xf32, #tpu.memory_space<vmem>>, vector<1x16xf32>,
    %c3_167 = arith.constant 3 : index
    %c0_168 = arith.constant 0 : index
    %128 = vector.load %arg6[%c3_167, %c0_168] : memref<16x16xf32, #tpu.memory_space<vmem>>, vector<1x16xf32>
    %c0_169 = arith.constant 0 : index
    %c48_170 = arith.constant 48 : index
    %129 = vector.load %arg5[%c0_169, %c48_170] : memref<2x256xf32, #tpu.memory_space<vmem>>, vector<1x16xf32>
    tpu.vector_store %arg5[%c0_169, %c48_170], %128 {strides = array<i32>} : memref<2x256xf32, #tpu.memory_space<vmem>>, vector<1x16xf32>,
    %c4_171 = arith.constant 4 : index
    %c0_172 = arith.constant 0 : index
    %130 = vector.load %arg6[%c4_171, %c0_172] : memref<16x16xf32, #tpu.memory_space<vmem>>, vector<1x16xf32>
    %c0_173 = arith.constant 0 : index
    %c64_174 = arith.constant 64 : index
    %131 = vector.load %arg5[%c0_173, %c64_174] : memref<2x256xf32, #tpu.memory_space<vmem>>, vector<1x16xf32>
    tpu.vector_store %arg5[%c0_173, %c64_174], %130 {strides = array<i32>} : memref<2x256xf32, #tpu.memory_space<vmem>>, vector<1x16xf32>,
    %c5_175 = arith.constant 5 : index
    %c0_176 = arith.constant 0 : index
    %132 = vector.load %arg6[%c5_175, %c0_176] : memref<16x16xf32, #tpu.memory_space<vmem>>, vector<1x16xf32>
    %c0_177 = arith.constant 0 : index
    %c80_178 = arith.constant 80 : index
    %133 = vector.load %arg5[%c0_177, %c80_178] : memref<2x256xf32, #tpu.memory_space<vmem>>, vector<1x16xf32>
    tpu.vector_store %arg5[%c0_177, %c80_178], %132 {strides = array<i32>} : memref<2x256xf32, #tpu.memory_space<vmem>>, vector<1x16xf32>,
    %c6_179 = arith.constant 6 : index
    %c0_180 = arith.constant 0 : index
    %134 = vector.load %arg6[%c6_179, %c0_180] : memref<16x16xf32, #tpu.memory_space<vmem>>, vector<1x16xf32>
    %c0_181 = arith.constant 0 : index
    %c96_182 = arith.constant 96 : index
    %135 = vector.load %arg5[%c0_181, %c96_182] : memref<2x256xf32, #tpu.memory_space<vmem>>, vector<1x16xf32>
    tpu.vector_store %arg5[%c0_181, %c96_182], %134 {strides = array<i32>} : memref<2x256xf32, #tpu.memory_space<vmem>>, vector<1x16xf32>,
    %c7_183 = arith.constant 7 : index
    %c0_184 = arith.constant 0 : index
    %136 = vector.load %arg6[%c7_183, %c0_184] : memref<16x16xf32, #tpu.memory_space<vmem>>, vector<1x16xf32>
    %c0_185 = arith.constant 0 : index
    %c112_186 = arith.constant 112 : index
    %137 = vector.load %arg5[%c0_185, %c112_186] : memref<2x256xf32, #tpu.memory_space<vmem>>, vector<1x16xf32>
    tpu.vector_store %arg5[%c0_185, %c112_186], %136 {strides = array<i32>} : memref<2x256xf32, #tpu.memory_space<vmem>>, vector<1x16xf32>,
    %c8_187 = arith.constant 8 : index
    %c0_188 = arith.constant 0 : index
    %138 = vector.load %arg6[%c8_187, %c0_188] : memref<16x16xf32, #tpu.memory_space<vmem>>, vector<1x16xf32>
    %c0_189 = arith.constant 0 : index
    %c128_190 = arith.constant 128 : index
    %139 = vector.load %arg5[%c0_189, %c128_190] : memref<2x256xf32, #tpu.memory_space<vmem>>, vector<1x16xf32>
    tpu.vector_store %arg5[%c0_189, %c128_190], %138 {strides = array<i32>} : memref<2x256xf32, #tpu.memory_space<vmem>>, vector<1x16xf32>,
    %c9_191 = arith.constant 9 : index
    %c0_192 = arith.constant 0 : index
    %140 = vector.load %arg6[%c9_191, %c0_192] : memref<16x16xf32, #tpu.memory_space<vmem>>, vector<1x16xf32>
    %c0_193 = arith.constant 0 : index
    %c144_194 = arith.constant 144 : index
    %141 = vector.load %arg5[%c0_193, %c144_194] : memref<2x256xf32, #tpu.memory_space<vmem>>, vector<1x16xf32>
    tpu.vector_store %arg5[%c0_193, %c144_194], %140 {strides = array<i32>} : memref<2x256xf32, #tpu.memory_space<vmem>>, vector<1x16xf32>,
    %c10_195 = arith.constant 10 : index
    %c0_196 = arith.constant 0 : index
    %142 = vector.load %arg6[%c10_195, %c0_196] : memref<16x16xf32, #tpu.memory_space<vmem>>, vector<1x16xf32>
    %c0_197 = arith.constant 0 : index
    %c160_198 = arith.constant 160 : index
    %143 = vector.load %arg5[%c0_197, %c160_198] : memref<2x256xf32, #tpu.memory_space<vmem>>, vector<1x16xf32>
    tpu.vector_store %arg5[%c0_197, %c160_198], %142 {strides = array<i32>} : memref<2x256xf32, #tpu.memory_space<vmem>>, vector<1x16xf32>,
    %c11_199 = arith.constant 11 : index
    %c0_200 = arith.constant 0 : index
    %144 = vector.load %arg6[%c11_199, %c0_200] : memref<16x16xf32, #tpu.memory_space<vmem>>, vector<1x16xf32>
    %c0_201 = arith.constant 0 : index
    %c176_202 = arith.constant 176 : index
    %145 = vector.load %arg5[%c0_201, %c176_202] : memref<2x256xf32, #tpu.memory_space<vmem>>, vector<1x16xf32>
    tpu.vector_store %arg5[%c0_201, %c176_202], %144 {strides = array<i32>} : memref<2x256xf32, #tpu.memory_space<vmem>>, vector<1x16xf32>,
    %c12_203 = arith.constant 12 : index
    %c0_204 = arith.constant 0 : index
    %146 = vector.load %arg6[%c12_203, %c0_204] : memref<16x16xf32, #tpu.memory_space<vmem>>, vector<1x16xf32>
    %c0_205 = arith.constant 0 : index
    %c192_206 = arith.constant 192 : index
    %147 = vector.load %arg5[%c0_205, %c192_206] : memref<2x256xf32, #tpu.memory_space<vmem>>, vector<1x16xf32>
    tpu.vector_store %arg5[%c0_205, %c192_206], %146 {strides = array<i32>} : memref<2x256xf32, #tpu.memory_space<vmem>>, vector<1x16xf32>,
    %c13_207 = arith.constant 13 : index
    %c0_208 = arith.constant 0 : index
    %148 = vector.load %arg6[%c13_207, %c0_208] : memref<16x16xf32, #tpu.memory_space<vmem>>, vector<1x16xf32>
    %c0_209 = arith.constant 0 : index
    %c208_210 = arith.constant 208 : index
    %149 = vector.load %arg5[%c0_209, %c208_210] : memref<2x256xf32, #tpu.memory_space<vmem>>, vector<1x16xf32>
    tpu.vector_store %arg5[%c0_209, %c208_210], %148 {strides = array<i32>} : memref<2x256xf32, #tpu.memory_space<vmem>>, vector<1x16xf32>,
    %c14_211 = arith.constant 14 : index
    %c0_212 = arith.constant 0 : index
    %150 = vector.load %arg6[%c14_211, %c0_212] : memref<16x16xf32, #tpu.memory_space<vmem>>, vector<1x16xf32>
    %c0_213 = arith.constant 0 : index
    %c224_214 = arith.constant 224 : index
    %151 = vector.load %arg5[%c0_213, %c224_214] : memref<2x256xf32, #tpu.memory_space<vmem>>, vector<1x16xf32>
    tpu.vector_store %arg5[%c0_213, %c224_214], %150 {strides = array<i32>} : memref<2x256xf32, #tpu.memory_space<vmem>>, vector<1x16xf32>,
    %c15_215 = arith.constant 15 : index
    %c0_216 = arith.constant 0 : index
    %152 = vector.load %arg6[%c15_215, %c0_216] : memref<16x16xf32, #tpu.memory_space<vmem>>, vector<1x16xf32>
    %c0_217 = arith.constant 0 : index
    %c240_218 = arith.constant 240 : index
    %153 = vector.load %arg5[%c0_217, %c240_218] : memref<2x256xf32, #tpu.memory_space<vmem>>, vector<1x16xf32>
    tpu.vector_store %arg5[%c0_217, %c240_218], %152 {strides = array<i32>} : memref<2x256xf32, #tpu.memory_space<vmem>>, vector<1x16xf32>,
    %c0_219 = arith.constant 0 : index
    %c0_220 = arith.constant 0 : index
    %154 = vector.load %arg5[%c0_219, %c0_220] : memref<2x256xf32, #tpu.memory_space<vmem>>, vector<1x256xf32>
    %155 = arith.negf %154 : vector<1x256xf32>
    %156 = math.exp %155 : vector<1x256xf32>
    %cst_221 = arith.constant 1.000000e+00 : f32
    %157 = vector.broadcast %cst_221 : f32 to vector<1x256xf32>
    %158 = arith.addf %157, %156 : vector<1x256xf32>
    %159 = arith.divf %157, %158 : vector<1x256xf32>
    %c0_i32_222 = arith.constant 0 : i32
    %c4_i32_223 = arith.constant 4 : i32
    %160 = arith.muli %c0_i32_222, %c4_i32_223 : i32
    %161 = tpu.assume_multiple %160, 4 : i32
    %c0_224 = arith.constant 0 : index
    %162 = arith.index_cast %161 : i32 to index
    %c0_225 = arith.constant 0 : index
    %163 = vector.load %arg1[%c0_224, %162, %c0_225] : memref<1x4x256xf32, #tpu.memory_space<vmem>>, vector<1x4x256xf32>
    %164 = vector.shape_cast %163 : vector<1x4x256xf32> to vector<4x256xf32>
    %165 = vector.broadcast %159 : vector<1x256xf32> to vector<4x256xf32>
    %166 = arith.mulf %164, %165 : vector<4x256xf32>
    %c0_226 = arith.constant 0 : index
    %167 = arith.index_cast %161 : i32 to index
    %c0_227 = arith.constant 0 : index
    %168 = vector.load %arg3[%c0_226, %167, %c0_227] : memref<1x4x256xf32, #tpu.memory_space<vmem>>, vector<1x4x256xf32>
    %169 = vector.shape_cast %168 : vector<1x4x256xf32> to vector<4x256xf32>
    %170 = vector.shape_cast %166 : vector<4x256xf32> to vector<1x4x256xf32>
    tpu.vector_store %arg3[%c0_226, %167, %c0_227], %170 {strides = array<i32>} : memref<1x4x256xf32, #tpu.memory_space<vmem>>, vector<1x4x256xf32>,
    %c1_i32_228 = arith.constant 1 : i32
    return
  }
  func.func @transform_0(%arg0: i32) -> (i32, i32, i32) {
    %c0_i32 = arith.constant 0 : i32
    %c0_i32_0 = arith.constant 0 : i32
    %c0_i32_1 = arith.constant 0 : i32
    return %arg0, %c0_i32, %c0_i32_0 : i32, i32, i32
  }
  func.func @transform_1(%arg0: i32) -> (i32, i32, i32) {
    %c0_i32 = arith.constant 0 : i32
    %c0_i32_0 = arith.constant 0 : i32
    %c0_i32_1 = arith.constant 0 : i32
    %c0_i32_2 = arith.constant 0 : i32
    return %c0_i32, %c0_i32_0, %c0_i32_1 : i32, i32, i32
  }
  func.func @transform_2(%arg0: i32) -> (i32, i32, i32) {
    %c0_i32 = arith.constant 0 : i32
    %c0_i32_0 = arith.constant 0 : i32
    %c0_i32_1 = arith.constant 0 : i32
    return %arg0, %c0_i32, %c0_i32_0 : i32, i32, i32
  }
}

</mosaic_0001>

<llo_original>
// kernel: tpu_custom_call.1
$region0: #{tpu_custom_call.1}
  #allocation0 [shape = 'u32[]', space=smem, size = 0x4, offset = 0x4, fixed_abs, tag = 'smem constant byte address 0x4 - core index']
  #allocation1 [shape = 'u32[144,128]{1,0:T(1,128)}', space=vmem, size = 0x12000, scoped, tag = 'internal scratch']
  #allocation2 [shape = 'f32[22,32]{1,0:T(8,128)}', space=vmem, size = 0x3000, scoped, tag = 'scratch operand']
  #allocation3 [shape = 'f32[2,256]{1,0:T(2,128)}', space=vmem, size = 0x800, scoped, tag = 'scratch operand']
  #allocation4 [shape = 'f32[16,16]{1,0:T(8,128)}', space=vmem, size = 0x2000, scoped, tag = 'scratch operand']
  %s0 = inlined_call_operand.vmem [shape: f32[2,4,256], index: 0, kind: input, shape index: {}]
  %s1 = inlined_call_operand.vmem [shape: f32[7,32,16], index: 1, kind: input, shape index: {}]
  %s2 = inlined_call_operand.hbm [shape: f32[2,4,256], index: 2, kind: output, shape index: {}]
  %s3 = sld [smem:[#allocation0]]
  $region41: #{tpu_custom_call.1} parent=0
    _
  %s5 = ssub.s32 1, %s3
  %s6 = scalar_select 0, %s5, %s3
  $region1: #{tpu_custom_call.1} parent=0
    #allocation5 [shape = 'u8[8192]{0}', space=vmem, size = 0x2000, scoped, tag = 'output window, operand 0']
    #allocation6 [shape = 's32[2]{0}', space=sflag, size = 0x8, scoped, tag = 'scoped memory for tpu_custom_call.1']
    %7 = vsyncpa [#allocation6], 0
    %s8 = scalar_lea.sflag [#allocation6], 1
    %9 = vsyncpa %s8, 0
    loop: start=0, step=1, limit=4
    $region2: #{tpu_custom_call.1} parent=1 // loop_pre_header
      _
    $region3: #{tpu_custom_call.1} parent=1 // loop_header
      %s11 = sphi 0, %s15
      %p12 = scmp.ge.s32.totalorder %s11, 4
      %s21 = sphi 0, %s23
      %s24 = sphi 0, %s21
      %s25 = sphi 0, %s24
      %s41 = sphi 0, %s25
      %s45 = sphi 0, %s45
      %s47 = sphi 0, %s45
      %s48 = sphi 0, %s47
      %s62 = sphi 0, %s48
      %s68 = sphi 0, %s70
      %s71 = sphi 0, %s68
      %s72 = sphi 0, %s71
      %s88 = sphi 0, %s72
    $region4: #{tpu_custom_call.1} parent=1 // loop_header_branch
      %14 = sbr.rel (%p12) target = $region8
    $region5: #{tpu_custom_call.1} parent=1 // loop_body
      %s16 = ssub.s32 %s11, 1
      %s17 = ssub.s32 %s11, 2
      %s18 = sadd.s32 %s11, 1
      %s19 = ssub.s32 %s11, %s18
      %p20 = scmp.eq.s32.totalorder %s19, 0
      %s22 = sadd.s32 %s21, 1
      %s23 = scalar_select %p20, %s21, %s22
      %p26 = pneg %p20
      %p27 = scmp.eq.s32.totalorder %s11, 1
      %p28 = por %p26, %p27
      %p29 = scmp.ne.s32.totalorder %s21, %s24
      %p30 = scmp.eq.s32.totalorder %s11, 0
      %p31 = por %p29, %p30
      %p32 = scmp.ne.s32.totalorder %s21, %s24
      %p33 = scmp.eq.s32.totalorder %s16, 1
      %p34 = por %p32, %p33
      %p35 = scmp.ne.s32.totalorder %s24, %s25
      %p36 = scmp.eq.s32.totalorder %s16, 0
      %p37 = por %p35, %p36
      %p38 = scmp.ne.s32.totalorder %s24, %s25
      %p39 = scmp.eq.s32.totalorder %s17, 1
      %p40 = por %p38, %p39
      %p42 = scmp.ne.s32.totalorder %s25, %s41
      %p43 = scmp.eq.s32.totalorder %s17, 0
      %p44 = por %p42, %p43
      %s46 = sadd.s32 %s45, 1
      %p49 = scmp.eq.s32.totalorder %s11, 1
      %p50 = scmp.ne.s32.totalorder %s45, %s47
      %p51 = scmp.eq.s32.totalorder %s11, 0
      %p52 = por %p50, %p51
      %p53 = scmp.ne.s32.totalorder %s45, %s47
      %p54 = scmp.eq.s32.totalorder %s16, 1
      %p55 = por %p53, %p54
      %p56 = scmp.ne.s32.totalorder %s47, %s48
      %p57 = scmp.eq.s32.totalorder %s16, 0
      %p58 = por %p56, %p57
      %p59 = scmp.ne.s32.totalorder %s47, %s48
      %p60 = scmp.eq.s32.totalorder %s17, 1
      %p61 = por %p59, %p60
      %p63 = scmp.ne.s32.totalorder %s48, %s62
      %p64 = scmp.eq.s32.totalorder %s17, 0
      %p65 = por %p63, %p64
      %s66 = ssub.s32 %s11, %s18
      %p67 = scmp.eq.s32.totalorder %s66, 0
      %s69 = sadd.s32 %s68, 1
      %s70 = scalar_select %p67, %s68, %s69
      %p73 = pneg %p67
      %p74 = scmp.eq.s32.totalorder %s11, 1
      %p75 = por %p73, %p74
      %p76 = scmp.ne.s32.totalorder %s68, %s71
      %p77 = scmp.eq.s32.totalorder %s11, 0
      %p78 = por %p76, %p77
      %p79 = scmp.ne.s32.totalorder %s68, %s71
      %p80 = scmp.eq.s32.totalorder %s16, 1
      %p81 = por %p79, %p80
      %p82 = scmp.ne.s32.totalorder %s71, %s72
      %p83 = scmp.eq.s32.totalorder %s16, 0
      %p84 = por %p82, %p83
      %p85 = scmp.ne.s32.totalorder %s71, %s72
      %p86 = scmp.eq.s32.totalorder %s17, 1
      %p87 = por %p85, %p86
      %p89 = scmp.ne.s32.totalorder %s72, %s88
      %p90 = scmp.eq.s32.totalorder %s17, 0
      %p91 = por %p89, %p90
      %p92 = scmp.le.s32.totalorder 1, %s11
      %p93 = scmp.lt.s32.totalorder %s11, 3
      %p94 = pnand %p92, %p93
      %p95 = pneg %p94
      // Predicated region
      $region9: #{tpu_custom_call.1} parent=5 // pred_check
        _
      $region10: #{tpu_custom_call.1} parent=5 // pred_check_branch
        %97 = sbr.rel (%p94) target = $region12
      $region11: #{tpu_custom_call.1} parent=5 // pred_region
        %s98 = ssub.s32 %s11, 1
        // Predicated region
        $region13: #{tpu_custom_call.1} parent=11 // pred_check
          %p99 = pneg %p58
        $region14: #{tpu_custom_call.1} parent=11 // pred_check_branch
          %101 = sbr.rel (%p99) target = $region16
        $region15: #{tpu_custom_call.1} parent=11 // pred_region
          _
        $region16: #{tpu_custom_call.1} parent=11 // pred_fallthru
          _
      $region12: #{tpu_custom_call.1} parent=5 // pred_fallthru
        _
      %p102 = scmp.lt.s32.totalorder %s11, 2
      // Predicated region
      $region17: #{tpu_custom_call.1} parent=5 // pred_check
        %p103 = pneg %p102
      $region18: #{tpu_custom_call.1} parent=5 // pred_check_branch
        %105 = sbr.rel (%p103) target = $region20
      $region19: #{tpu_custom_call.1} parent=5 // pred_region
        // Predicated region
        $region21: #{tpu_custom_call.1} parent=19 // pred_check
          %p106 = pneg %p31
        $region22: #{tpu_custom_call.1} parent=19 // pred_check_branch
          %108 = sbr.rel (%p106) target = $region24
        $region23: #{tpu_custom_call.1} parent=19 // pred_region
          %p109 = scmp.lt.s32.totalorder %s11, 1
          %s110 = scalar_select %p109, %s11, 1
          %s111 = smul.addr %s110, 2
          %s112 = smul.addr %s111, 4
          %s113 = scalar_lea.vmem %s0, %s112
        $region24: #{tpu_custom_call.1} parent=19 // pred_fallthru
          _
      $region20: #{tpu_custom_call.1} parent=5 // pred_fallthru
        _
      %p114 = scmp.le.s32.totalorder 1, %s11
      %p115 = scmp.lt.s32.totalorder %s11, 3
      %p116 = pnand %p114, %p115
      %p117 = pneg %p116
      // Predicated region
      $region25: #{tpu_custom_call.1} parent=5 // pred_check
        _
      $region26: #{tpu_custom_call.1} parent=5 // pred_check_branch
        %119 = sbr.rel (%p116) target = $region28
      $region27: #{tpu_custom_call.1} parent=5 // pred_region
        %s120 = ssub.s32 %s11, 1
        %p121 = scmp.lt.s32.totalorder %s16, 1
        %s122 = scalar_select %p121, %s16, 1
        %s123 = smul.addr %s122, 2
        %s124 = smul.addr %s123, 4
        %s125 = scalar_lea.vmem %s0, %s124
        %p126 = pneg %p37
        %p127 = pneg %p34
        %p128 = pneg %p58
        %p129 = pneg %p55
        %p130 = pneg %p84
        %p131 = pneg %p81
        %s132 = sand.u32 %s71, 1
        %s133 = scalar_lea.sflag [#allocation6], %s132
        %s134 = sand.u32 %s71, 1
        %s135 = smul.addr %s134, 8
        %s136 = scalar_lea.vmem [#allocation5], %s135
        %p137 = scmp.lt.s32.totalorder %s16, 1
        %s138 = scalar_select %p137, %s16, 1
        %s139 = smul.addr %s138, 2
        %s140 = smul.addr %s139, 4
        %s141 = scalar_lea.vmem %s0, %s140
        %s142 = smul.u32 0, 2
        %s143 = smul.addr %s142, 4
        %s144 = scalar_lea.vmem %s141, %s143
        %v145 = vld [vmem:[%s144] sm:$0xff]
        %v147 = vcombine.high %v145, %v145
        %vm149 = vcmask 1043456
        %v150 = vsel %vm149, %v145, 0.0
        %v151 = vrot.slane %v150, 4
        %v152 = vadd.f32 %v150, %v151
        %v153 = vrot.slane %v152, 2
        %v154 = vadd.f32 %v152, %v153
        %v155 = vrot.slane %v154, 1
        %v156 = vadd.f32 %v154, %v155
        %v157 = vsel %vm149, %v147, 0.0
        %v158 = vrot.slane %v157, 4
        %v159 = vadd.f32 %v157, %v158
        %v160 = vrot.slane %v159, 2
        %v161 = vadd.f32 %v159, %v160
        %v162 = vrot.slane %v161, 1
        %v163 = vadd.f32 %v161, %v162
        %v164 = vadd.f32 %v156, 0.0
        %v165 = vadd.f32 %v163, 0.0
        %v166 = vsel %vm149, %v145, -inf
        %v167 = vrot.slane %v166, 4
        %v168 = vmax.f32 %v166, %v167
        %v169 = vrot.slane %v168, 2
        %v170 = vmax.f32 %v168, %v169
        %v171 = vrot.slane %v170, 1
        %v172 = vmax.f32 %v170, %v171
        %v173 = vsel %vm149, %v147, -inf
        %v174 = vrot.slane %v173, 4
        %v175 = vmax.f32 %v173, %v174
        %v176 = vrot.slane %v175, 2
        %v177 = vmax.f32 %v175, %v176
        %v178 = vrot.slane %v177, 1
        %v179 = vmax.f32 %v177, %v178
        %v180 = vmul.f32 %v164, 0.25
        %v181 = vmul.f32 %v165, 0.25
        %v184 = vcombine.low %v180, %v181
        %v186 = vunpack.c.l.s4 1966171168
        %v187 = vunpack.c.0.s8 %v186
        %v188 = vlaneseq
        %v189 = vshrl.u32 %v188, 7
        %v190 = vsub.s32 %v187, %v189
        %v191 = vrot.slane %v184, %v190
        %v193 = vunpack.c.l.s4 1966171168
        %v194 = vunpack.c.0.s8 %v193
        %v195 = vlaneseq
        %v196 = vshrl.u32 %v195, 7
        %v197 = vsub.s32 %v194, %v196
        %v198 = vrot.slane %v191, %v197
        %v200 = vlaneseq
        %vm201 = vcmp.ge.s32.totalorder %v200, 0
        %vm202 = vcmp.lt.s32.totalorder %v200, 256
        %vm203 = vmand %vm201, %vm202
        %204 = vst.msk [vmem:[#allocation3] ss:$2 sm:$0x3] %vm203, %v198
        %v207 = vcombine.low %v172, %v179
        %v209 = vunpack.c.l.s4 1966171168
        %v210 = vunpack.c.0.s8 %v209
        %v211 = vlaneseq
        %v212 = vshrl.u32 %v211, 7
        %v213 = vsub.s32 %v210, %v212
        %v214 = vrot.slane %v207, %v213
        %v216 = vunpack.c.l.s4 1966171168
        %v217 = vunpack.c.0.s8 %v216
        %v218 = vlaneseq
        %v219 = vshrl.u32 %v218, 7
        %v220 = vsub.s32 %v217, %v219
        %v221 = vrot.slane %v214, %v220
        %s223 = scalar_lea.vmem [#allocation3], 1
        %224 = vst.msk [vmem:[%s223] ss:$2 sm:$0x3] %vm203, %v221
        %vm225 = vcmask 256000
        %226 = vst.msk [vmem:[#allocation2] sm:$0x7] %vm225, 0.0
        %227 = vst.msk [vmem:[#allocation2 + $0x13] sm:$0x7] %vm225, 0.0
        %v228 = vld [vmem:[#allocation3] sm:$0x1]
        %vm229 = vcmask 122880
        %230 = vst.msk [vmem:[#allocation2 + $0x3] sm:$0x1] %vm229, %v228
        %v231 = vld [vmem:[#allocation3 + $0x1] sm:$0x1]
        %v233 = vlaneseq
        %v234 = vshrl.u32 %v233, 7
        %v235 = vsub.s32 0, %v234
        %v236 = vrot.slane %v231, %v235
        %237 = vrot.lane.b32.xlu0 %v236, 16
        %v238 = vpop.permute.xlu0 %237
        %vm240 = vcmask 254080
        %241 = vst.msk [vmem:[#allocation2 + $0x3] sm:$0x1] %vm240, %v238
        %v242 = vld [vmem:[#allocation3] sm:$0x1]
        %v244 = vlaneseq
        %v245 = vshrl.u32 %v244, 7
        %v246 = vsub.s32 0, %v245
        %v247 = vrot.slane %v242, %v246
        %248 = vrot.lane.b32.xlu0 %v247, 112
        %v249 = vpop.permute.xlu0 %248
        %251 = vst.msk [vmem:[#allocation2 + $0x4] sm:$0x1] %vm229, %v249
        %v252 = vld [vmem:[#allocation3 + $0x1] sm:$0x1]
        %253 = vst.msk [vmem:[#allocation2 + $0x4] sm:$0x1] %vm240, %v252
        %v254 = vld [vmem:[#allocation3] sm:$0x1]
        %v256 = vlaneseq
        %v257 = vshrl.u32 %v256, 7
        %v258 = vsub.s32 0, %v257
        %v259 = vrot.slane %v254, %v258
        %260 = vrot.lane.b32.xlu0 %v259, 96
        %v261 = vpop.permute.xlu0 %260
        %263 = vst.msk [vmem:[#allocation2 + $0x5] sm:$0x1] %vm229, %v261
        %v264 = vld [vmem:[#allocation3 + $0x1] sm:$0x1]
        %v266 = vlaneseq
        %v267 = vshrl.u32 %v266, 7
        %v268 = vsub.s32 0, %v267
        %v269 = vrot.slane %v264, %v268
        %270 = vrot.lane.b32.xlu0 %v269, 112
        %v271 = vpop.permute.xlu0 %270
        %273 = vst.msk [vmem:[#allocation2 + $0x5] sm:$0x1] %vm240, %v271
        %v274 = vld [vmem:[#allocation3] sm:$0x1]
        %v276 = vlaneseq
        %v277 = vshrl.u32 %v276, 7
        %v278 = vsub.s32 0, %v277
        %v279 = vrot.slane %v274, %v278
        %280 = vrot.lane.b32.xlu0 %v279, 80
        %v281 = vpop.permute.xlu0 %280
        %283 = vst.msk [vmem:[#allocation2 + $0x6] sm:$0x1] %vm229, %v281
        %v284 = vld [vmem:[#allocation3 + $0x1] sm:$0x1]
        %v286 = vlaneseq
        %v287 = vshrl.u32 %v286, 7
        %v288 = vsub.s32 0, %v287
        %v289 = vrot.slane %v284, %v288
        %290 = vrot.lane.b32.xlu0 %v289, 96
        %v291 = vpop.permute.xlu0 %290
        %293 = vst.msk [vmem:[#allocation2 + $0x6] sm:$0x1] %vm240, %v291
        %v294 = vld [vmem:[#allocation3] sm:$0x1]
        %v296 = vlaneseq
        %v297 = vshrl.u32 %v296, 7
        %v298 = vsub.s32 0, %v297
        %v299 = vrot.slane %v294, %v298
        %300 = vrot.lane.b32.xlu0 %v299, 64
        %v301 = vpop.permute.xlu0 %300
        %303 = vst.msk [vmem:[#allocation2 + $0x7] sm:$0x1] %vm229, %v301
        %v304 = vld [vmem:[#allocation3 + $0x1] sm:$0x1]
        %v306 = vlaneseq
        %v307 = vshrl.u32 %v306, 7
        %v308 = vsub.s32 0, %v307
        %v309 = vrot.slane %v304, %v308
        %310 = vrot.lane.b32.xlu0 %v309, 80
        %v311 = vpop.permute.xlu0 %310
        %313 = vst.msk [vmem:[#allocation2 + $0x7] sm:$0x1] %vm240, %v311
        %v314 = vld [vmem:[#allocation3] sm:$0x1]
        %v316 = vlaneseq
        %v317 = vshrl.u32 %v316, 7
        %v318 = vsub.s32 0, %v317
        %v319 = vrot.slane %v314, %v318
        %320 = vrot.lane.b32.xlu0 %v319, 48
        %v321 = vpop.permute.xlu0 %320
        %323 = vst.msk [vmem:[#allocation2 + $0x8] sm:$0x1] %vm229, %v321
        %v324 = vld [vmem:[#allocation3 + $0x1] sm:$0x1]
        %v326 = vlaneseq
        %v327 = vshrl.u32 %v326, 7
        %v328 = vsub.s32 0, %v327
        %v329 = vrot.slane %v324, %v328
        %330 = vrot.lane.b32.xlu0 %v329, 64
        %v331 = vpop.permute.xlu0 %330
        %333 = vst.msk [vmem:[#allocation2 + $0x8] sm:$0x1] %vm240, %v331
        %v334 = vld [vmem:[#allocation3] sm:$0x1]
        %v336 = vlaneseq
        %v337 = vshrl.u32 %v336, 7
        %v338 = vsub.s32 0, %v337
        %v339 = vrot.slane %v334, %v338
        %340 = vrot.lane.b32.xlu0 %v339, 32
        %v341 = vpop.permute.xlu0 %340
        %343 = vst.msk [vmem:[#allocation2 + $0x9] sm:$0x1] %vm229, %v341
        %v344 = vld [vmem:[#allocation3 + $0x1] sm:$0x1]
        %v346 = vlaneseq
        %v347 = vshrl.u32 %v346, 7
        %v348 = vsub.s32 0, %v347
        %v349 = vrot.slane %v344, %v348
        %350 = vrot.lane.b32.xlu0 %v349, 48
        %v351 = vpop.permute.xlu0 %350
        %353 = vst.msk [vmem:[#allocation2 + $0x9] sm:$0x1] %vm240, %v351
        %v354 = vld [vmem:[#allocation3] sm:$0x1]
        %v356 = vlaneseq
        %v357 = vshrl.u32 %v356, 7
        %v358 = vsub.s32 0, %v357
        %v359 = vrot.slane %v354, %v358
        %360 = vrot.lane.b32.xlu0 %v359, 16
        %v361 = vpop.permute.xlu0 %360
        %363 = vst.msk [vmem:[#allocation2 + $0xa] sm:$0x1] %vm229, %v361
        %v364 = vld [vmem:[#allocation3 + $0x1] sm:$0x1]
        %v366 = vlaneseq
        %v367 = vshrl.u32 %v366, 7
        %v368 = vsub.s32 0, %v367
        %v369 = vrot.slane %v364, %v368
        %370 = vrot.lane.b32.xlu0 %v369, 32
        %v371 = vpop.permute.xlu0 %370
        %373 = vst.msk [vmem:[#allocation2 + $0xa] sm:$0x1] %vm240, %v371
        %v374 = vld [vmem:[#allocation3 + $0x2] sm:$0x1]
        %375 = vst.msk [vmem:[#allocation2 + $0xb] sm:$0x1] %vm229, %v374
        %v376 = vld [vmem:[#allocation3 + $0x3] sm:$0x1]
        %v378 = vlaneseq
        %v379 = vshrl.u32 %v378, 7
        %v380 = vsub.s32 0, %v379
        %v381 = vrot.slane %v376, %v380
        %382 = vrot.lane.b32.xlu0 %v381, 16
        %v383 = vpop.permute.xlu0 %382
        %385 = vst.msk [vmem:[#allocation2 + $0xb] sm:$0x1] %vm240, %v383
        %v386 = vld [vmem:[#allocation3 + $0x2] sm:$0x1]
        %v388 = vlaneseq
        %v389 = vshrl.u32 %v388, 7
        %v390 = vsub.s32 0, %v389
        %v391 = vrot.slane %v386, %v390
        %392 = vrot.lane.b32.xlu0 %v391, 112
        %v393 = vpop.permute.xlu0 %392
        %395 = vst.msk [vmem:[#allocation2 + $0xc] sm:$0x1] %vm229, %v393
        %v396 = vld [vmem:[#allocation3 + $0x3] sm:$0x1]
        %397 = vst.msk [vmem:[#allocation2 + $0xc] sm:$0x1] %vm240, %v396
        %v398 = vld [vmem:[#allocation3 + $0x2] sm:$0x1]
        %v400 = vlaneseq
        %v401 = vshrl.u32 %v400, 7
        %v402 = vsub.s32 0, %v401
        %v403 = vrot.slane %v398, %v402
        %404 = vrot.lane.b32.xlu0 %v403, 96
        %v405 = vpop.permute.xlu0 %404
        %407 = vst.msk [vmem:[#allocation2 + $0xd] sm:$0x1] %vm229, %v405
        %v408 = vld [vmem:[#allocation3 + $0x3] sm:$0x1]
        %v410 = vlaneseq
        %v411 = vshrl.u32 %v410, 7
        %v412 = vsub.s32 0, %v411
        %v413 = vrot.slane %v408, %v412
        %414 = vrot.lane.b32.xlu0 %v413, 112
        %v415 = vpop.permute.xlu0 %414
        %417 = vst.msk [vmem:[#allocation2 + $0xd] sm:$0x1] %vm240, %v415
        %v418 = vld [vmem:[#allocation3 + $0x2] sm:$0x1]
        %v420 = vlaneseq
        %v421 = vshrl.u32 %v420, 7
        %v422 = vsub.s32 0, %v421
        %v423 = vrot.slane %v418, %v422
        %424 = vrot.lane.b32.xlu0 %v423, 80
        %v425 = vpop.permute.xlu0 %424
        %427 = vst.msk [vmem:[#allocation2 + $0xe] sm:$0x1] %vm229, %v425
        %v428 = vld [vmem:[#allocation3 + $0x3] sm:$0x1]
        %v430 = vlaneseq
        %v431 = vshrl.u32 %v430, 7
        %v432 = vsub.s32 0, %v431
        %v433 = vrot.slane %v428, %v432
        %434 = vrot.lane.b32.xlu0 %v433, 96
        %v435 = vpop.permute.xlu0 %434
        %437 = vst.msk [vmem:[#allocation2 + $0xe] sm:$0x1] %vm240, %v435
        %v438 = vld [vmem:[#allocation3 + $0x2] sm:$0x1]
        %v440 = vlaneseq
        %v441 = vshrl.u32 %v440, 7
        %v442 = vsub.s32 0, %v441
        %v443 = vrot.slane %v438, %v442
        %444 = vrot.lane.b32.xlu0 %v443, 64
        %v445 = vpop.permute.xlu0 %444
        %447 = vst.msk [vmem:[#allocation2 + $0xf] sm:$0x1] %vm229, %v445
        %v448 = vld [vmem:[#allocation3 + $0x3] sm:$0x1]
        %v450 = vlaneseq
        %v451 = vshrl.u32 %v450, 7
        %v452 = vsub.s32 0, %v451
        %v453 = vrot.slane %v448, %v452
        %454 = vrot.lane.b32.xlu0 %v453, 80
        %v455 = vpop.permute.xlu0 %454
        %457 = vst.msk [vmem:[#allocation2 + $0xf] sm:$0x1] %vm240, %v455
        %v458 = vld [vmem:[#allocation3 + $0x2] sm:$0x1]
        %v460 = vlaneseq
        %v461 = vshrl.u32 %v460, 7
        %v462 = vsub.s32 0, %v461
        %v463 = vrot.slane %v458, %v462
        %464 = vrot.lane.b32.xlu0 %v463, 48
        %v465 = vpop.permute.xlu0 %464
        %467 = vst.msk [vmem:[#allocation2 + $0x10] sm:$0x1] %vm229, %v465
        %v468 = vld [vmem:[#allocation3 + $0x3] sm:$0x1]
        %v470 = vlaneseq
        %v471 = vshrl.u32 %v470, 7
        %v472 = vsub.s32 0, %v471
        %v473 = vrot.slane %v468, %v472
        %474 = vrot.lane.b32.xlu0 %v473, 64
        %v475 = vpop.permute.xlu0 %474
        %477 = vst.msk [vmem:[#allocation2 + $0x10] sm:$0x1] %vm240, %v475
        %v478 = vld [vmem:[#allocation3 + $0x2] sm:$0x1]
        %v480 = vlaneseq
        %v481 = vshrl.u32 %v480, 7
        %v482 = vsub.s32 0, %v481
        %v483 = vrot.slane %v478, %v482
        %484 = vrot.lane.b32.xlu0 %v483, 32
        %v485 = vpop.permute.xlu0 %484
        %487 = vst.msk [vmem:[#allocation2 + $0x11] sm:$0x1] %vm229, %v485
        %v488 = vld [vmem:[#allocation3 + $0x3] sm:$0x1]
        %v490 = vlaneseq
        %v491 = vshrl.u32 %v490, 7
        %v492 = vsub.s32 0, %v491
        %v493 = vrot.slane %v488, %v492
        %494 = vrot.lane.b32.xlu0 %v493, 48
        %v495 = vpop.permute.xlu0 %494
        %497 = vst.msk [vmem:[#allocation2 + $0x11] sm:$0x1] %vm240, %v495
        %v498 = vld [vmem:[#allocation3 + $0x2] sm:$0x1]
        %v500 = vlaneseq
        %v501 = vshrl.u32 %v500, 7
        %v502 = vsub.s32 0, %v501
        %v503 = vrot.slane %v498, %v502
        %504 = vrot.lane.b32.xlu0 %v503, 16
        %v505 = vpop.permute.xlu0 %504
        %507 = vst.msk [vmem:[#allocation2 + $0x12] sm:$0x1] %vm229, %v505
        %v508 = vld [vmem:[#allocation3 + $0x3] sm:$0x1]
        %v510 = vlaneseq
        %v511 = vshrl.u32 %v510, 7
        %v512 = vsub.s32 0, %v511
        %v513 = vrot.slane %v508, %v512
        %514 = vrot.lane.b32.xlu0 %v513, 32
        %v515 = vpop.permute.xlu0 %514
        %517 = vst.msk [vmem:[#allocation2 + $0x12] sm:$0x1] %vm240, %v515
        %v518 = vld [vmem:[#allocation2] sm:$0xff]
        %v519 = vld [vmem:[#allocation2 + $0x8] sm:$0xff]
        %v520 = vld [vmem:[%s1] sm:$0xff]
        %v521 = vld [vmem:[%s1 + $0x8] sm:$0xff]
        %v522 = vld [vmem:[%s1 + $0x10] sm:$0xff]
        %v523 = vld [vmem:[%s1 + $0x18] sm:$0xff]
        %v524 = vld [vmem:[#allocation2 + $0x1] sm:$0xff]
        %v525 = vld [vmem:[#allocation2 + $0x9] sm:$0xff]
        %s526 = scalar_lea.vmem %s1, 32
        %v527 = vld [vmem:[%s526] sm:$0xff]
        %v528 = vld [vmem:[%s526 + $0x8] sm:$0xff]
        %v529 = vld [vmem:[%s526 + $0x10] sm:$0xff]
        %v530 = vld [vmem:[%s526 + $0x18] sm:$0xff]
        %vm531 = vcmask 261120
        %v533 = vsel %vm531, %v524, 0
        %v536 = vsel %vm531, %v525, 0
        %538 = vmatprep.subr.mxu0 0.0
        %539 = vmatpush1.msra.mxu0 0.0
        %540 = vmatprep.subr.mxu0 0.0
        %541 = vmatpush1.msra.mxu0 0.0
        %542 = vmatprep.subr.mxu0 0.0
        %543 = vmatpush1.msra.mxu0 0.0
        %544 = vmatprep.subr.mxu0 0.0
        %545 = vmatpush1.msra.mxu0 0.0
        %546 = vmatprep.subr.mxu0 0.0
        %547 = vmatpush1.msra.mxu0 0.0
        %548 = vmatprep.subr.mxu0 0.0
        %549 = vmatpush1.msra.mxu0 0.0
        %550 = vmatprep.subr.mxu0 0.0
        %551 = vmatpush1.msra.mxu0 0.0
        %552 = vmatprep.subr.mxu0 0.0
        %553 = vmatpush1.msra.mxu0 0.0
        %554 = vmatprep.subr.mxu0 0.0
        %555 = vmatpush1.msra.mxu0 0.0
        %556 = vmatprep.subr.mxu0 0.0
        %557 = vmatpush1.msra.mxu0 0.0
        %558 = vmatprep.subr.mxu0 0.0
        %559 = vmatpush1.msra.mxu0 0.0
        %560 = vmatprep.subr.mxu0 0.0
        %561 = vmatpush1.msra.mxu0 0.0
        %562 = vmatprep.subr.mxu0 0.0
        %v563 = vand.u32 %v530, 4294901760
        %564 = vmatpush1.msra.mxu0 %v563
        %565 = vmatprep.subr.mxu0 0.0
        %v566 = vand.u32 %v529, 4294901760
        %567 = vmatpush1.msra.mxu0 %v566
        %568 = vmatprep.subr.mxu0 0.0
        %v569 = vand.u32 %v528, 4294901760
        %570 = vmatpush1.msra.mxu0 %v569
        %571 = vmatprep.subr.mxu0 0.0
        %v572 = vand.u32 %v527, 4294901760
        %573 = vmatpush1.msra.mxu0 %v572
        %574 = vmatprep.subr.mxu0 0.0
        %575 = vmatpush2.msra.mxu0 0.0
        %576 = vmatprep.subr.mxu0 0.0
        %577 = vmatpush2.msra.mxu0 0.0
        %578 = vmatprep.subr.mxu0 0.0
        %579 = vmatpush2.msra.mxu0 0.0
        %580 = vmatprep.subr.mxu0 0.0
        %581 = vmatpush2.msra.mxu0 0.0
        %582 = vmatprep.subr.mxu0 0.0
        %583 = vmatpush2.msra.mxu0 0.0
        %584 = vmatprep.subr.mxu0 0.0
        %585 = vmatpush2.msra.mxu0 0.0
        %586 = vmatprep.subr.mxu0 0.0
        %587 = vmatpush2.msra.mxu0 0.0
        %588 = vmatprep.subr.mxu0 0.0
        %589 = vmatpush2.msra.mxu0 0.0
        %590 = vmatprep.subr.mxu0 0.0
        %591 = vmatpush2.msra.mxu0 0.0
        %592 = vmatprep.subr.mxu0 0.0
        %593 = vmatpush2.msra.mxu0 0.0
        %594 = vmatprep.subr.mxu0 0.0
        %595 = vmatpush2.msra.mxu0 0.0
        %596 = vmatprep.subr.mxu0 0.0
        %597 = vmatpush2.msra.mxu0 0.0
        %598 = vmatprep.subr.mxu0 0.0
        %599 = vmatpush2.msra.mxu0 0.0
        %600 = vmatprep.subr.mxu0 0.0
        %601 = vmatpush2.msra.mxu0 0.0
        %602 = vmatprep.subr.mxu0 0.0
        %603 = vmatpush2.msra.mxu0 0.0
        %604 = vmatprep.subr.mxu0 0.0
        %605 = vmatpush2.msra.mxu0 0.0
        %606 = vmatprep.mubr.f32.mxu0 0.0
        %v607 = vand.u32 %v533, 4294901760
        %v608 = vsub.f32 %v533, %v607
        %v609 = vand.u32 %v608, 4294901760
        %v610 = vsub.f32 %v608, %v609
        %v611 = vand.u32 %v610, 4294901760
        %612 = vmatmul.mubr.f32.gmra.mxu0 %v611
        %v613 = vpop.f32.mrf.mxu0
        %v614 = vadd.f32 0.0, %v613
        %v615 = vpop.f32.mrf.mxu0
        %616 = vmatprep.mubr.f32.mxu0 0.0
        %v617 = vand.u32 %v536, 4294901760
        %v618 = vsub.f32 %v536, %v617
        %v619 = vand.u32 %v618, 4294901760
        %v620 = vsub.f32 %v618, %v619
        %v621 = vand.u32 %v620, 4294901760
        %622 = vmatmul.mubr.f32.gmra.mxu0 %v621
        %v623 = vpop.f32.mrf.mxu0
        %v624 = vadd.f32 0.0, %v623
        %v625 = vpop.f32.mrf.mxu0
        %626 = vdwg.mxu0
        %627 = vmatprep.subr.mxu0 0.0
        %628 = vmatpush1.msra.mxu0 0.0
        %629 = vmatprep.subr.mxu0 0.0
        %630 = vmatpush1.msra.mxu0 0.0
        %631 = vmatprep.subr.mxu0 0.0
        %632 = vmatpush1.msra.mxu0 0.0
        %633 = vmatprep.subr.mxu0 0.0
        %634 = vmatpush1.msra.mxu0 0.0
        %635 = vmatprep.subr.mxu0 0.0
        %636 = vmatpush1.msra.mxu0 0.0
        %637 = vmatprep.subr.mxu0 0.0
        %638 = vmatpush1.msra.mxu0 0.0
        %639 = vmatprep.subr.mxu0 0.0
        %640 = vmatpush1.msra.mxu0 0.0
        %641 = vmatprep.subr.mxu0 0.0
        %642 = vmatpush1.msra.mxu0 0.0
        %643 = vmatprep.subr.mxu0 0.0
        %644 = vmatpush1.msra.mxu0 0.0
        %645 = vmatprep.subr.mxu0 0.0
        %646 = vmatpush1.msra.mxu0 0.0
        %647 = vmatprep.subr.mxu0 0.0
        %648 = vmatpush1.msra.mxu0 0.0
        %649 = vmatprep.subr.mxu0 0.0
        %650 = vmatpush1.msra.mxu0 0.0
        %651 = vmatprep.subr.mxu0 0.0
        %v652 = vand.u32 %v530, 4294901760
        %v653 = vsub.f32 %v530, %v652
        %v654 = vand.u32 %v653, 4294901760
        %v655 = vsub.f32 %v653, %v654
        %v656 = vand.u32 %v655, 4294901760
        %657 = vmatpush1.msra.mxu0 %v656
        %658 = vmatprep.subr.mxu0 0.0
        %v659 = vand.u32 %v529, 4294901760
        %v660 = vsub.f32 %v529, %v659
        %v661 = vand.u32 %v660, 4294901760
        %v662 = vsub.f32 %v660, %v661
        %v663 = vand.u32 %v662, 4294901760
        %664 = vmatpush1.msra.mxu0 %v663
        %665 = vmatprep.subr.mxu0 0.0
        %v666 = vand.u32 %v528, 4294901760
        %v667 = vsub.f32 %v528, %v666
        %v668 = vand.u32 %v667, 4294901760
        %v669 = vsub.f32 %v667, %v668
        %v670 = vand.u32 %v669, 4294901760
        %671 = vmatpush1.msra.mxu0 %v670
        %672 = vmatprep.subr.mxu0 0.0
        %v673 = vand.u32 %v527, 4294901760
        %v674 = vsub.f32 %v527, %v673
        %v675 = vand.u32 %v674, 4294901760
        %v676 = vsub.f32 %v674, %v675
        %v677 = vand.u32 %v676, 4294901760
        %678 = vmatpush1.msra.mxu0 %v677
        %679 = vmatprep.subr.mxu0 0.0
        %680 = vmatpush2.msra.mxu0 0.0
        %681 = vmatprep.subr.mxu0 0.0
        %682 = vmatpush2.msra.mxu0 0.0
        %683 = vmatprep.subr.mxu0 0.0
        %684 = vmatpush2.msra.mxu0 0.0
        %685 = vmatprep.subr.mxu0 0.0
        %686 = vmatpush2.msra.mxu0 0.0
        %687 = vmatprep.subr.mxu0 0.0
        %688 = vmatpush2.msra.mxu0 0.0
        %689 = vmatprep.subr.mxu0 0.0
        %690 = vmatpush2.msra.mxu0 0.0
        %691 = vmatprep.subr.mxu0 0.0
        %692 = vmatpush2.msra.mxu0 0.0
        %693 = vmatprep.subr.mxu0 0.0
        %694 = vmatpush2.msra.mxu0 0.0
        %695 = vmatprep.subr.mxu0 0.0
        %696 = vmatpush2.msra.mxu0 0.0
        %697 = vmatprep.subr.mxu0 0.0
        %698 = vmatpush2.msra.mxu0 0.0
        %699 = vmatprep.subr.mxu0 0.0
        %700 = vmatpush2.msra.mxu0 0.0
        %701 = vmatprep.subr.mxu0 0.0
        %702 = vmatpush2.msra.mxu0 0.0
        %703 = vmatprep.subr.mxu0 0.0
        %704 = vmatpush2.msra.mxu0 0.0
        %705 = vmatprep.subr.mxu0 0.0
        %706 = vmatpush2.msra.mxu0 0.0
        %707 = vmatprep.subr.mxu0 0.0
        %708 = vmatpush2.msra.mxu0 0.0
        %709 = vmatprep.subr.mxu0 0.0
        %710 = vmatpush2.msra.mxu0 0.0
        %711 = vmatprep.mubr.f32.mxu0 0.0
        %v712 = vand.u32 %v533, 4294901760
        %713 = vmatmul.mubr.f32.gmra.mxu0 %v712
        %v714 = vpop.f32.mrf.mxu0
        %v715 = vadd.f32 %v614, %v714
        %v716 = vpop.f32.mrf.mxu0
        %717 = vmatprep.mubr.f32.mxu0 0.0
        %v718 = vand.u32 %v536, 4294901760
        %719 = vmatmul.mubr.f32.gmra.mxu0 %v718
        %v720 = vpop.f32.mrf.mxu0
        %v721 = vadd.f32 %v624, %v720
        %v722 = vpop.f32.mrf.mxu0
        %723 = vdwg.mxu0
        %724 = vmatprep.subr.mxu0 0.0
        %725 = vmatpush1.msra.mxu0 0.0
        %726 = vmatprep.subr.mxu0 0.0
        %727 = vmatpush1.msra.mxu0 0.0
        %728 = vmatprep.subr.mxu0 0.0
        %729 = vmatpush1.msra.mxu0 0.0
        %730 = vmatprep.subr.mxu0 0.0
        %731 = vmatpush1.msra.mxu0 0.0
        %732 = vmatprep.subr.mxu0 0.0
        %733 = vmatpush1.msra.mxu0 0.0
        %734 = vmatprep.subr.mxu0 0.0
        %735 = vmatpush1.msra.mxu0 0.0
        %736 = vmatprep.subr.mxu0 0.0
        %737 = vmatpush1.msra.mxu0 0.0
        %738 = vmatprep.subr.mxu0 0.0
        %739 = vmatpush1.msra.mxu0 0.0
        %740 = vmatprep.subr.mxu0 0.0
        %741 = vmatpush1.msra.mxu0 0.0
        %742 = vmatprep.subr.mxu0 0.0
        %743 = vmatpush1.msra.mxu0 0.0
        %744 = vmatprep.subr.mxu0 0.0
        %745 = vmatpush1.msra.mxu0 0.0
        %746 = vmatprep.subr.mxu0 0.0
        %747 = vmatpush1.msra.mxu0 0.0
        %748 = vmatprep.subr.mxu0 0.0
        %v749 = vand.u32 %v530, 4294901760
        %v750 = vsub.f32 %v530, %v749
        %751 = vmatpush1.msra.mxu0 %v750
        %752 = vmatprep.subr.mxu0 0.0
        %v753 = vand.u32 %v529, 4294901760
        %v754 = vsub.f32 %v529, %v753
        %755 = vmatpush1.msra.mxu0 %v754
        %756 = vmatprep.subr.mxu0 0.0
        %v757 = vand.u32 %v528, 4294901760
        %v758 = vsub.f32 %v528, %v757
        %759 = vmatpush1.msra.mxu0 %v758
        %760 = vmatprep.subr.mxu0 0.0
        %v761 = vand.u32 %v527, 4294901760
        %v762 = vsub.f32 %v527, %v761
        %763 = vmatpush1.msra.mxu0 %v762
        %764 = vmatprep.subr.mxu0 0.0
        %765 = vmatpush2.msra.mxu0 0.0
        %766 = vmatprep.subr.mxu0 0.0
        %767 = vmatpush2.msra.mxu0 0.0
        %768 = vmatprep.subr.mxu0 0.0
        %769 = vmatpush2.msra.mxu0 0.0
        %770 = vmatprep.subr.mxu0 0.0
        %771 = vmatpush2.msra.mxu0 0.0
        %772 = vmatprep.subr.mxu0 0.0
        %773 = vmatpush2.msra.mxu0 0.0
        %774 = vmatprep.subr.mxu0 0.0
        %775 = vmatpush2.msra.mxu0 0.0
        %776 = vmatprep.subr.mxu0 0.0
        %777 = vmatpush2.msra.mxu0 0.0
        %778 = vmatprep.subr.mxu0 0.0
        %779 = vmatpush2.msra.mxu0 0.0
        %780 = vmatprep.subr.mxu0 0.0
        %781 = vmatpush2.msra.mxu0 0.0
        %782 = vmatprep.subr.mxu0 0.0
        %783 = vmatpush2.msra.mxu0 0.0
        %784 = vmatprep.subr.mxu0 0.0
        %785 = vmatpush2.msra.mxu0 0.0
        %786 = vmatprep.subr.mxu0 0.0
        %787 = vmatpush2.msra.mxu0 0.0
        %788 = vmatprep.subr.mxu0 0.0
        %789 = vmatpush2.msra.mxu0 0.0
        %790 = vmatprep.subr.mxu0 0.0
        %791 = vmatpush2.msra.mxu0 0.0
        %792 = vmatprep.subr.mxu0 0.0
        %793 = vmatpush2.msra.mxu0 0.0
        %794 = vmatprep.subr.mxu0 0.0
        %795 = vmatpush2.msra.mxu0 0.0
        %796 = vmatprep.mubr.f32.mxu0 0.0
        %v797 = vand.u32 %v533, 4294901760
        %v798 = vsub.f32 %v533, %v797
        %799 = vmatmul.mubr.f32.gmra.mxu0 %v798
        %v800 = vpop.f32.mrf.mxu0
        %v801 = vadd.f32 %v715, %v800
        %v802 = vpop.f32.mrf.mxu0
        %803 = vmatprep.mubr.f32.mxu0 0.0
        %v804 = vand.u32 %v536, 4294901760
        %v805 = vsub.f32 %v536, %v804
        %806 = vmatmul.mubr.f32.gmra.mxu0 %v805
        %v807 = vpop.f32.mrf.mxu0
        %v808 = vadd.f32 %v721, %v807
        %v809 = vpop.f32.mrf.mxu0
        %810 = vdwg.mxu0
        %811 = vmatprep.subr.mxu0 0.0
        %812 = vmatpush1.msra.mxu0 0.0
        %813 = vmatprep.subr.mxu0 0.0
        %814 = vmatpush1.msra.mxu0 0.0
        %815 = vmatprep.subr.mxu0 0.0
        %816 = vmatpush1.msra.mxu0 0.0
        %817 = vmatprep.subr.mxu0 0.0
        %818 = vmatpush1.msra.mxu0 0.0
        %819 = vmatprep.subr.mxu0 0.0
        %820 = vmatpush1.msra.mxu0 0.0
        %821 = vmatprep.subr.mxu0 0.0
        %822 = vmatpush1.msra.mxu0 0.0
        %823 = vmatprep.subr.mxu0 0.0
        %824 = vmatpush1.msra.mxu0 0.0
        %825 = vmatprep.subr.mxu0 0.0
        %826 = vmatpush1.msra.mxu0 0.0
        %827 = vmatprep.subr.mxu0 0.0
        %828 = vmatpush1.msra.mxu0 0.0
        %829 = vmatprep.subr.mxu0 0.0
        %830 = vmatpush1.msra.mxu0 0.0
        %831 = vmatprep.subr.mxu0 0.0
        %832 = vmatpush1.msra.mxu0 0.0
        %833 = vmatprep.subr.mxu0 0.0
        %834 = vmatpush1.msra.mxu0 0.0
        %835 = vmatprep.subr.mxu0 0.0
        %v836 = vand.u32 %v530, 4294901760
        %837 = vmatpush1.msra.mxu0 %v836
        %838 = vmatprep.subr.mxu0 0.0
        %v839 = vand.u32 %v529, 4294901760
        %840 = vmatpush1.msra.mxu0 %v839
        %841 = vmatprep.subr.mxu0 0.0
        %v842 = vand.u32 %v528, 4294901760
        %843 = vmatpush1.msra.mxu0 %v842
        %844 = vmatprep.subr.mxu0 0.0
        %v845 = vand.u32 %v527, 4294901760
        %846 = vmatpush1.msra.mxu0 %v845
        %847 = vmatprep.subr.mxu0 0.0
        %848 = vmatpush2.msra.mxu0 0.0
        %849 = vmatprep.subr.mxu0 0.0
        %850 = vmatpush2.msra.mxu0 0.0
        %851 = vmatprep.subr.mxu0 0.0
        %852 = vmatpush2.msra.mxu0 0.0
        %853 = vmatprep.subr.mxu0 0.0
        %854 = vmatpush2.msra.mxu0 0.0
        %855 = vmatprep.subr.mxu0 0.0
        %856 = vmatpush2.msra.mxu0 0.0
        %857 = vmatprep.subr.mxu0 0.0
        %858 = vmatpush2.msra.mxu0 0.0
        %859 = vmatprep.subr.mxu0 0.0
        %860 = vmatpush2.msra.mxu0 0.0
        %861 = vmatprep.subr.mxu0 0.0
        %862 = vmatpush2.msra.mxu0 0.0
        %863 = vmatprep.subr.mxu0 0.0
        %864 = vmatpush2.msra.mxu0 0.0
        %865 = vmatprep.subr.mxu0 0.0
        %866 = vmatpush2.msra.mxu0 0.0
        %867 = vmatprep.subr.mxu0 0.0
        %868 = vmatpush2.msra.mxu0 0.0
        %869 = vmatprep.subr.mxu0 0.0
        %870 = vmatpush2.msra.mxu0 0.0
        %871 = vmatprep.subr.mxu0 0.0
        %872 = vmatpush2.msra.mxu0 0.0
        %873 = vmatprep.subr.mxu0 0.0
        %874 = vmatpush2.msra.mxu0 0.0
        %875 = vmatprep.subr.mxu0 0.0
        %876 = vmatpush2.msra.mxu0 0.0
        %877 = vmatprep.subr.mxu0 0.0
        %878 = vmatpush2.msra.mxu0 0.0
        %879 = vmatprep.mubr.f32.mxu0 0.0
        %v880 = vand.u32 %v533, 4294901760
        %v881 = vsub.f32 %v533, %v880
        %v882 = vand.u32 %v881, 4294901760
        %883 = vmatmul.mubr.f32.gmra.mxu0 %v882
        %v884 = vpop.f32.mrf.mxu0
        %v885 = vadd.f32 %v801, %v884
        %v886 = vpop.f32.mrf.mxu0
        %887 = vmatprep.mubr.f32.mxu0 0.0
        %v888 = vand.u32 %v536, 4294901760
        %v889 = vsub.f32 %v536, %v888
        %v890 = vand.u32 %v889, 4294901760
        %891 = vmatmul.mubr.f32.gmra.mxu0 %v890
        %v892 = vpop.f32.mrf.mxu0
        %v893 = vadd.f32 %v808, %v892
        %v894 = vpop.f32.mrf.mxu0
        %895 = vdwg.mxu0
        %896 = vmatprep.subr.mxu0 0.0
        %897 = vmatpush1.msra.mxu0 0.0
        %898 = vmatprep.subr.mxu0 0.0
        %899 = vmatpush1.msra.mxu0 0.0
        %900 = vmatprep.subr.mxu0 0.0
        %901 = vmatpush1.msra.mxu0 0.0
        %902 = vmatprep.subr.mxu0 0.0
        %903 = vmatpush1.msra.mxu0 0.0
        %904 = vmatprep.subr.mxu0 0.0
        %905 = vmatpush1.msra.mxu0 0.0
        %906 = vmatprep.subr.mxu0 0.0
        %907 = vmatpush1.msra.mxu0 0.0
        %908 = vmatprep.subr.mxu0 0.0
        %909 = vmatpush1.msra.mxu0 0.0
        %910 = vmatprep.subr.mxu0 0.0
        %911 = vmatpush1.msra.mxu0 0.0
        %912 = vmatprep.subr.mxu0 0.0
        %913 = vmatpush1.msra.mxu0 0.0
        %914 = vmatprep.subr.mxu0 0.0
        %915 = vmatpush1.msra.mxu0 0.0
        %916 = vmatprep.subr.mxu0 0.0
        %917 = vmatpush1.msra.mxu0 0.0
        %918 = vmatprep.subr.mxu0 0.0
        %919 = vmatpush1.msra.mxu0 0.0
        %920 = vmatprep.subr.mxu0 0.0
        %v921 = vand.u32 %v530, 4294901760
        %v922 = vsub.f32 %v530, %v921
        %v923 = vand.u32 %v922, 4294901760
        %924 = vmatpush1.msra.mxu0 %v923
        %925 = vmatprep.subr.mxu0 0.0
        %v926 = vand.u32 %v529, 4294901760
        %v927 = vsub.f32 %v529, %v926
        %v928 = vand.u32 %v927, 4294901760
        %929 = vmatpush1.msra.mxu0 %v928
        %930 = vmatprep.subr.mxu0 0.0
        %v931 = vand.u32 %v528, 4294901760
        %v932 = vsub.f32 %v528, %v931
        %v933 = vand.u32 %v932, 4294901760
        %934 = vmatpush1.msra.mxu0 %v933
        %935 = vmatprep.subr.mxu0 0.0
        %v936 = vand.u32 %v527, 4294901760
        %v937 = vsub.f32 %v527, %v936
        %v938 = vand.u32 %v937, 4294901760
        %939 = vmatpush1.msra.mxu0 %v938
        %940 = vmatprep.subr.mxu0 0.0
        %941 = vmatpush2.msra.mxu0 0.0
        %942 = vmatprep.subr.mxu0 0.0
        %943 = vmatpush2.msra.mxu0 0.0
        %944 = vmatprep.subr.mxu0 0.0
        %945 = vmatpush2.msra.mxu0 0.0
        %946 = vmatprep.subr.mxu0 0.0
        %947 = vmatpush2.msra.mxu0 0.0
        %948 = vmatprep.subr.mxu0 0.0
        %949 = vmatpush2.msra.mxu0 0.0
        %950 = vmatprep.subr.mxu0 0.0
        %951 = vmatpush2.msra.mxu0 0.0
        %952 = vmatprep.subr.mxu0 0.0
        %953 = vmatpush2.msra.mxu0 0.0
        %954 = vmatprep.subr.mxu0 0.0
        %955 = vmatpush2.msra.mxu0 0.0
        %956 = vmatprep.subr.mxu0 0.0
        %957 = vmatpush2.msra.mxu0 0.0
        %958 = vmatprep.subr.mxu0 0.0
        %959 = vmatpush2.msra.mxu0 0.0
        %960 = vmatprep.subr.mxu0 0.0
        %961 = vmatpush2.msra.mxu0 0.0
        %962 = vmatprep.subr.mxu0 0.0
        %963 = vmatpush2.msra.mxu0 0.0
        %964 = vmatprep.subr.mxu0 0.0
        %965 = vmatpush2.msra.mxu0 0.0
        %966 = vmatprep.subr.mxu0 0.0
        %967 = vmatpush2.msra.mxu0 0.0
        %968 = vmatprep.subr.mxu0 0.0
        %969 = vmatpush2.msra.mxu0 0.0
        %970 = vmatprep.subr.mxu0 0.0
        %971 = vmatpush2.msra.mxu0 0.0
        %972 = vmatprep.mubr.f32.mxu0 0.0
        %v973 = vand.u32 %v533, 4294901760
        %974 = vmatmul.mubr.f32.gmra.mxu0 %v973
        %v975 = vpop.f32.mrf.mxu0
        %v976 = vadd.f32 %v885, %v975
        %v977 = vpop.f32.mrf.mxu0
        %978 = vmatprep.mubr.f32.mxu0 0.0
        %v979 = vand.u32 %v536, 4294901760
        %980 = vmatmul.mubr.f32.gmra.mxu0 %v979
        %v981 = vpop.f32.mrf.mxu0
        %v982 = vadd.f32 %v893, %v981
        %v983 = vpop.f32.mrf.mxu0
        %984 = vdwg.mxu0
        %985 = vmatprep.subr.mxu0 0.0
        %986 = vmatpush1.msra.mxu0 0.0
        %987 = vmatprep.subr.mxu0 0.0
        %988 = vmatpush1.msra.mxu0 0.0
        %989 = vmatprep.subr.mxu0 0.0
        %990 = vmatpush1.msra.mxu0 0.0
        %991 = vmatprep.subr.mxu0 0.0
        %992 = vmatpush1.msra.mxu0 0.0
        %993 = vmatprep.subr.mxu0 0.0
        %994 = vmatpush1.msra.mxu0 0.0
        %995 = vmatprep.subr.mxu0 0.0
        %996 = vmatpush1.msra.mxu0 0.0
        %997 = vmatprep.subr.mxu0 0.0
        %998 = vmatpush1.msra.mxu0 0.0
        %999 = vmatprep.subr.mxu0 0.0
        %1000 = vmatpush1.msra.mxu0 0.0
        %1001 = vmatprep.subr.mxu0 0.0
        %1002 = vmatpush1.msra.mxu0 0.0
        %1003 = vmatprep.subr.mxu0 0.0
        %1004 = vmatpush1.msra.mxu0 0.0
        %1005 = vmatprep.subr.mxu0 0.0
        %1006 = vmatpush1.msra.mxu0 0.0
        %1007 = vmatprep.subr.mxu0 0.0
        %1008 = vmatpush1.msra.mxu0 0.0
        %1009 = vmatprep.subr.mxu0 0.0
        %v1010 = vand.u32 %v530, 4294901760
        %1011 = vmatpush1.msra.mxu0 %v1010
        %1012 = vmatprep.subr.mxu0 0.0
        %v1013 = vand.u32 %v529, 4294901760
        %1014 = vmatpush1.msra.mxu0 %v1013
        %1015 = vmatprep.subr.mxu0 0.0
        %v1016 = vand.u32 %v528, 4294901760
        %1017 = vmatpush1.msra.mxu0 %v1016
        %1018 = vmatprep.subr.mxu0 0.0
        %v1019 = vand.u32 %v527, 4294901760
        %1020 = vmatpush1.msra.mxu0 %v1019
        %1021 = vmatprep.subr.mxu0 0.0
        %1022 = vmatpush2.msra.mxu0 0.0
        %1023 = vmatprep.subr.mxu0 0.0
        %1024 = vmatpush2.msra.mxu0 0.0
        %1025 = vmatprep.subr.mxu0 0.0
        %1026 = vmatpush2.msra.mxu0 0.0
        %1027 = vmatprep.subr.mxu0 0.0
        %1028 = vmatpush2.msra.mxu0 0.0
        %1029 = vmatprep.subr.mxu0 0.0
        %1030 = vmatpush2.msra.mxu0 0.0
        %1031 = vmatprep.subr.mxu0 0.0
        %1032 = vmatpush2.msra.mxu0 0.0
        %1033 = vmatprep.subr.mxu0 0.0
        %1034 = vmatpush2.msra.mxu0 0.0
        %1035 = vmatprep.subr.mxu0 0.0
        %1036 = vmatpush2.msra.mxu0 0.0
        %1037 = vmatprep.subr.mxu0 0.0
        %1038 = vmatpush2.msra.mxu0 0.0
        %1039 = vmatprep.subr.mxu0 0.0
        %1040 = vmatpush2.msra.mxu0 0.0
        %1041 = vmatprep.subr.mxu0 0.0
        %1042 = vmatpush2.msra.mxu0 0.0
        %1043 = vmatprep.subr.mxu0 0.0
        %1044 = vmatpush2.msra.mxu0 0.0
        %1045 = vmatprep.subr.mxu0 0.0
        %1046 = vmatpush2.msra.mxu0 0.0
        %1047 = vmatprep.subr.mxu0 0.0
        %1048 = vmatpush2.msra.mxu0 0.0
        %1049 = vmatprep.subr.mxu0 0.0
        %1050 = vmatpush2.msra.mxu0 0.0
        %1051 = vmatprep.subr.mxu0 0.0
        %1052 = vmatpush2.msra.mxu0 0.0
        %1053 = vmatprep.mubr.f32.mxu0 0.0
        %v1054 = vand.u32 %v533, 4294901760
        %1055 = vmatmul.mubr.f32.gmra.mxu0 %v1054
        %v1056 = vpop.f32.mrf.mxu0
        %v1057 = vadd.f32 %v976, %v1056
        %v1058 = vpop.f32.mrf.mxu0
        %1059 = vmatprep.mubr.f32.mxu0 0.0
        %v1060 = vand.u32 %v536, 4294901760
        %1061 = vmatmul.mubr.f32.gmra.mxu0 %v1060
        %v1062 = vpop.f32.mrf.mxu0
        %v1063 = vadd.f32 %v982, %v1062
        %v1064 = vpop.f32.mrf.mxu0
        %1065 = vdwg.mxu0
        %v1067 = vsel %vm531, %v518, 0
        %v1070 = vsel %vm531, %v519, 0
        %1072 = vmatprep.subr.mxu0 0.0
        %1073 = vmatpush1.msra.mxu0 0.0
        %1074 = vmatprep.subr.mxu0 0.0
        %1075 = vmatpush1.msra.mxu0 0.0
        %1076 = vmatprep.subr.mxu0 0.0
        %1077 = vmatpush1.msra.mxu0 0.0
        %1078 = vmatprep.subr.mxu0 0.0
        %1079 = vmatpush1.msra.mxu0 0.0
        %1080 = vmatprep.subr.mxu0 0.0
        %1081 = vmatpush1.msra.mxu0 0.0
        %1082 = vmatprep.subr.mxu0 0.0
        %1083 = vmatpush1.msra.mxu0 0.0
        %1084 = vmatprep.subr.mxu0 0.0
        %1085 = vmatpush1.msra.mxu0 0.0
        %1086 = vmatprep.subr.mxu0 0.0
        %1087 = vmatpush1.msra.mxu0 0.0
        %1088 = vmatprep.subr.mxu0 0.0
        %1089 = vmatpush1.msra.mxu0 0.0
        %1090 = vmatprep.subr.mxu0 0.0
        %1091 = vmatpush1.msra.mxu0 0.0
        %1092 = vmatprep.subr.mxu0 0.0
        %1093 = vmatpush1.msra.mxu0 0.0
        %1094 = vmatprep.subr.mxu0 0.0
        %1095 = vmatpush1.msra.mxu0 0.0
        %1096 = vmatprep.subr.mxu0 0.0
        %v1097 = vand.u32 %v523, 4294901760
        %1098 = vmatpush1.msra.mxu0 %v1097
        %1099 = vmatprep.subr.mxu0 0.0
        %v1100 = vand.u32 %v522, 4294901760
        %1101 = vmatpush1.msra.mxu0 %v1100
        %1102 = vmatprep.subr.mxu0 0.0
        %v1103 = vand.u32 %v521, 4294901760
        %1104 = vmatpush1.msra.mxu0 %v1103
        %1105 = vmatprep.subr.mxu0 0.0
        %v1106 = vand.u32 %v520, 4294901760
        %1107 = vmatpush1.msra.mxu0 %v1106
        %1108 = vmatprep.subr.mxu0 0.0
        %1109 = vmatpush2.msra.mxu0 0.0
        %1110 = vmatprep.subr.mxu0 0.0
        %1111 = vmatpush2.msra.mxu0 0.0
        %1112 = vmatprep.subr.mxu0 0.0
        %1113 = vmatpush2.msra.mxu0 0.0
        %1114 = vmatprep.subr.mxu0 0.0
        %1115 = vmatpush2.msra.mxu0 0.0
        %1116 = vmatprep.subr.mxu0 0.0
        %1117 = vmatpush2.msra.mxu0 0.0
        %1118 = vmatprep.subr.mxu0 0.0
        %1119 = vmatpush2.msra.mxu0 0.0
        %1120 = vmatprep.subr.mxu0 0.0
        %1121 = vmatpush2.msra.mxu0 0.0
        %1122 = vmatprep.subr.mxu0 0.0
        %1123 = vmatpush2.msra.mxu0 0.0
        %1124 = vmatprep.subr.mxu0 0.0
        %1125 = vmatpush2.msra.mxu0 0.0
        %1126 = vmatprep.subr.mxu0 0.0
        %1127 = vmatpush2.msra.mxu0 0.0
        %1128 = vmatprep.subr.mxu0 0.0
        %1129 = vmatpush2.msra.mxu0 0.0
        %1130 = vmatprep.subr.mxu0 0.0
        %1131 = vmatpush2.msra.mxu0 0.0
        %1132 = vmatprep.subr.mxu0 0.0
        %1133 = vmatpush2.msra.mxu0 0.0
        %1134 = vmatprep.subr.mxu0 0.0
        %1135 = vmatpush2.msra.mxu0 0.0
        %1136 = vmatprep.subr.mxu0 0.0
        %1137 = vmatpush2.msra.mxu0 0.0
        %1138 = vmatprep.subr.mxu0 0.0
        %1139 = vmatpush2.msra.mxu0 0.0
        %1140 = vmatprep.mubr.f32.mxu0 0.0
        %v1141 = vand.u32 %v1067, 4294901760
        %v1142 = vsub.f32 %v1067, %v1141
        %v1143 = vand.u32 %v1142, 4294901760
        %v1144 = vsub.f32 %v1142, %v1143
        %v1145 = vand.u32 %v1144, 4294901760
        %1146 = vmatmul.mubr.f32.gmra.mxu0 %v1145
        %v1147 = vpop.f32.mrf.mxu0
        %v1148 = vadd.f32 %v1057, %v1147
        %v1149 = vpop.f32.mrf.mxu0
        %1150 = vmatprep.mubr.f32.mxu0 0.0
        %v1151 = vand.u32 %v1070, 4294901760
        %v1152 = vsub.f32 %v1070, %v1151
        %v1153 = vand.u32 %v1152, 4294901760
        %v1154 = vsub.f32 %v1152, %v1153
        %v1155 = vand.u32 %v1154, 4294901760
        %1156 = vmatmul.mubr.f32.gmra.mxu0 %v1155
        %v1157 = vpop.f32.mrf.mxu0
        %v1158 = vadd.f32 %v1063, %v1157
        %v1159 = vpop.f32.mrf.mxu0
        %1160 = vdwg.mxu0
        %1161 = vmatprep.subr.mxu0 0.0
        %1162 = vmatpush1.msra.mxu0 0.0
        %1163 = vmatprep.subr.mxu0 0.0
        %1164 = vmatpush1.msra.mxu0 0.0
        %1165 = vmatprep.subr.mxu0 0.0
        %1166 = vmatpush1.msra.mxu0 0.0
        %1167 = vmatprep.subr.mxu0 0.0
        %1168 = vmatpush1.msra.mxu0 0.0
        %1169 = vmatprep.subr.mxu0 0.0
        %1170 = vmatpush1.msra.mxu0 0.0
        %1171 = vmatprep.subr.mxu0 0.0
        %1172 = vmatpush1.msra.mxu0 0.0
        %1173 = vmatprep.subr.mxu0 0.0
        %1174 = vmatpush1.msra.mxu0 0.0
        %1175 = vmatprep.subr.mxu0 0.0
        %1176 = vmatpush1.msra.mxu0 0.0
        %1177 = vmatprep.subr.mxu0 0.0
        %1178 = vmatpush1.msra.mxu0 0.0
        %1179 = vmatprep.subr.mxu0 0.0
        %1180 = vmatpush1.msra.mxu0 0.0
        %1181 = vmatprep.subr.mxu0 0.0
        %1182 = vmatpush1.msra.mxu0 0.0
        %1183 = vmatprep.subr.mxu0 0.0
        %1184 = vmatpush1.msra.mxu0 0.0
        %1185 = vmatprep.subr.mxu0 0.0
        %v1186 = vand.u32 %v523, 4294901760
        %v1187 = vsub.f32 %v523, %v1186
        %v1188 = vand.u32 %v1187, 4294901760
        %v1189 = vsub.f32 %v1187, %v1188
        %v1190 = vand.u32 %v1189, 4294901760
        %1191 = vmatpush1.msra.mxu0 %v1190
        %1192 = vmatprep.subr.mxu0 0.0
        %v1193 = vand.u32 %v522, 4294901760
        %v1194 = vsub.f32 %v522, %v1193
        %v1195 = vand.u32 %v1194, 4294901760
        %v1196 = vsub.f32 %v1194, %v1195
        %v1197 = vand.u32 %v1196, 4294901760
        %1198 = vmatpush1.msra.mxu0 %v1197
        %1199 = vmatprep.subr.mxu0 0.0
        %v1200 = vand.u32 %v521, 4294901760
        %v1201 = vsub.f32 %v521, %v1200
        %v1202 = vand.u32 %v1201, 4294901760
        %v1203 = vsub.f32 %v1201, %v1202
        %v1204 = vand.u32 %v1203, 4294901760
        %1205 = vmatpush1.msra.mxu0 %v1204
        %1206 = vmatprep.subr.mxu0 0.0
        %v1207 = vand.u32 %v520, 4294901760
        %v1208 = vsub.f32 %v520, %v1207
        %v1209 = vand.u32 %v1208, 4294901760
        %v1210 = vsub.f32 %v1208, %v1209
        %v1211 = vand.u32 %v1210, 4294901760
        %1212 = vmatpush1.msra.mxu0 %v1211
        %1213 = vmatprep.subr.mxu0 0.0
        %1214 = vmatpush2.msra.mxu0 0.0
        %1215 = vmatprep.subr.mxu0 0.0
        %1216 = vmatpush2.msra.mxu0 0.0
        %1217 = vmatprep.subr.mxu0 0.0
        %1218 = vmatpush2.msra.mxu0 0.0
        %1219 = vmatprep.subr.mxu0 0.0
        %1220 = vmatpush2.msra.mxu0 0.0
        %1221 = vmatprep.subr.mxu0 0.0
        %1222 = vmatpush2.msra.mxu0 0.0
        %1223 = vmatprep.subr.mxu0 0.0
        %1224 = vmatpush2.msra.mxu0 0.0
        %1225 = vmatprep.subr.mxu0 0.0
        %1226 = vmatpush2.msra.mxu0 0.0
        %1227 = vmatprep.subr.mxu0 0.0
        %1228 = vmatpush2.msra.mxu0 0.0
        %1229 = vmatprep.subr.mxu0 0.0
        %1230 = vmatpush2.msra.mxu0 0.0
        %1231 = vmatprep.subr.mxu0 0.0
        %1232 = vmatpush2.msra.mxu0 0.0
        %1233 = vmatprep.subr.mxu0 0.0
        %1234 = vmatpush2.msra.mxu0 0.0
        %1235 = vmatprep.subr.mxu0 0.0
        %1236 = vmatpush2.msra.mxu0 0.0
        %1237 = vmatprep.subr.mxu0 0.0
        %1238 = vmatpush2.msra.mxu0 0.0
        %1239 = vmatprep.subr.mxu0 0.0
        %1240 = vmatpush2.msra.mxu0 0.0
        %1241 = vmatprep.subr.mxu0 0.0
        %1242 = vmatpush2.msra.mxu0 0.0
        %1243 = vmatprep.subr.mxu0 0.0
        %1244 = vmatpush2.msra.mxu0 0.0
        %1245 = vmatprep.mubr.f32.mxu0 0.0
        %v1246 = vand.u32 %v1067, 4294901760
        %1247 = vmatmul.mubr.f32.gmra.mxu0 %v1246
        %v1248 = vpop.f32.mrf.mxu0
        %v1249 = vadd.f32 %v1148, %v1248
        %v1250 = vpop.f32.mrf.mxu0
        %1251 = vmatprep.mubr.f32.mxu0 0.0
        %v1252 = vand.u32 %v1070, 4294901760
        %1253 = vmatmul.mubr.f32.gmra.mxu0 %v1252
        %v1254 = vpop.f32.mrf.mxu0
        %v1255 = vadd.f32 %v1158, %v1254
        %v1256 = vpop.f32.mrf.mxu0
        %1257 = vdwg.mxu0
        %1258 = vmatprep.subr.mxu0 0.0
        %1259 = vmatpush1.msra.mxu0 0.0
        %1260 = vmatprep.subr.mxu0 0.0
        %1261 = vmatpush1.msra.mxu0 0.0
        %1262 = vmatprep.subr.mxu0 0.0
        %1263 = vmatpush1.msra.mxu0 0.0
        %1264 = vmatprep.subr.mxu0 0.0
        %1265 = vmatpush1.msra.mxu0 0.0
        %1266 = vmatprep.subr.mxu0 0.0
        %1267 = vmatpush1.msra.mxu0 0.0
        %1268 = vmatprep.subr.mxu0 0.0
        %1269 = vmatpush1.msra.mxu0 0.0
        %1270 = vmatprep.subr.mxu0 0.0
        %1271 = vmatpush1.msra.mxu0 0.0
        %1272 = vmatprep.subr.mxu0 0.0
        %1273 = vmatpush1.msra.mxu0 0.0
        %1274 = vmatprep.subr.mxu0 0.0
        %1275 = vmatpush1.msra.mxu0 0.0
        %1276 = vmatprep.subr.mxu0 0.0
        %1277 = vmatpush1.msra.mxu0 0.0
        %1278 = vmatprep.subr.mxu0 0.0
        %1279 = vmatpush1.msra.mxu0 0.0
        %1280 = vmatprep.subr.mxu0 0.0
        %1281 = vmatpush1.msra.mxu0 0.0
        %1282 = vmatprep.subr.mxu0 0.0
        %v1283 = vand.u32 %v523, 4294901760
        %v1284 = vsub.f32 %v523, %v1283
        %1285 = vmatpush1.msra.mxu0 %v1284
        %1286 = vmatprep.subr.mxu0 0.0
        %v1287 = vand.u32 %v522, 4294901760
        %v1288 = vsub.f32 %v522, %v1287
        %1289 = vmatpush1.msra.mxu0 %v1288
        %1290 = vmatprep.subr.mxu0 0.0
        %v1291 = vand.u32 %v521, 4294901760
        %v1292 = vsub.f32 %v521, %v1291
        %1293 = vmatpush1.msra.mxu0 %v1292
        %1294 = vmatprep.subr.mxu0 0.0
        %v1295 = vand.u32 %v520, 4294901760
        %v1296 = vsub.f32 %v520, %v1295
        %1297 = vmatpush1.msra.mxu0 %v1296
        %1298 = vmatprep.subr.mxu0 0.0
        %1299 = vmatpush2.msra.mxu0 0.0
        %1300 = vmatprep.subr.mxu0 0.0
        %1301 = vmatpush2.msra.mxu0 0.0
        %1302 = vmatprep.subr.mxu0 0.0
        %1303 = vmatpush2.msra.mxu0 0.0
        %1304 = vmatprep.subr.mxu0 0.0
        %1305 = vmatpush2.msra.mxu0 0.0
        %1306 = vmatprep.subr.mxu0 0.0
        %1307 = vmatpush2.msra.mxu0 0.0
        %1308 = vmatprep.subr.mxu0 0.0
        %1309 = vmatpush2.msra.mxu0 0.0
        %1310 = vmatprep.subr.mxu0 0.0
        %1311 = vmatpush2.msra.mxu0 0.0
        %1312 = vmatprep.subr.mxu0 0.0
        %1313 = vmatpush2.msra.mxu0 0.0
        %1314 = vmatprep.subr.mxu0 0.0
        %1315 = vmatpush2.msra.mxu0 0.0
        %1316 = vmatprep.subr.mxu0 0.0
        %1317 = vmatpush2.msra.mxu0 0.0
        %1318 = vmatprep.subr.mxu0 0.0
        %1319 = vmatpush2.msra.mxu0 0.0
        %1320 = vmatprep.subr.mxu0 0.0
        %1321 = vmatpush2.msra.mxu0 0.0
        %1322 = vmatprep.subr.mxu0 0.0
        %1323 = vmatpush2.msra.mxu0 0.0
        %1324 = vmatprep.subr.mxu0 0.0
        %1325 = vmatpush2.msra.mxu0 0.0
        %1326 = vmatprep.subr.mxu0 0.0
        %1327 = vmatpush2.msra.mxu0 0.0
        %1328 = vmatprep.subr.mxu0 0.0
        %1329 = vmatpush2.msra.mxu0 0.0
        %1330 = vmatprep.mubr.f32.mxu0 0.0
        %v1331 = vand.u32 %v1067, 4294901760
        %v1332 = vsub.f32 %v1067, %v1331
        %1333 = vmatmul.mubr.f32.gmra.mxu0 %v1332
        %v1334 = vpop.f32.mrf.mxu0
        %v1335 = vadd.f32 %v1249, %v1334
        %v1336 = vpop.f32.mrf.mxu0
        %1337 = vmatprep.mubr.f32.mxu0 0.0
        %v1338 = vand.u32 %v1070, 4294901760
        %v1339 = vsub.f32 %v1070, %v1338
        %1340 = vmatmul.mubr.f32.gmra.mxu0 %v1339
        %v1341 = vpop.f32.mrf.mxu0
        %v1342 = vadd.f32 %v1255, %v1341
        %v1343 = vpop.f32.mrf.mxu0
        %1344 = vdwg.mxu0
        %1345 = vmatprep.subr.mxu0 0.0
        %1346 = vmatpush1.msra.mxu0 0.0
        %1347 = vmatprep.subr.mxu0 0.0
        %1348 = vmatpush1.msra.mxu0 0.0
        %1349 = vmatprep.subr.mxu0 0.0
        %1350 = vmatpush1.msra.mxu0 0.0
        %1351 = vmatprep.subr.mxu0 0.0
        %1352 = vmatpush1.msra.mxu0 0.0
        %1353 = vmatprep.subr.mxu0 0.0
        %1354 = vmatpush1.msra.mxu0 0.0
        %1355 = vmatprep.subr.mxu0 0.0
        %1356 = vmatpush1.msra.mxu0 0.0
        %1357 = vmatprep.subr.mxu0 0.0
        %1358 = vmatpush1.msra.mxu0 0.0
        %1359 = vmatprep.subr.mxu0 0.0
        %1360 = vmatpush1.msra.mxu0 0.0
        %1361 = vmatprep.subr.mxu0 0.0
        %1362 = vmatpush1.msra.mxu0 0.0
        %1363 = vmatprep.subr.mxu0 0.0
        %1364 = vmatpush1.msra.mxu0 0.0
        %1365 = vmatprep.subr.mxu0 0.0
        %1366 = vmatpush1.msra.mxu0 0.0
        %1367 = vmatprep.subr.mxu0 0.0
        %1368 = vmatpush1.msra.mxu0 0.0
        %1369 = vmatprep.subr.mxu0 0.0
        %v1370 = vand.u32 %v523, 4294901760
        %1371 = vmatpush1.msra.mxu0 %v1370
        %1372 = vmatprep.subr.mxu0 0.0
        %v1373 = vand.u32 %v522, 4294901760
        %1374 = vmatpush1.msra.mxu0 %v1373
        %1375 = vmatprep.subr.mxu0 0.0
        %v1376 = vand.u32 %v521, 4294901760
        %1377 = vmatpush1.msra.mxu0 %v1376
        %1378 = vmatprep.subr.mxu0 0.0
        %v1379 = vand.u32 %v520, 4294901760
        %1380 = vmatpush1.msra.mxu0 %v1379
        %1381 = vmatprep.subr.mxu0 0.0
        %1382 = vmatpush2.msra.mxu0 0.0
        %1383 = vmatprep.subr.mxu0 0.0
        %1384 = vmatpush2.msra.mxu0 0.0
        %1385 = vmatprep.subr.mxu0 0.0
        %1386 = vmatpush2.msra.mxu0 0.0
        %1387 = vmatprep.subr.mxu0 0.0
        %1388 = vmatpush2.msra.mxu0 0.0
        %1389 = vmatprep.subr.mxu0 0.0
        %1390 = vmatpush2.msra.mxu0 0.0
        %1391 = vmatprep.subr.mxu0 0.0
        %1392 = vmatpush2.msra.mxu0 0.0
        %1393 = vmatprep.subr.mxu0 0.0
        %1394 = vmatpush2.msra.mxu0 0.0
        %1395 = vmatprep.subr.mxu0 0.0
        %1396 = vmatpush2.msra.mxu0 0.0
        %1397 = vmatprep.subr.mxu0 0.0
        %1398 = vmatpush2.msra.mxu0 0.0
        %1399 = vmatprep.subr.mxu0 0.0
        %1400 = vmatpush2.msra.mxu0 0.0
        %1401 = vmatprep.subr.mxu0 0.0
        %1402 = vmatpush2.msra.mxu0 0.0
        %1403 = vmatprep.subr.mxu0 0.0
        %1404 = vmatpush2.msra.mxu0 0.0
        %1405 = vmatprep.subr.mxu0 0.0
        %1406 = vmatpush2.msra.mxu0 0.0
        %1407 = vmatprep.subr.mxu0 0.0
        %1408 = vmatpush2.msra.mxu0 0.0
        %1409 = vmatprep.subr.mxu0 0.0
        %1410 = vmatpush2.msra.mxu0 0.0
        %1411 = vmatprep.subr.mxu0 0.0
        %1412 = vmatpush2.msra.mxu0 0.0
        %1413 = vmatprep.mubr.f32.mxu0 0.0
        %v1414 = vand.u32 %v1067, 4294901760
        %v1415 = vsub.f32 %v1067, %v1414
        %v1416 = vand.u32 %v1415, 4294901760
        %1417 = vmatmul.mubr.f32.gmra.mxu0 %v1416
        %v1418 = vpop.f32.mrf.mxu0
        %v1419 = vadd.f32 %v1335, %v1418
        %v1420 = vpop.f32.mrf.mxu0
        %1421 = vmatprep.mubr.f32.mxu0 0.0
        %v1422 = vand.u32 %v1070, 4294901760
        %v1423 = vsub.f32 %v1070, %v1422
        %v1424 = vand.u32 %v1423, 4294901760
        %1425 = vmatmul.mubr.f32.gmra.mxu0 %v1424
        %v1426 = vpop.f32.mrf.mxu0
        %v1427 = vadd.f32 %v1342, %v1426
        %v1428 = vpop.f32.mrf.mxu0
        %1429 = vdwg.mxu0
        %1430 = vmatprep.subr.mxu0 0.0
        %1431 = vmatpush1.msra.mxu0 0.0
        %1432 = vmatprep.subr.mxu0 0.0
        %1433 = vmatpush1.msra.mxu0 0.0
        %1434 = vmatprep.subr.mxu0 0.0
        %1435 = vmatpush1.msra.mxu0 0.0
        %1436 = vmatprep.subr.mxu0 0.0
        %1437 = vmatpush1.msra.mxu0 0.0
        %1438 = vmatprep.subr.mxu0 0.0
        %1439 = vmatpush1.msra.mxu0 0.0
        %1440 = vmatprep.subr.mxu0 0.0
        %1441 = vmatpush1.msra.mxu0 0.0
        %1442 = vmatprep.subr.mxu0 0.0
        %1443 = vmatpush1.msra.mxu0 0.0
        %1444 = vmatprep.subr.mxu0 0.0
        %1445 = vmatpush1.msra.mxu0 0.0
        %1446 = vmatprep.subr.mxu0 0.0
        %1447 = vmatpush1.msra.mxu0 0.0
        %1448 = vmatprep.subr.mxu0 0.0
        %1449 = vmatpush1.msra.mxu0 0.0
        %1450 = vmatprep.subr.mxu0 0.0
        %1451 = vmatpush1.msra.mxu0 0.0
        %1452 = vmatprep.subr.mxu0 0.0
        %1453 = vmatpush1.msra.mxu0 0.0
        %1454 = vmatprep.subr.mxu0 0.0
        %v1455 = vand.u32 %v523, 4294901760
        %v1456 = vsub.f32 %v523, %v1455
        %v1457 = vand.u32 %v1456, 4294901760
        %1458 = vmatpush1.msra.mxu0 %v1457
        %1459 = vmatprep.subr.mxu0 0.0
        %v1460 = vand.u32 %v522, 4294901760
        %v1461 = vsub.f32 %v522, %v1460
        %v1462 = vand.u32 %v1461, 4294901760
        %1463 = vmatpush1.msra.mxu0 %v1462
        %1464 = vmatprep.subr.mxu0 0.0
        %v1465 = vand.u32 %v521, 4294901760
        %v1466 = vsub.f32 %v521, %v1465
        %v1467 = vand.u32 %v1466, 4294901760
        %1468 = vmatpush1.msra.mxu0 %v1467
        %1469 = vmatprep.subr.mxu0 0.0
        %v1470 = vand.u32 %v520, 4294901760
        %v1471 = vsub.f32 %v520, %v1470
        %v1472 = vand.u32 %v1471, 4294901760
        %1473 = vmatpush1.msra.mxu0 %v1472
        %1474 = vmatprep.subr.mxu0 0.0
        %1475 = vmatpush2.msra.mxu0 0.0
        %1476 = vmatprep.subr.mxu0 0.0
        %1477 = vmatpush2.msra.mxu0 0.0
        %1478 = vmatprep.subr.mxu0 0.0
        %1479 = vmatpush2.msra.mxu0 0.0
        %1480 = vmatprep.subr.mxu0 0.0
        %1481 = vmatpush2.msra.mxu0 0.0
        %1482 = vmatprep.subr.mxu0 0.0
        %1483 = vmatpush2.msra.mxu0 0.0
        %1484 = vmatprep.subr.mxu0 0.0
        %1485 = vmatpush2.msra.mxu0 0.0
        %1486 = vmatprep.subr.mxu0 0.0
        %1487 = vmatpush2.msra.mxu0 0.0
        %1488 = vmatprep.subr.mxu0 0.0
        %1489 = vmatpush2.msra.mxu0 0.0
        %1490 = vmatprep.subr.mxu0 0.0
        %1491 = vmatpush2.msra.mxu0 0.0
        %1492 = vmatprep.subr.mxu0 0.0
        %1493 = vmatpush2.msra.mxu0 0.0
        %1494 = vmatprep.subr.mxu0 0.0
        %1495 = vmatpush2.msra.mxu0 0.0
        %1496 = vmatprep.subr.mxu0 0.0
        %1497 = vmatpush2.msra.mxu0 0.0
        %1498 = vmatprep.subr.mxu0 0.0
        %1499 = vmatpush2.msra.mxu0 0.0
        %1500 = vmatprep.subr.mxu0 0.0
        %1501 = vmatpush2.msra.mxu0 0.0
        %1502 = vmatprep.subr.mxu0 0.0
        %1503 = vmatpush2.msra.mxu0 0.0
        %1504 = vmatprep.subr.mxu0 0.0
        %1505 = vmatpush2.msra.mxu0 0.0
        %1506 = vmatprep.mubr.f32.mxu0 0.0
        %v1507 = vand.u32 %v1067, 4294901760
        %1508 = vmatmul.mubr.f32.gmra.mxu0 %v1507
        %v1509 = vpop.f32.mrf.mxu0
        %v1510 = vadd.f32 %v1419, %v1509
        %v1511 = vpop.f32.mrf.mxu0
        %1512 = vmatprep.mubr.f32.mxu0 0.0
        %v1513 = vand.u32 %v1070, 4294901760
        %1514 = vmatmul.mubr.f32.gmra.mxu0 %v1513
        %v1515 = vpop.f32.mrf.mxu0
        %v1516 = vadd.f32 %v1427, %v1515
        %v1517 = vpop.f32.mrf.mxu0
        %1518 = vdwg.mxu0
        %1519 = vmatprep.subr.mxu0 0.0
        %1520 = vmatpush1.msra.mxu0 0.0
        %1521 = vmatprep.subr.mxu0 0.0
        %1522 = vmatpush1.msra.mxu0 0.0
        %1523 = vmatprep.subr.mxu0 0.0
        %1524 = vmatpush1.msra.mxu0 0.0
        %1525 = vmatprep.subr.mxu0 0.0
        %1526 = vmatpush1.msra.mxu0 0.0
        %1527 = vmatprep.subr.mxu0 0.0
        %1528 = vmatpush1.msra.mxu0 0.0
        %1529 = vmatprep.subr.mxu0 0.0
        %1530 = vmatpush1.msra.mxu0 0.0
        %1531 = vmatprep.subr.mxu0 0.0
        %1532 = vmatpush1.msra.mxu0 0.0
        %1533 = vmatprep.subr.mxu0 0.0
        %1534 = vmatpush1.msra.mxu0 0.0
        %1535 = vmatprep.subr.mxu0 0.0
        %1536 = vmatpush1.msra.mxu0 0.0
        %1537 = vmatprep.subr.mxu0 0.0
        %1538 = vmatpush1.msra.mxu0 0.0
        %1539 = vmatprep.subr.mxu0 0.0
        %1540 = vmatpush1.msra.mxu0 0.0
        %1541 = vmatprep.subr.mxu0 0.0
        %1542 = vmatpush1.msra.mxu0 0.0
        %1543 = vmatprep.subr.mxu0 0.0
        %v1544 = vand.u32 %v523, 4294901760
        %1545 = vmatpush1.msra.mxu0 %v1544
        %1546 = vmatprep.subr.mxu0 0.0
        %v1547 = vand.u32 %v522, 4294901760
        %1548 = vmatpush1.msra.mxu0 %v1547
        %1549 = vmatprep.subr.mxu0 0.0
        %v1550 = vand.u32 %v521, 4294901760
        %1551 = vmatpush1.msra.mxu0 %v1550
        %1552 = vmatprep.subr.mxu0 0.0
        %v1553 = vand.u32 %v520, 4294901760
        %1554 = vmatpush1.msra.mxu0 %v1553
        %1555 = vmatprep.subr.mxu0 0.0
        %1556 = vmatpush2.msra.mxu0 0.0
        %1557 = vmatprep.subr.mxu0 0.0
        %1558 = vmatpush2.msra.mxu0 0.0
        %1559 = vmatprep.subr.mxu0 0.0
        %1560 = vmatpush2.msra.mxu0 0.0
        %1561 = vmatprep.subr.mxu0 0.0
        %1562 = vmatpush2.msra.mxu0 0.0
        %1563 = vmatprep.subr.mxu0 0.0
        %1564 = vmatpush2.msra.mxu0 0.0
        %1565 = vmatprep.subr.mxu0 0.0
        %1566 = vmatpush2.msra.mxu0 0.0
        %1567 = vmatprep.subr.mxu0 0.0
        %1568 = vmatpush2.msra.mxu0 0.0
        %1569 = vmatprep.subr.mxu0 0.0
        %1570 = vmatpush2.msra.mxu0 0.0
        %1571 = vmatprep.subr.mxu0 0.0
        %1572 = vmatpush2.msra.mxu0 0.0
        %1573 = vmatprep.subr.mxu0 0.0
        %1574 = vmatpush2.msra.mxu0 0.0
        %1575 = vmatprep.subr.mxu0 0.0
        %1576 = vmatpush2.msra.mxu0 0.0
        %1577 = vmatprep.subr.mxu0 0.0
        %1578 = vmatpush2.msra.mxu0 0.0
        %1579 = vmatprep.subr.mxu0 0.0
        %1580 = vmatpush2.msra.mxu0 0.0
        %1581 = vmatprep.subr.mxu0 0.0
        %1582 = vmatpush2.msra.mxu0 0.0
        %1583 = vmatprep.subr.mxu0 0.0
        %1584 = vmatpush2.msra.mxu0 0.0
        %1585 = vmatprep.subr.mxu0 0.0
        %1586 = vmatpush2.msra.mxu0 0.0
        %1587 = vmatprep.mubr.f32.mxu0 0.0
        %v1588 = vand.u32 %v1067, 4294901760
        %1589 = vmatmul.mubr.f32.gmra.mxu0 %v1588
        %v1590 = vpop.f32.mrf.mxu0
        %v1591 = vadd.f32 %v1510, %v1590
        %v1592 = vpop.f32.mrf.mxu0
        %1593 = vmatprep.mubr.f32.mxu0 0.0
        %v1594 = vand.u32 %v1070, 4294901760
        %1595 = vmatmul.mubr.f32.gmra.mxu0 %v1594
        %v1596 = vpop.f32.mrf.mxu0
        %v1597 = vadd.f32 %v1516, %v1596
        %v1598 = vpop.f32.mrf.mxu0
        %1599 = vdwg.mxu0
        %v1600 = vld [vmem:[#allocation2 + $0x2] sm:$0xff]
        %v1601 = vld [vmem:[#allocation2 + $0xa] sm:$0xff]
        %s1602 = scalar_lea.vmem %s1, 64
        %v1603 = vld [vmem:[%s1602] sm:$0xff]
        %v1604 = vld [vmem:[%s1602 + $0x8] sm:$0xff]
        %v1605 = vld [vmem:[%s1602 + $0x10] sm:$0xff]
        %v1606 = vld [vmem:[%s1602 + $0x18] sm:$0xff]
        %v1608 = vsel %vm531, %v1600, 0
        %v1611 = vsel %vm531, %v1601, 0
        %1613 = vmatprep.subr.mxu0 0.0
        %1614 = vmatpush1.msra.mxu0 0.0
        %1615 = vmatprep.subr.mxu0 0.0
        %1616 = vmatpush1.msra.mxu0 0.0
        %1617 = vmatprep.subr.mxu0 0.0
        %1618 = vmatpush1.msra.mxu0 0.0
        %1619 = vmatprep.subr.mxu0 0.0
        %1620 = vmatpush1.msra.mxu0 0.0
        %1621 = vmatprep.subr.mxu0 0.0
        %1622 = vmatpush1.msra.mxu0 0.0
        %1623 = vmatprep.subr.mxu0 0.0
        %1624 = vmatpush1.msra.mxu0 0.0
        %1625 = vmatprep.subr.mxu0 0.0
        %1626 = vmatpush1.msra.mxu0 0.0
        %1627 = vmatprep.subr.mxu0 0.0
        %1628 = vmatpush1.msra.mxu0 0.0
        %1629 = vmatprep.subr.mxu0 0.0
        %1630 = vmatpush1.msra.mxu0 0.0
        %1631 = vmatprep.subr.mxu0 0.0
        %1632 = vmatpush1.msra.mxu0 0.0
        %1633 = vmatprep.subr.mxu0 0.0
        %1634 = vmatpush1.msra.mxu0 0.0
        %1635 = vmatprep.subr.mxu0 0.0
        %1636 = vmatpush1.msra.mxu0 0.0
        %1637 = vmatprep.subr.mxu0 0.0
        %v1638 = vand.u32 %v1606, 4294901760
        %1639 = vmatpush1.msra.mxu0 %v1638
        %1640 = vmatprep.subr.mxu0 0.0
        %v1641 = vand.u32 %v1605, 4294901760
        %1642 = vmatpush1.msra.mxu0 %v1641
        %1643 = vmatprep.subr.mxu0 0.0
        %v1644 = vand.u32 %v1604, 4294901760
        %1645 = vmatpush1.msra.mxu0 %v1644
        %1646 = vmatprep.subr.mxu0 0.0
        %v1647 = vand.u32 %v1603, 4294901760
        %1648 = vmatpush1.msra.mxu0 %v1647
        %1649 = vmatprep.subr.mxu0 0.0
        %1650 = vmatpush2.msra.mxu0 0.0
        %1651 = vmatprep.subr.mxu0 0.0
        %1652 = vmatpush2.msra.mxu0 0.0
        %1653 = vmatprep.subr.mxu0 0.0
        %1654 = vmatpush2.msra.mxu0 0.0
        %1655 = vmatprep.subr.mxu0 0.0
        %1656 = vmatpush2.msra.mxu0 0.0
        %1657 = vmatprep.subr.mxu0 0.0
        %1658 = vmatpush2.msra.mxu0 0.0
        %1659 = vmatprep.subr.mxu0 0.0
        %1660 = vmatpush2.msra.mxu0 0.0
        %1661 = vmatprep.subr.mxu0 0.0
        %1662 = vmatpush2.msra.mxu0 0.0
        %1663 = vmatprep.subr.mxu0 0.0
        %1664 = vmatpush2.msra.mxu0 0.0
        %1665 = vmatprep.subr.mxu0 0.0
        %1666 = vmatpush2.msra.mxu0 0.0
        %1667 = vmatprep.subr.mxu0 0.0
        %1668 = vmatpush2.msra.mxu0 0.0
        %1669 = vmatprep.subr.mxu0 0.0
        %1670 = vmatpush2.msra.mxu0 0.0
        %1671 = vmatprep.subr.mxu0 0.0
        %1672 = vmatpush2.msra.mxu0 0.0
        %1673 = vmatprep.subr.mxu0 0.0
        %1674 = vmatpush2.msra.mxu0 0.0
        %1675 = vmatprep.subr.mxu0 0.0
        %1676 = vmatpush2.msra.mxu0 0.0
        %1677 = vmatprep.subr.mxu0 0.0
        %1678 = vmatpush2.msra.mxu0 0.0
        %1679 = vmatprep.subr.mxu0 0.0
        %1680 = vmatpush2.msra.mxu0 0.0
        %1681 = vmatprep.mubr.f32.mxu0 0.0
        %v1682 = vand.u32 %v1608, 4294901760
        %v1683 = vsub.f32 %v1608, %v1682
        %v1684 = vand.u32 %v1683, 4294901760
        %v1685 = vsub.f32 %v1683, %v1684
        %v1686 = vand.u32 %v1685, 4294901760
        %1687 = vmatmul.mubr.f32.gmra.mxu0 %v1686
        %v1688 = vpop.f32.mrf.mxu0
        %v1689 = vadd.f32 0.0, %v1688
        %v1690 = vpop.f32.mrf.mxu0
        %1691 = vmatprep.mubr.f32.mxu0 0.0
        %v1692 = vand.u32 %v1611, 4294901760
        %v1693 = vsub.f32 %v1611, %v1692
        %v1694 = vand.u32 %v1693, 4294901760
        %v1695 = vsub.f32 %v1693, %v1694
        %v1696 = vand.u32 %v1695, 4294901760
        %1697 = vmatmul.mubr.f32.gmra.mxu0 %v1696
        %v1698 = vpop.f32.mrf.mxu0
        %v1699 = vadd.f32 0.0, %v1698
        %v1700 = vpop.f32.mrf.mxu0
        %1701 = vdwg.mxu0
        %1702 = vmatprep.subr.mxu0 0.0
        %1703 = vmatpush1.msra.mxu0 0.0
        %1704 = vmatprep.subr.mxu0 0.0
        %1705 = vmatpush1.msra.mxu0 0.0
        %1706 = vmatprep.subr.mxu0 0.0
        %1707 = vmatpush1.msra.mxu0 0.0
        %1708 = vmatprep.subr.mxu0 0.0
        %1709 = vmatpush1.msra.mxu0 0.0
        %1710 = vmatprep.subr.mxu0 0.0
        %1711 = vmatpush1.msra.mxu0 0.0
        %1712 = vmatprep.subr.mxu0 0.0
        %1713 = vmatpush1.msra.mxu0 0.0
        %1714 = vmatprep.subr.mxu0 0.0
        %1715 = vmatpush1.msra.mxu0 0.0
        %1716 = vmatprep.subr.mxu0 0.0
        %1717 = vmatpush1.msra.mxu0 0.0
        %1718 = vmatprep.subr.mxu0 0.0
        %1719 = vmatpush1.msra.mxu0 0.0
        %1720 = vmatprep.subr.mxu0 0.0
        %1721 = vmatpush1.msra.mxu0 0.0
        %1722 = vmatprep.subr.mxu0 0.0
        %1723 = vmatpush1.msra.mxu0 0.0
        %1724 = vmatprep.subr.mxu0 0.0
        %1725 = vmatpush1.msra.mxu0 0.0
        %1726 = vmatprep.subr.mxu0 0.0
        %v1727 = vand.u32 %v1606, 4294901760
        %v1728 = vsub.f32 %v1606, %v1727
        %v1729 = vand.u32 %v1728, 4294901760
        %v1730 = vsub.f32 %v1728, %v1729
        %v1731 = vand.u32 %v1730, 4294901760
        %1732 = vmatpush1.msra.mxu0 %v1731
        %1733 = vmatprep.subr.mxu0 0.0
        %v1734 = vand.u32 %v1605, 4294901760
        %v1735 = vsub.f32 %v1605, %v1734
        %v1736 = vand.u32 %v1735, 4294901760
        %v1737 = vsub.f32 %v1735, %v1736
        %v1738 = vand.u32 %v1737, 4294901760
        %1739 = vmatpush1.msra.mxu0 %v1738
        %1740 = vmatprep.subr.mxu0 0.0
        %v1741 = vand.u32 %v1604, 4294901760
        %v1742 = vsub.f32 %v1604, %v1741
        %v1743 = vand.u32 %v1742, 4294901760
        %v1744 = vsub.f32 %v1742, %v1743
        %v1745 = vand.u32 %v1744, 4294901760
        %1746 = vmatpush1.msra.mxu0 %v1745
        %1747 = vmatprep.subr.mxu0 0.0
        %v1748 = vand.u32 %v1603, 4294901760
        %v1749 = vsub.f32 %v1603, %v1748
        %v1750 = vand.u32 %v1749, 4294901760
        %v1751 = vsub.f32 %v1749, %v1750
        %v1752 = vand.u32 %v1751, 4294901760
        %1753 = vmatpush1.msra.mxu0 %v1752
        %1754 = vmatprep.subr.mxu0 0.0
        %1755 = vmatpush2.msra.mxu0 0.0
        %1756 = vmatprep.subr.mxu0 0.0
        %1757 = vmatpush2.msra.mxu0 0.0
        %1758 = vmatprep.subr.mxu0 0.0
        %1759 = vmatpush2.msra.mxu0 0.0
        %1760 = vmatprep.subr.mxu0 0.0
        %1761 = vmatpush2.msra.mxu0 0.0
        %1762 = vmatprep.subr.mxu0 0.0
        %1763 = vmatpush2.msra.mxu0 0.0
        %1764 = vmatprep.subr.mxu0 0.0
        %1765 = vmatpush2.msra.mxu0 0.0
        %1766 = vmatprep.subr.mxu0 0.0
        %1767 = vmatpush2.msra.mxu0 0.0
        %1768 = vmatprep.subr.mxu0 0.0
        %1769 = vmatpush2.msra.mxu0 0.0
        %1770 = vmatprep.subr.mxu0 0.0
        %1771 = vmatpush2.msra.mxu0 0.0
        %1772 = vmatprep.subr.mxu0 0.0
        %1773 = vmatpush2.msra.mxu0 0.0
        %1774 = vmatprep.subr.mxu0 0.0
        %1775 = vmatpush2.msra.mxu0 0.0
        %1776 = vmatprep.subr.mxu0 0.0
        %1777 = vmatpush2.msra.mxu0 0.0
        %1778 = vmatprep.subr.mxu0 0.0
        %1779 = vmatpush2.msra.mxu0 0.0
        %1780 = vmatprep.subr.mxu0 0.0
        %1781 = vmatpush2.msra.mxu0 0.0
        %1782 = vmatprep.subr.mxu0 0.0
        %1783 = vmatpush2.msra.mxu0 0.0
        %1784 = vmatprep.subr.mxu0 0.0
        %1785 = vmatpush2.msra.mxu0 0.0
        %1786 = vmatprep.mubr.f32.mxu0 0.0
        %v1787 = vand.u32 %v1608, 4294901760
        %1788 = vmatmul.mubr.f32.gmra.mxu0 %v1787
        %v1789 = vpop.f32.mrf.mxu0
        %v1790 = vadd.f32 %v1689, %v1789
        %v1791 = vpop.f32.mrf.mxu0
        %1792 = vmatprep.mubr.f32.mxu0 0.0
        %v1793 = vand.u32 %v1611, 4294901760
        %1794 = vmatmul.mubr.f32.gmra.mxu0 %v1793
        %v1795 = vpop.f32.mrf.mxu0
        %v1796 = vadd.f32 %v1699, %v1795
        %v1797 = vpop.f32.mrf.mxu0
        %1798 = vdwg.mxu0
        %1799 = vmatprep.subr.mxu0 0.0
        %1800 = vmatpush1.msra.mxu0 0.0
        %1801 = vmatprep.subr.mxu0 0.0
        %1802 = vmatpush1.msra.mxu0 0.0
        %1803 = vmatprep.subr.mxu0 0.0
        %1804 = vmatpush1.msra.mxu0 0.0
        %1805 = vmatprep.subr.mxu0 0.0
        %1806 = vmatpush1.msra.mxu0 0.0
        %1807 = vmatprep.subr.mxu0 0.0
        %1808 = vmatpush1.msra.mxu0 0.0
        %1809 = vmatprep.subr.mxu0 0.0
        %1810 = vmatpush1.msra.mxu0 0.0
        %1811 = vmatprep.subr.mxu0 0.0
        %1812 = vmatpush1.msra.mxu0 0.0
        %1813 = vmatprep.subr.mxu0 0.0
        %1814 = vmatpush1.msra.mxu0 0.0
        %1815 = vmatprep.subr.mxu0 0.0
        %1816 = vmatpush1.msra.mxu0 0.0
        %1817 = vmatprep.subr.mxu0 0.0
        %1818 = vmatpush1.msra.mxu0 0.0
        %1819 = vmatprep.subr.mxu0 0.0
        %1820 = vmatpush1.msra.mxu0 0.0
        %1821 = vmatprep.subr.mxu0 0.0
        %1822 = vmatpush1.msra.mxu0 0.0
        %1823 = vmatprep.subr.mxu0 0.0
        %v1824 = vand.u32 %v1606, 4294901760
        %v1825 = vsub.f32 %v1606, %v1824
        %1826 = vmatpush1.msra.mxu0 %v1825
        %1827 = vmatprep.subr.mxu0 0.0
        %v1828 = vand.u32 %v1605, 4294901760
        %v1829 = vsub.f32 %v1605, %v1828
        %1830 = vmatpush1.msra.mxu0 %v1829
        %1831 = vmatprep.subr.mxu0 0.0
        %v1832 = vand.u32 %v1604, 4294901760
        %v1833 = vsub.f32 %v1604, %v1832
        %1834 = vmatpush1.msra.mxu0 %v1833
        %1835 = vmatprep.subr.mxu0 0.0
        %v1836 = vand.u32 %v1603, 4294901760
        %v1837 = vsub.f32 %v1603, %v1836
        %1838 = vmatpush1.msra.mxu0 %v1837
        %1839 = vmatprep.subr.mxu0 0.0
        %1840 = vmatpush2.msra.mxu0 0.0
        %1841 = vmatprep.subr.mxu0 0.0
        %1842 = vmatpush2.msra.mxu0 0.0
        %1843 = vmatprep.subr.mxu0 0.0
        %1844 = vmatpush2.msra.mxu0 0.0
        %1845 = vmatprep.subr.mxu0 0.0
        %1846 = vmatpush2.msra.mxu0 0.0
        %1847 = vmatprep.subr.mxu0 0.0
        %1848 = vmatpush2.msra.mxu0 0.0
        %1849 = vmatprep.subr.mxu0 0.0
        %1850 = vmatpush2.msra.mxu0 0.0
        %1851 = vmatprep.subr.mxu0 0.0
        %1852 = vmatpush2.msra.mxu0 0.0
        %1853 = vmatprep.subr.mxu0 0.0
        %1854 = vmatpush2.msra.mxu0 0.0
        %1855 = vmatprep.subr.mxu0 0.0
        %1856 = vmatpush2.msra.mxu0 0.0
        %1857 = vmatprep.subr.mxu0 0.0
        %1858 = vmatpush2.msra.mxu0 0.0
        %1859 = vmatprep.subr.mxu0 0.0
        %1860 = vmatpush2.msra.mxu0 0.0
        %1861 = vmatprep.subr.mxu0 0.0
        %1862 = vmatpush2.msra.mxu0 0.0
        %1863 = vmatprep.subr.mxu0 0.0
        %1864 = vmatpush2.msra.mxu0 0.0
        %1865 = vmatprep.subr.mxu0 0.0
        %1866 = vmatpush2.msra.mxu0 0.0
        %1867 = vmatprep.subr.mxu0 0.0
        %1868 = vmatpush2.msra.mxu0 0.0
        %1869 = vmatprep.subr.mxu0 0.0
        %1870 = vmatpush2.msra.mxu0 0.0
        %1871 = vmatprep.mubr.f32.mxu0 0.0
        %v1872 = vand.u32 %v1608, 4294901760
        %v1873 = vsub.f32 %v1608, %v1872
        %1874 = vmatmul.mubr.f32.gmra.mxu0 %v1873
        %v1875 = vpop.f32.mrf.mxu0
        %v1876 = vadd.f32 %v1790, %v1875
        %v1877 = vpop.f32.mrf.mxu0
        %1878 = vmatprep.mubr.f32.mxu0 0.0
        %v1879 = vand.u32 %v1611, 4294901760
        %v1880 = vsub.f32 %v1611, %v1879
        %1881 = vmatmul.mubr.f32.gmra.mxu0 %v1880
        %v1882 = vpop.f32.mrf.mxu0
        %v1883 = vadd.f32 %v1796, %v1882
        %v1884 = vpop.f32.mrf.mxu0
        %1885 = vdwg.mxu0
        %1886 = vmatprep.subr.mxu0 0.0
        %1887 = vmatpush1.msra.mxu0 0.0
        %1888 = vmatprep.subr.mxu0 0.0
        %1889 = vmatpush1.msra.mxu0 0.0
        %1890 = vmatprep.subr.mxu0 0.0
        %1891 = vmatpush1.msra.mxu0 0.0
        %1892 = vmatprep.subr.mxu0 0.0
        %1893 = vmatpush1.msra.mxu0 0.0
        %1894 = vmatprep.subr.mxu0 0.0
        %1895 = vmatpush1.msra.mxu0 0.0
        %1896 = vmatprep.subr.mxu0 0.0
        %1897 = vmatpush1.msra.mxu0 0.0
        %1898 = vmatprep.subr.mxu0 0.0
        %1899 = vmatpush1.msra.mxu0 0.0
        %1900 = vmatprep.subr.mxu0 0.0
        %1901 = vmatpush1.msra.mxu0 0.0
        %1902 = vmatprep.subr.mxu0 0.0
        %1903 = vmatpush1.msra.mxu0 0.0
        %1904 = vmatprep.subr.mxu0 0.0
        %1905 = vmatpush1.msra.mxu0 0.0
        %1906 = vmatprep.subr.mxu0 0.0
        %1907 = vmatpush1.msra.mxu0 0.0
        %1908 = vmatprep.subr.mxu0 0.0
        %1909 = vmatpush1.msra.mxu0 0.0
        %1910 = vmatprep.subr.mxu0 0.0
        %v1911 = vand.u32 %v1606, 4294901760
        %1912 = vmatpush1.msra.mxu0 %v1911
        %1913 = vmatprep.subr.mxu0 0.0
        %v1914 = vand.u32 %v1605, 4294901760
        %1915 = vmatpush1.msra.mxu0 %v1914
        %1916 = vmatprep.subr.mxu0 0.0
        %v1917 = vand.u32 %v1604, 4294901760
        %1918 = vmatpush1.msra.mxu0 %v1917
        %1919 = vmatprep.subr.mxu0 0.0
        %v1920 = vand.u32 %v1603, 4294901760
        %1921 = vmatpush1.msra.mxu0 %v1920
        %1922 = vmatprep.subr.mxu0 0.0
        %1923 = vmatpush2.msra.mxu0 0.0
        %1924 = vmatprep.subr.mxu0 0.0
        %1925 = vmatpush2.msra.mxu0 0.0
        %1926 = vmatprep.subr.mxu0 0.0
        %1927 = vmatpush2.msra.mxu0 0.0
        %1928 = vmatprep.subr.mxu0 0.0
        %1929 = vmatpush2.msra.mxu0 0.0
        %1930 = vmatprep.subr.mxu0 0.0
        %1931 = vmatpush2.msra.mxu0 0.0
        %1932 = vmatprep.subr.mxu0 0.0
        %1933 = vmatpush2.msra.mxu0 0.0
        %1934 = vmatprep.subr.mxu0 0.0
        %1935 = vmatpush2.msra.mxu0 0.0
        %1936 = vmatprep.subr.mxu0 0.0
        %1937 = vmatpush2.msra.mxu0 0.0
        %1938 = vmatprep.subr.mxu0 0.0
        %1939 = vmatpush2.msra.mxu0 0.0
        %1940 = vmatprep.subr.mxu0 0.0
        %1941 = vmatpush2.msra.mxu0 0.0
        %1942 = vmatprep.subr.mxu0 0.0
        %1943 = vmatpush2.msra.mxu0 0.0
        %1944 = vmatprep.subr.mxu0 0.0
        %1945 = vmatpush2.msra.mxu0 0.0
        %1946 = vmatprep.subr.mxu0 0.0
        %1947 = vmatpush2.msra.mxu0 0.0
        %1948 = vmatprep.subr.mxu0 0.0
        %1949 = vmatpush2.msra.mxu0 0.0
        %1950 = vmatprep.subr.mxu0 0.0
        %1951 = vmatpush2.msra.mxu0 0.0
        %1952 = vmatprep.subr.mxu0 0.0
        %1953 = vmatpush2.msra.mxu0 0.0
        %1954 = vmatprep.mubr.f32.mxu0 0.0
        %v1955 = vand.u32 %v1608, 4294901760
        %v1956 = vsub.f32 %v1608, %v1955
        %v1957 = vand.u32 %v1956, 4294901760
        %1958 = vmatmul.mubr.f32.gmra.mxu0 %v1957
        %v1959 = vpop.f32.mrf.mxu0
        %v1960 = vadd.f32 %v1876, %v1959
        %v1961 = vpop.f32.mrf.mxu0
        %1962 = vmatprep.mubr.f32.mxu0 0.0
        %v1963 = vand.u32 %v1611, 4294901760
        %v1964 = vsub.f32 %v1611, %v1963
        %v1965 = vand.u32 %v1964, 4294901760
        %1966 = vmatmul.mubr.f32.gmra.mxu0 %v1965
        %v1967 = vpop.f32.mrf.mxu0
        %v1968 = vadd.f32 %v1883, %v1967
        %v1969 = vpop.f32.mrf.mxu0
        %1970 = vdwg.mxu0
        %1971 = vmatprep.subr.mxu0 0.0
        %1972 = vmatpush1.msra.mxu0 0.0
        %1973 = vmatprep.subr.mxu0 0.0
        %1974 = vmatpush1.msra.mxu0 0.0
        %1975 = vmatprep.subr.mxu0 0.0
        %1976 = vmatpush1.msra.mxu0 0.0
        %1977 = vmatprep.subr.mxu0 0.0
        %1978 = vmatpush1.msra.mxu0 0.0
        %1979 = vmatprep.subr.mxu0 0.0
        %1980 = vmatpush1.msra.mxu0 0.0
        %1981 = vmatprep.subr.mxu0 0.0
        %1982 = vmatpush1.msra.mxu0 0.0
        %1983 = vmatprep.subr.mxu0 0.0
        %1984 = vmatpush1.msra.mxu0 0.0
        %1985 = vmatprep.subr.mxu0 0.0
        %1986 = vmatpush1.msra.mxu0 0.0
        %1987 = vmatprep.subr.mxu0 0.0
        %1988 = vmatpush1.msra.mxu0 0.0
        %1989 = vmatprep.subr.mxu0 0.0
        %1990 = vmatpush1.msra.mxu0 0.0
        %1991 = vmatprep.subr.mxu0 0.0
        %1992 = vmatpush1.msra.mxu0 0.0
        %1993 = vmatprep.subr.mxu0 0.0
        %1994 = vmatpush1.msra.mxu0 0.0
        %1995 = vmatprep.subr.mxu0 0.0
        %v1996 = vand.u32 %v1606, 4294901760
        %v1997 = vsub.f32 %v1606, %v1996
        %v1998 = vand.u32 %v1997, 4294901760
        %1999 = vmatpush1.msra.mxu0 %v1998
        %2000 = vmatprep.subr.mxu0 0.0
        %v2001 = vand.u32 %v1605, 4294901760
        %v2002 = vsub.f32 %v1605, %v2001
        %v2003 = vand.u32 %v2002, 4294901760
        %2004 = vmatpush1.msra.mxu0 %v2003
        %2005 = vmatprep.subr.mxu0 0.0
        %v2006 = vand.u32 %v1604, 4294901760
        %v2007 = vsub.f32 %v1604, %v2006
        %v2008 = vand.u32 %v2007, 4294901760
        %2009 = vmatpush1.msra.mxu0 %v2008
        %2010 = vmatprep.subr.mxu0 0.0
        %v2011 = vand.u32 %v1603, 4294901760
        %v2012 = vsub.f32 %v1603, %v2011
        %v2013 = vand.u32 %v2012, 4294901760
        %2014 = vmatpush1.msra.mxu0 %v2013
        %2015 = vmatprep.subr.mxu0 0.0
        %2016 = vmatpush2.msra.mxu0 0.0
        %2017 = vmatprep.subr.mxu0 0.0
        %2018 = vmatpush2.msra.mxu0 0.0
        %2019 = vmatprep.subr.mxu0 0.0
        %2020 = vmatpush2.msra.mxu0 0.0
        %2021 = vmatprep.subr.mxu0 0.0
        %2022 = vmatpush2.msra.mxu0 0.0
        %2023 = vmatprep.subr.mxu0 0.0
        %2024 = vmatpush2.msra.mxu0 0.0
        %2025 = vmatprep.subr.mxu0 0.0
        %2026 = vmatpush2.msra.mxu0 0.0
        %2027 = vmatprep.subr.mxu0 0.0
        %2028 = vmatpush2.msra.mxu0 0.0
        %2029 = vmatprep.subr.mxu0 0.0
        %2030 = vmatpush2.msra.mxu0 0.0
        %2031 = vmatprep.subr.mxu0 0.0
        %2032 = vmatpush2.msra.mxu0 0.0
        %2033 = vmatprep.subr.mxu0 0.0
        %2034 = vmatpush2.msra.mxu0 0.0
        %2035 = vmatprep.subr.mxu0 0.0
        %2036 = vmatpush2.msra.mxu0 0.0
        %2037 = vmatprep.subr.mxu0 0.0
        %2038 = vmatpush2.msra.mxu0 0.0
        %2039 = vmatprep.subr.mxu0 0.0
        %2040 = vmatpush2.msra.mxu0 0.0
        %2041 = vmatprep.subr.mxu0 0.0
        %2042 = vmatpush2.msra.mxu0 0.0
        %2043 = vmatprep.subr.mxu0 0.0
        %2044 = vmatpush2.msra.mxu0 0.0
        %2045 = vmatprep.subr.mxu0 0.0
        %2046 = vmatpush2.msra.mxu0 0.0
        %2047 = vmatprep.mubr.f32.mxu0 0.0
        %v2048 = vand.u32 %v1608, 4294901760
        %2049 = vmatmul.mubr.f32.gmra.mxu0 %v2048
        %v2050 = vpop.f32.mrf.mxu0
        %v2051 = vadd.f32 %v1960, %v2050
        %v2052 = vpop.f32.mrf.mxu0
        %2053 = vmatprep.mubr.f32.mxu0 0.0
        %v2054 = vand.u32 %v1611, 4294901760
        %2055 = vmatmul.mubr.f32.gmra.mxu0 %v2054
        %v2056 = vpop.f32.mrf.mxu0
        %v2057 = vadd.f32 %v1968, %v2056
        %v2058 = vpop.f32.mrf.mxu0
        %2059 = vdwg.mxu0
        %2060 = vmatprep.subr.mxu0 0.0
        %2061 = vmatpush1.msra.mxu0 0.0
        %2062 = vmatprep.subr.mxu0 0.0
        %2063 = vmatpush1.msra.mxu0 0.0
        %2064 = vmatprep.subr.mxu0 0.0
        %2065 = vmatpush1.msra.mxu0 0.0
        %2066 = vmatprep.subr.mxu0 0.0
        %2067 = vmatpush1.msra.mxu0 0.0
        %2068 = vmatprep.subr.mxu0 0.0
        %2069 = vmatpush1.msra.mxu0 0.0
        %2070 = vmatprep.subr.mxu0 0.0
        %2071 = vmatpush1.msra.mxu0 0.0
        %2072 = vmatprep.subr.mxu0 0.0
        %2073 = vmatpush1.msra.mxu0 0.0
        %2074 = vmatprep.subr.mxu0 0.0
        %2075 = vmatpush1.msra.mxu0 0.0
        %2076 = vmatprep.subr.mxu0 0.0
        %2077 = vmatpush1.msra.mxu0 0.0
        %2078 = vmatprep.subr.mxu0 0.0
        %2079 = vmatpush1.msra.mxu0 0.0
        %2080 = vmatprep.subr.mxu0 0.0
        %2081 = vmatpush1.msra.mxu0 0.0
        %2082 = vmatprep.subr.mxu0 0.0
        %2083 = vmatpush1.msra.mxu0 0.0
        %2084 = vmatprep.subr.mxu0 0.0
        %v2085 = vand.u32 %v1606, 4294901760
        %2086 = vmatpush1.msra.mxu0 %v2085
        %2087 = vmatprep.subr.mxu0 0.0
        %v2088 = vand.u32 %v1605, 4294901760
        %2089 = vmatpush1.msra.mxu0 %v2088
        %2090 = vmatprep.subr.mxu0 0.0
        %v2091 = vand.u32 %v1604, 4294901760
        %2092 = vmatpush1.msra.mxu0 %v2091
        %2093 = vmatprep.subr.mxu0 0.0
        %v2094 = vand.u32 %v1603, 4294901760
        %2095 = vmatpush1.msra.mxu0 %v2094
        %2096 = vmatprep.subr.mxu0 0.0
        %2097 = vmatpush2.msra.mxu0 0.0
        %2098 = vmatprep.subr.mxu0 0.0
        %2099 = vmatpush2.msra.mxu0 0.0
        %2100 = vmatprep.subr.mxu0 0.0
        %2101 = vmatpush2.msra.mxu0 0.0
        %2102 = vmatprep.subr.mxu0 0.0
        %2103 = vmatpush2.msra.mxu0 0.0
        %2104 = vmatprep.subr.mxu0 0.0
        %2105 = vmatpush2.msra.mxu0 0.0
        %2106 = vmatprep.subr.mxu0 0.0
        %2107 = vmatpush2.msra.mxu0 0.0
        %2108 = vmatprep.subr.mxu0 0.0
        %2109 = vmatpush2.msra.mxu0 0.0
        %2110 = vmatprep.subr.mxu0 0.0
        %2111 = vmatpush2.msra.mxu0 0.0
        %2112 = vmatprep.subr.mxu0 0.0
        %2113 = vmatpush2.msra.mxu0 0.0
        %2114 = vmatprep.subr.mxu0 0.0
        %2115 = vmatpush2.msra.mxu0 0.0
        %2116 = vmatprep.subr.mxu0 0.0
        %2117 = vmatpush2.msra.mxu0 0.0
        %2118 = vmatprep.subr.mxu0 0.0
        %2119 = vmatpush2.msra.mxu0 0.0
        %2120 = vmatprep.subr.mxu0 0.0
        %2121 = vmatpush2.msra.mxu0 0.0
        %2122 = vmatprep.subr.mxu0 0.0
        %2123 = vmatpush2.msra.mxu0 0.0
        %2124 = vmatprep.subr.mxu0 0.0
        %2125 = vmatpush2.msra.mxu0 0.0
        %2126 = vmatprep.subr.mxu0 0.0
        %2127 = vmatpush2.msra.mxu0 0.0
        %2128 = vmatprep.mubr.f32.mxu0 0.0
        %v2129 = vand.u32 %v1608, 4294901760
        %2130 = vmatmul.mubr.f32.gmra.mxu0 %v2129
        %v2131 = vpop.f32.mrf.mxu0
        %v2132 = vadd.f32 %v2051, %v2131
        %v2133 = vpop.f32.mrf.mxu0
        %2134 = vmatprep.mubr.f32.mxu0 0.0
        %v2135 = vand.u32 %v1611, 4294901760
        %2136 = vmatmul.mubr.f32.gmra.mxu0 %v2135
        %v2137 = vpop.f32.mrf.mxu0
        %v2138 = vadd.f32 %v2057, %v2137
        %v2139 = vpop.f32.mrf.mxu0
        %2140 = vdwg.mxu0
        %v2141 = vadd.f32 %v1591, %v2132
        %v2142 = vadd.f32 %v1597, %v2138
        %v2143 = vld [vmem:[#allocation2 + $0x3] sm:$0xff]
        %v2144 = vld [vmem:[#allocation2 + $0xb] sm:$0xff]
        %s2145 = scalar_lea.vmem %s1, 96
        %v2146 = vld [vmem:[%s2145] sm:$0xff]
        %v2147 = vld [vmem:[%s2145 + $0x8] sm:$0xff]
        %v2148 = vld [vmem:[%s2145 + $0x10] sm:$0xff]
        %v2149 = vld [vmem:[%s2145 + $0x18] sm:$0xff]
        %v2151 = vsel %vm531, %v2143, 0
        %v2154 = vsel %vm531, %v2144, 0
        %2156 = vmatprep.subr.mxu0 0.0
        %2157 = vmatpush1.msra.mxu0 0.0
        %2158 = vmatprep.subr.mxu0 0.0
        %2159 = vmatpush1.msra.mxu0 0.0
        %2160 = vmatprep.subr.mxu0 0.0
        %2161 = vmatpush1.msra.mxu0 0.0
        %2162 = vmatprep.subr.mxu0 0.0
        %2163 = vmatpush1.msra.mxu0 0.0
        %2164 = vmatprep.subr.mxu0 0.0
        %2165 = vmatpush1.msra.mxu0 0.0
        %2166 = vmatprep.subr.mxu0 0.0
        %2167 = vmatpush1.msra.mxu0 0.0
        %2168 = vmatprep.subr.mxu0 0.0
        %2169 = vmatpush1.msra.mxu0 0.0
        %2170 = vmatprep.subr.mxu0 0.0
        %2171 = vmatpush1.msra.mxu0 0.0
        %2172 = vmatprep.subr.mxu0 0.0
        %2173 = vmatpush1.msra.mxu0 0.0
        %2174 = vmatprep.subr.mxu0 0.0
        %2175 = vmatpush1.msra.mxu0 0.0
        %2176 = vmatprep.subr.mxu0 0.0
        %2177 = vmatpush1.msra.mxu0 0.0
        %2178 = vmatprep.subr.mxu0 0.0
        %2179 = vmatpush1.msra.mxu0 0.0
        %2180 = vmatprep.subr.mxu0 0.0
        %v2181 = vand.u32 %v2149, 4294901760
        %2182 = vmatpush1.msra.mxu0 %v2181
        %2183 = vmatprep.subr.mxu0 0.0
        %v2184 = vand.u32 %v2148, 4294901760
        %2185 = vmatpush1.msra.mxu0 %v2184
        %2186 = vmatprep.subr.mxu0 0.0
        %v2187 = vand.u32 %v2147, 4294901760
        %2188 = vmatpush1.msra.mxu0 %v2187
        %2189 = vmatprep.subr.mxu0 0.0
        %v2190 = vand.u32 %v2146, 4294901760
        %2191 = vmatpush1.msra.mxu0 %v2190
        %2192 = vmatprep.subr.mxu0 0.0
        %2193 = vmatpush2.msra.mxu0 0.0
        %2194 = vmatprep.subr.mxu0 0.0
        %2195 = vmatpush2.msra.mxu0 0.0
        %2196 = vmatprep.subr.mxu0 0.0
        %2197 = vmatpush2.msra.mxu0 0.0
        %2198 = vmatprep.subr.mxu0 0.0
        %2199 = vmatpush2.msra.mxu0 0.0
        %2200 = vmatprep.subr.mxu0 0.0
        %2201 = vmatpush2.msra.mxu0 0.0
        %2202 = vmatprep.subr.mxu0 0.0
        %2203 = vmatpush2.msra.mxu0 0.0
        %2204 = vmatprep.subr.mxu0 0.0
        %2205 = vmatpush2.msra.mxu0 0.0
        %2206 = vmatprep.subr.mxu0 0.0
        %2207 = vmatpush2.msra.mxu0 0.0
        %2208 = vmatprep.subr.mxu0 0.0
        %2209 = vmatpush2.msra.mxu0 0.0
        %2210 = vmatprep.subr.mxu0 0.0
        %2211 = vmatpush2.msra.mxu0 0.0
        %2212 = vmatprep.subr.mxu0 0.0
        %2213 = vmatpush2.msra.mxu0 0.0
        %2214 = vmatprep.subr.mxu0 0.0
        %2215 = vmatpush2.msra.mxu0 0.0
        %2216 = vmatprep.subr.mxu0 0.0
        %2217 = vmatpush2.msra.mxu0 0.0
        %2218 = vmatprep.subr.mxu0 0.0
        %2219 = vmatpush2.msra.mxu0 0.0
        %2220 = vmatprep.subr.mxu0 0.0
        %2221 = vmatpush2.msra.mxu0 0.0
        %2222 = vmatprep.subr.mxu0 0.0
        %2223 = vmatpush2.msra.mxu0 0.0
        %2224 = vmatprep.mubr.f32.mxu0 0.0
        %v2225 = vand.u32 %v2151, 4294901760
        %v2226 = vsub.f32 %v2151, %v2225
        %v2227 = vand.u32 %v2226, 4294901760
        %v2228 = vsub.f32 %v2226, %v2227
        %v2229 = vand.u32 %v2228, 4294901760
        %2230 = vmatmul.mubr.f32.gmra.mxu0 %v2229
        %v2231 = vpop.f32.mrf.mxu0
        %v2232 = vadd.f32 0.0, %v2231
        %v2233 = vpop.f32.mrf.mxu0
        %2234 = vmatprep.mubr.f32.mxu0 0.0
        %v2235 = vand.u32 %v2154, 4294901760
        %v2236 = vsub.f32 %v2154, %v2235
        %v2237 = vand.u32 %v2236, 4294901760
        %v2238 = vsub.f32 %v2236, %v2237
        %v2239 = vand.u32 %v2238, 4294901760
        %2240 = vmatmul.mubr.f32.gmra.mxu0 %v2239
        %v2241 = vpop.f32.mrf.mxu0
        %v2242 = vadd.f32 0.0, %v2241
        %v2243 = vpop.f32.mrf.mxu0
        %2244 = vdwg.mxu0
        %2245 = vmatprep.subr.mxu0 0.0
        %2246 = vmatpush1.msra.mxu0 0.0
        %2247 = vmatprep.subr.mxu0 0.0
        %2248 = vmatpush1.msra.mxu0 0.0
        %2249 = vmatprep.subr.mxu0 0.0
        %2250 = vmatpush1.msra.mxu0 0.0
        %2251 = vmatprep.subr.mxu0 0.0
        %2252 = vmatpush1.msra.mxu0 0.0
        %2253 = vmatprep.subr.mxu0 0.0
        %2254 = vmatpush1.msra.mxu0 0.0
        %2255 = vmatprep.subr.mxu0 0.0
        %2256 = vmatpush1.msra.mxu0 0.0
        %2257 = vmatprep.subr.mxu0 0.0
        %2258 = vmatpush1.msra.mxu0 0.0
        %2259 = vmatprep.subr.mxu0 0.0
        %2260 = vmatpush1.msra.mxu0 0.0
        %2261 = vmatprep.subr.mxu0 0.0
        %2262 = vmatpush1.msra.mxu0 0.0
        %2263 = vmatprep.subr.mxu0 0.0
        %2264 = vmatpush1.msra.mxu0 0.0
        %2265 = vmatprep.subr.mxu0 0.0
        %2266 = vmatpush1.msra.mxu0 0.0
        %2267 = vmatprep.subr.mxu0 0.0
        %2268 = vmatpush1.msra.mxu0 0.0
        %2269 = vmatprep.subr.mxu0 0.0
        %v2270 = vand.u32 %v2149, 4294901760
        %v2271 = vsub.f32 %v2149, %v2270
        %v2272 = vand.u32 %v2271, 4294901760
        %v2273 = vsub.f32 %v2271, %v2272
        %v2274 = vand.u32 %v2273, 4294901760
        %2275 = vmatpush1.msra.mxu0 %v2274
        %2276 = vmatprep.subr.mxu0 0.0
        %v2277 = vand.u32 %v2148, 4294901760
        %v2278 = vsub.f32 %v2148, %v2277
        %v2279 = vand.u32 %v2278, 4294901760
        %v2280 = vsub.f32 %v2278, %v2279
        %v2281 = vand.u32 %v2280, 4294901760
        %2282 = vmatpush1.msra.mxu0 %v2281
        %2283 = vmatprep.subr.mxu0 0.0
        %v2284 = vand.u32 %v2147, 4294901760
        %v2285 = vsub.f32 %v2147, %v2284
        %v2286 = vand.u32 %v2285, 4294901760
        %v2287 = vsub.f32 %v2285, %v2286
        %v2288 = vand.u32 %v2287, 4294901760
        %2289 = vmatpush1.msra.mxu0 %v2288
        %2290 = vmatprep.subr.mxu0 0.0
        %v2291 = vand.u32 %v2146, 4294901760
        %v2292 = vsub.f32 %v2146, %v2291
        %v2293 = vand.u32 %v2292, 4294901760
        %v2294 = vsub.f32 %v2292, %v2293
        %v2295 = vand.u32 %v2294, 4294901760
        %2296 = vmatpush1.msra.mxu0 %v2295
        %2297 = vmatprep.subr.mxu0 0.0
        %2298 = vmatpush2.msra.mxu0 0.0
        %2299 = vmatprep.subr.mxu0 0.0
        %2300 = vmatpush2.msra.mxu0 0.0
        %2301 = vmatprep.subr.mxu0 0.0
        %2302 = vmatpush2.msra.mxu0 0.0
        %2303 = vmatprep.subr.mxu0 0.0
        %2304 = vmatpush2.msra.mxu0 0.0
        %2305 = vmatprep.subr.mxu0 0.0
        %2306 = vmatpush2.msra.mxu0 0.0
        %2307 = vmatprep.subr.mxu0 0.0
        %2308 = vmatpush2.msra.mxu0 0.0
        %2309 = vmatprep.subr.mxu0 0.0
        %2310 = vmatpush2.msra.mxu0 0.0
        %2311 = vmatprep.subr.mxu0 0.0
        %2312 = vmatpush2.msra.mxu0 0.0
        %2313 = vmatprep.subr.mxu0 0.0
        %2314 = vmatpush2.msra.mxu0 0.0
        %2315 = vmatprep.subr.mxu0 0.0
        %2316 = vmatpush2.msra.mxu0 0.0
        %2317 = vmatprep.subr.mxu0 0.0
        %2318 = vmatpush2.msra.mxu0 0.0
        %2319 = vmatprep.subr.mxu0 0.0
        %2320 = vmatpush2.msra.mxu0 0.0
        %2321 = vmatprep.subr.mxu0 0.0
        %2322 = vmatpush2.msra.mxu0 0.0
        %2323 = vmatprep.subr.mxu0 0.0
        %2324 = vmatpush2.msra.mxu0 0.0
        %2325 = vmatprep.subr.mxu0 0.0
        %2326 = vmatpush2.msra.mxu0 0.0
        %2327 = vmatprep.subr.mxu0 0.0
        %2328 = vmatpush2.msra.mxu0 0.0
        %2329 = vmatprep.mubr.f32.mxu0 0.0
        %v2330 = vand.u32 %v2151, 4294901760
        %2331 = vmatmul.mubr.f32.gmra.mxu0 %v2330
        %v2332 = vpop.f32.mrf.mxu0
        %v2333 = vadd.f32 %v2232, %v2332
        %v2334 = vpop.f32.mrf.mxu0
        %2335 = vmatprep.mubr.f32.mxu0 0.0
        %v2336 = vand.u32 %v2154, 4294901760
        %2337 = vmatmul.mubr.f32.gmra.mxu0 %v2336
        %v2338 = vpop.f32.mrf.mxu0
        %v2339 = vadd.f32 %v2242, %v2338
        %v2340 = vpop.f32.mrf.mxu0
        %2341 = vdwg.mxu0
        %2342 = vmatprep.subr.mxu0 0.0
        %2343 = vmatpush1.msra.mxu0 0.0
        %2344 = vmatprep.subr.mxu0 0.0
        %2345 = vmatpush1.msra.mxu0 0.0
        %2346 = vmatprep.subr.mxu0 0.0
        %2347 = vmatpush1.msra.mxu0 0.0
        %2348 = vmatprep.subr.mxu0 0.0
        %2349 = vmatpush1.msra.mxu0 0.0
        %2350 = vmatprep.subr.mxu0 0.0
        %2351 = vmatpush1.msra.mxu0 0.0
        %2352 = vmatprep.subr.mxu0 0.0
        %2353 = vmatpush1.msra.mxu0 0.0
        %2354 = vmatprep.subr.mxu0 0.0
        %2355 = vmatpush1.msra.mxu0 0.0
        %2356 = vmatprep.subr.mxu0 0.0
        %2357 = vmatpush1.msra.mxu0 0.0
        %2358 = vmatprep.subr.mxu0 0.0
        %2359 = vmatpush1.msra.mxu0 0.0
        %2360 = vmatprep.subr.mxu0 0.0
        %2361 = vmatpush1.msra.mxu0 0.0
        %2362 = vmatprep.subr.mxu0 0.0
        %2363 = vmatpush1.msra.mxu0 0.0
        %2364 = vmatprep.subr.mxu0 0.0
        %2365 = vmatpush1.msra.mxu0 0.0
        %2366 = vmatprep.subr.mxu0 0.0
        %v2367 = vand.u32 %v2149, 4294901760
        %v2368 = vsub.f32 %v2149, %v2367
        %2369 = vmatpush1.msra.mxu0 %v2368
        %2370 = vmatprep.subr.mxu0 0.0
        %v2371 = vand.u32 %v2148, 4294901760
        %v2372 = vsub.f32 %v2148, %v2371
        %2373 = vmatpush1.msra.mxu0 %v2372
        %2374 = vmatprep.subr.mxu0 0.0
        %v2375 = vand.u32 %v2147, 4294901760
        %v2376 = vsub.f32 %v2147, %v2375
        %2377 = vmatpush1.msra.mxu0 %v2376
        %2378 = vmatprep.subr.mxu0 0.0
        %v2379 = vand.u32 %v2146, 4294901760
        %v2380 = vsub.f32 %v2146, %v2379
        %2381 = vmatpush1.msra.mxu0 %v2380
        %2382 = vmatprep.subr.mxu0 0.0
        %2383 = vmatpush2.msra.mxu0 0.0
        %2384 = vmatprep.subr.mxu0 0.0
        %2385 = vmatpush2.msra.mxu0 0.0
        %2386 = vmatprep.subr.mxu0 0.0
        %2387 = vmatpush2.msra.mxu0 0.0
        %2388 = vmatprep.subr.mxu0 0.0
        %2389 = vmatpush2.msra.mxu0 0.0
        %2390 = vmatprep.subr.mxu0 0.0
        %2391 = vmatpush2.msra.mxu0 0.0
        %2392 = vmatprep.subr.mxu0 0.0
        %2393 = vmatpush2.msra.mxu0 0.0
        %2394 = vmatprep.subr.mxu0 0.0
        %2395 = vmatpush2.msra.mxu0 0.0
        %2396 = vmatprep.subr.mxu0 0.0
        %2397 = vmatpush2.msra.mxu0 0.0
        %2398 = vmatprep.subr.mxu0 0.0
        %2399 = vmatpush2.msra.mxu0 0.0
        %2400 = vmatprep.subr.mxu0 0.0
        %2401 = vmatpush2.msra.mxu0 0.0
        %2402 = vmatprep.subr.mxu0 0.0
        %2403 = vmatpush2.msra.mxu0 0.0
        %2404 = vmatprep.subr.mxu0 0.0
        %2405 = vmatpush2.msra.mxu0 0.0
        %2406 = vmatprep.subr.mxu0 0.0
        %2407 = vmatpush2.msra.mxu0 0.0
        %2408 = vmatprep.subr.mxu0 0.0
        %2409 = vmatpush2.msra.mxu0 0.0
        %2410 = vmatprep.subr.mxu0 0.0
        %2411 = vmatpush2.msra.mxu0 0.0
        %2412 = vmatprep.subr.mxu0 0.0
        %2413 = vmatpush2.msra.mxu0 0.0
        %2414 = vmatprep.mubr.f32.mxu0 0.0
        %v2415 = vand.u32 %v2151, 4294901760
        %v2416 = vsub.f32 %v2151, %v2415
        %2417 = vmatmul.mubr.f32.gmra.mxu0 %v2416
        %v2418 = vpop.f32.mrf.mxu0
        %v2419 = vadd.f32 %v2333, %v2418
        %v2420 = vpop.f32.mrf.mxu0
        %2421 = vmatprep.mubr.f32.mxu0 0.0
        %v2422 = vand.u32 %v2154, 4294901760
        %v2423 = vsub.f32 %v2154, %v2422
        %2424 = vmatmul.mubr.f32.gmra.mxu0 %v2423
        %v2425 = vpop.f32.mrf.mxu0
        %v2426 = vadd.f32 %v2339, %v2425
        %v2427 = vpop.f32.mrf.mxu0
        %2428 = vdwg.mxu0
        %2429 = vmatprep.subr.mxu0 0.0
        %2430 = vmatpush1.msra.mxu0 0.0
        %2431 = vmatprep.subr.mxu0 0.0
        %2432 = vmatpush1.msra.mxu0 0.0
        %2433 = vmatprep.subr.mxu0 0.0
        %2434 = vmatpush1.msra.mxu0 0.0
        %2435 = vmatprep.subr.mxu0 0.0
        %2436 = vmatpush1.msra.mxu0 0.0
        %2437 = vmatprep.subr.mxu0 0.0
        %2438 = vmatpush1.msra.mxu0 0.0
        %2439 = vmatprep.subr.mxu0 0.0
        %2440 = vmatpush1.msra.mxu0 0.0
        %2441 = vmatprep.subr.mxu0 0.0
        %2442 = vmatpush1.msra.mxu0 0.0
        %2443 = vmatprep.subr.mxu0 0.0
        %2444 = vmatpush1.msra.mxu0 0.0
        %2445 = vmatprep.subr.mxu0 0.0
        %2446 = vmatpush1.msra.mxu0 0.0
        %2447 = vmatprep.subr.mxu0 0.0
        %2448 = vmatpush1.msra.mxu0 0.0
        %2449 = vmatprep.subr.mxu0 0.0
        %2450 = vmatpush1.msra.mxu0 0.0
        %2451 = vmatprep.subr.mxu0 0.0
        %2452 = vmatpush1.msra.mxu0 0.0
        %2453 = vmatprep.subr.mxu0 0.0
        %v2454 = vand.u32 %v2149, 4294901760
        %2455 = vmatpush1.msra.mxu0 %v2454
        %2456 = vmatprep.subr.mxu0 0.0
        %v2457 = vand.u32 %v2148, 4294901760
        %2458 = vmatpush1.msra.mxu0 %v2457
        %2459 = vmatprep.subr.mxu0 0.0
        %v2460 = vand.u32 %v2147, 4294901760
        %2461 = vmatpush1.msra.mxu0 %v2460
        %2462 = vmatprep.subr.mxu0 0.0
        %v2463 = vand.u32 %v2146, 4294901760
        %2464 = vmatpush1.msra.mxu0 %v2463
        %2465 = vmatprep.subr.mxu0 0.0
        %2466 = vmatpush2.msra.mxu0 0.0
        %2467 = vmatprep.subr.mxu0 0.0
        %2468 = vmatpush2.msra.mxu0 0.0
        %2469 = vmatprep.subr.mxu0 0.0
        %2470 = vmatpush2.msra.mxu0 0.0
        %2471 = vmatprep.subr.mxu0 0.0
        %2472 = vmatpush2.msra.mxu0 0.0
        %2473 = vmatprep.subr.mxu0 0.0
        %2474 = vmatpush2.msra.mxu0 0.0
        %2475 = vmatprep.subr.mxu0 0.0
        %2476 = vmatpush2.msra.mxu0 0.0
        %2477 = vmatprep.subr.mxu0 0.0
        %2478 = vmatpush2.msra.mxu0 0.0
        %2479 = vmatprep.subr.mxu0 0.0
        %2480 = vmatpush2.msra.mxu0 0.0
        %2481 = vmatprep.subr.mxu0 0.0
        %2482 = vmatpush2.msra.mxu0 0.0
        %2483 = vmatprep.subr.mxu0 0.0
        %2484 = vmatpush2.msra.mxu0 0.0
        %2485 = vmatprep.subr.mxu0 0.0
        %2486 = vmatpush2.msra.mxu0 0.0
        %2487 = vmatprep.subr.mxu0 0.0
        %2488 = vmatpush2.msra.mxu0 0.0
        %2489 = vmatprep.subr.mxu0 0.0
        %2490 = vmatpush2.msra.mxu0 0.0
        %2491 = vmatprep.subr.mxu0 0.0
        %2492 = vmatpush2.msra.mxu0 0.0
        %2493 = vmatprep.subr.mxu0 0.0
        %2494 = vmatpush2.msra.mxu0 0.0
        %2495 = vmatprep.subr.mxu0 0.0
        %2496 = vmatpush2.msra.mxu0 0.0
        %2497 = vmatprep.mubr.f32.mxu0 0.0
        %v2498 = vand.u32 %v2151, 4294901760
        %v2499 = vsub.f32 %v2151, %v2498
        %v2500 = vand.u32 %v2499, 4294901760
        %2501 = vmatmul.mubr.f32.gmra.mxu0 %v2500
        %v2502 = vpop.f32.mrf.mxu0
        %v2503 = vadd.f32 %v2419, %v2502
        %v2504 = vpop.f32.mrf.mxu0
        %2505 = vmatprep.mubr.f32.mxu0 0.0
        %v2506 = vand.u32 %v2154, 4294901760
        %v2507 = vsub.f32 %v2154, %v2506
        %v2508 = vand.u32 %v2507, 4294901760
        %2509 = vmatmul.mubr.f32.gmra.mxu0 %v2508
        %v2510 = vpop.f32.mrf.mxu0
        %v2511 = vadd.f32 %v2426, %v2510
        %v2512 = vpop.f32.mrf.mxu0
        %2513 = vdwg.mxu0
        %2514 = vmatprep.subr.mxu0 0.0
        %2515 = vmatpush1.msra.mxu0 0.0
        %2516 = vmatprep.subr.mxu0 0.0
        %2517 = vmatpush1.msra.mxu0 0.0
        %2518 = vmatprep.subr.mxu0 0.0
        %2519 = vmatpush1.msra.mxu0 0.0
        %2520 = vmatprep.subr.mxu0 0.0
        %2521 = vmatpush1.msra.mxu0 0.0
        %2522 = vmatprep.subr.mxu0 0.0
        %2523 = vmatpush1.msra.mxu0 0.0
        %2524 = vmatprep.subr.mxu0 0.0
        %2525 = vmatpush1.msra.mxu0 0.0
        %2526 = vmatprep.subr.mxu0 0.0
        %2527 = vmatpush1.msra.mxu0 0.0
        %2528 = vmatprep.subr.mxu0 0.0
        %2529 = vmatpush1.msra.mxu0 0.0
        %2530 = vmatprep.subr.mxu0 0.0
        %2531 = vmatpush1.msra.mxu0 0.0
        %2532 = vmatprep.subr.mxu0 0.0
        %2533 = vmatpush1.msra.mxu0 0.0
        %2534 = vmatprep.subr.mxu0 0.0
        %2535 = vmatpush1.msra.mxu0 0.0
        %2536 = vmatprep.subr.mxu0 0.0
        %2537 = vmatpush1.msra.mxu0 0.0
        %2538 = vmatprep.subr.mxu0 0.0
        %v2539 = vand.u32 %v2149, 4294901760
        %v2540 = vsub.f32 %v2149, %v2539
        %v2541 = vand.u32 %v2540, 4294901760
        %2542 = vmatpush1.msra.mxu0 %v2541
        %2543 = vmatprep.subr.mxu0 0.0
        %v2544 = vand.u32 %v2148, 4294901760
        %v2545 = vsub.f32 %v2148, %v2544
        %v2546 = vand.u32 %v2545, 4294901760
        %2547 = vmatpush1.msra.mxu0 %v2546
        %2548 = vmatprep.subr.mxu0 0.0
        %v2549 = vand.u32 %v2147, 4294901760
        %v2550 = vsub.f32 %v2147, %v2549
        %v2551 = vand.u32 %v2550, 4294901760
        %2552 = vmatpush1.msra.mxu0 %v2551
        %2553 = vmatprep.subr.mxu0 0.0
        %v2554 = vand.u32 %v2146, 4294901760
        %v2555 = vsub.f32 %v2146, %v2554
        %v2556 = vand.u32 %v2555, 4294901760
        %2557 = vmatpush1.msra.mxu0 %v2556
        %2558 = vmatprep.subr.mxu0 0.0
        %2559 = vmatpush2.msra.mxu0 0.0
        %2560 = vmatprep.subr.mxu0 0.0
        %2561 = vmatpush2.msra.mxu0 0.0
        %2562 = vmatprep.subr.mxu0 0.0
        %2563 = vmatpush2.msra.mxu0 0.0
        %2564 = vmatprep.subr.mxu0 0.0
        %2565 = vmatpush2.msra.mxu0 0.0
        %2566 = vmatprep.subr.mxu0 0.0
        %2567 = vmatpush2.msra.mxu0 0.0
        %2568 = vmatprep.subr.mxu0 0.0
        %2569 = vmatpush2.msra.mxu0 0.0
        %2570 = vmatprep.subr.mxu0 0.0
        %2571 = vmatpush2.msra.mxu0 0.0
        %2572 = vmatprep.subr.mxu0 0.0
        %2573 = vmatpush2.msra.mxu0 0.0
        %2574 = vmatprep.subr.mxu0 0.0
        %2575 = vmatpush2.msra.mxu0 0.0
        %2576 = vmatprep.subr.mxu0 0.0
        %2577 = vmatpush2.msra.mxu0 0.0
        %2578 = vmatprep.subr.mxu0 0.0
        %2579 = vmatpush2.msra.mxu0 0.0
        %2580 = vmatprep.subr.mxu0 0.0
        %2581 = vmatpush2.msra.mxu0 0.0
        %2582 = vmatprep.subr.mxu0 0.0
        %2583 = vmatpush2.msra.mxu0 0.0
        %2584 = vmatprep.subr.mxu0 0.0
        %2585 = vmatpush2.msra.mxu0 0.0
        %2586 = vmatprep.subr.mxu0 0.0
        %2587 = vmatpush2.msra.mxu0 0.0
        %2588 = vmatprep.subr.mxu0 0.0
        %2589 = vmatpush2.msra.mxu0 0.0
        %2590 = vmatprep.mubr.f32.mxu0 0.0
        %v2591 = vand.u32 %v2151, 4294901760
        %2592 = vmatmul.mubr.f32.gmra.mxu0 %v2591
        %v2593 = vpop.f32.mrf.mxu0
        %v2594 = vadd.f32 %v2503, %v2593
        %v2595 = vpop.f32.mrf.mxu0
        %2596 = vmatprep.mubr.f32.mxu0 0.0
        %v2597 = vand.u32 %v2154, 4294901760
        %2598 = vmatmul.mubr.f32.gmra.mxu0 %v2597
        %v2599 = vpop.f32.mrf.mxu0
        %v2600 = vadd.f32 %v2511, %v2599
        %v2601 = vpop.f32.mrf.mxu0
        %2602 = vdwg.mxu0
        %2603 = vmatprep.subr.mxu0 0.0
        %2604 = vmatpush1.msra.mxu0 0.0
        %2605 = vmatprep.subr.mxu0 0.0
        %2606 = vmatpush1.msra.mxu0 0.0
        %2607 = vmatprep.subr.mxu0 0.0
        %2608 = vmatpush1.msra.mxu0 0.0
        %2609 = vmatprep.subr.mxu0 0.0
        %2610 = vmatpush1.msra.mxu0 0.0
        %2611 = vmatprep.subr.mxu0 0.0
        %2612 = vmatpush1.msra.mxu0 0.0
        %2613 = vmatprep.subr.mxu0 0.0
        %2614 = vmatpush1.msra.mxu0 0.0
        %2615 = vmatprep.subr.mxu0 0.0
        %2616 = vmatpush1.msra.mxu0 0.0
        %2617 = vmatprep.subr.mxu0 0.0
        %2618 = vmatpush1.msra.mxu0 0.0
        %2619 = vmatprep.subr.mxu0 0.0
        %2620 = vmatpush1.msra.mxu0 0.0
        %2621 = vmatprep.subr.mxu0 0.0
        %2622 = vmatpush1.msra.mxu0 0.0
        %2623 = vmatprep.subr.mxu0 0.0
        %2624 = vmatpush1.msra.mxu0 0.0
        %2625 = vmatprep.subr.mxu0 0.0
        %2626 = vmatpush1.msra.mxu0 0.0
        %2627 = vmatprep.subr.mxu0 0.0
        %v2628 = vand.u32 %v2149, 4294901760
        %2629 = vmatpush1.msra.mxu0 %v2628
        %2630 = vmatprep.subr.mxu0 0.0
        %v2631 = vand.u32 %v2148, 4294901760
        %2632 = vmatpush1.msra.mxu0 %v2631
        %2633 = vmatprep.subr.mxu0 0.0
        %v2634 = vand.u32 %v2147, 4294901760
        %2635 = vmatpush1.msra.mxu0 %v2634
        %2636 = vmatprep.subr.mxu0 0.0
        %v2637 = vand.u32 %v2146, 4294901760
        %2638 = vmatpush1.msra.mxu0 %v2637
        %2639 = vmatprep.subr.mxu0 0.0
        %2640 = vmatpush2.msra.mxu0 0.0
        %2641 = vmatprep.subr.mxu0 0.0
        %2642 = vmatpush2.msra.mxu0 0.0
        %2643 = vmatprep.subr.mxu0 0.0
        %2644 = vmatpush2.msra.mxu0 0.0
        %2645 = vmatprep.subr.mxu0 0.0
        %2646 = vmatpush2.msra.mxu0 0.0
        %2647 = vmatprep.subr.mxu0 0.0
        %2648 = vmatpush2.msra.mxu0 0.0
        %2649 = vmatprep.subr.mxu0 0.0
        %2650 = vmatpush2.msra.mxu0 0.0
        %2651 = vmatprep.subr.mxu0 0.0
        %2652 = vmatpush2.msra.mxu0 0.0
        %2653 = vmatprep.subr.mxu0 0.0
        %2654 = vmatpush2.msra.mxu0 0.0
        %2655 = vmatprep.subr.mxu0 0.0
        %2656 = vmatpush2.msra.mxu0 0.0
        %2657 = vmatprep.subr.mxu0 0.0
        %2658 = vmatpush2.msra.mxu0 0.0
        %2659 = vmatprep.subr.mxu0 0.0
        %2660 = vmatpush2.msra.mxu0 0.0
        %2661 = vmatprep.subr.mxu0 0.0
        %2662 = vmatpush2.msra.mxu0 0.0
        %2663 = vmatprep.subr.mxu0 0.0
        %2664 = vmatpush2.msra.mxu0 0.0
        %2665 = vmatprep.subr.mxu0 0.0
        %2666 = vmatpush2.msra.mxu0 0.0
        %2667 = vmatprep.subr.mxu0 0.0
        %2668 = vmatpush2.msra.mxu0 0.0
        %2669 = vmatprep.subr.mxu0 0.0
        %2670 = vmatpush2.msra.mxu0 0.0
        %2671 = vmatprep.mubr.f32.mxu0 0.0
        %v2672 = vand.u32 %v2151, 4294901760
        %2673 = vmatmul.mubr.f32.gmra.mxu0 %v2672
        %v2674 = vpop.f32.mrf.mxu0
        %v2675 = vadd.f32 %v2594, %v2674
        %v2676 = vpop.f32.mrf.mxu0
        %2677 = vmatprep.mubr.f32.mxu0 0.0
        %v2678 = vand.u32 %v2154, 4294901760
        %2679 = vmatmul.mubr.f32.gmra.mxu0 %v2678
        %v2680 = vpop.f32.mrf.mxu0
        %v2681 = vadd.f32 %v2600, %v2680
        %v2682 = vpop.f32.mrf.mxu0
        %2683 = vdwg.mxu0
        %v2684 = vadd.f32 %v2141, %v2675
        %v2685 = vadd.f32 %v2142, %v2681
        %v2686 = vld [vmem:[#allocation2 + $0x4] sm:$0xff]
        %v2687 = vld [vmem:[#allocation2 + $0xc] sm:$0xff]
        %s2688 = scalar_lea.vmem %s1, 128
        %v2689 = vld [vmem:[%s2688] sm:$0xff]
        %v2690 = vld [vmem:[%s2688 + $0x8] sm:$0xff]
        %v2691 = vld [vmem:[%s2688 + $0x10] sm:$0xff]
        %v2692 = vld [vmem:[%s2688 + $0x18] sm:$0xff]
        %v2694 = vsel %vm531, %v2686, 0
        %v2697 = vsel %vm531, %v2687, 0
        %2699 = vmatprep.subr.mxu0 0.0
        %2700 = vmatpush1.msra.mxu0 0.0
        %2701 = vmatprep.subr.mxu0 0.0
        %2702 = vmatpush1.msra.mxu0 0.0
        %2703 = vmatprep.subr.mxu0 0.0
        %2704 = vmatpush1.msra.mxu0 0.0
        %2705 = vmatprep.subr.mxu0 0.0
        %2706 = vmatpush1.msra.mxu0 0.0
        %2707 = vmatprep.subr.mxu0 0.0
        %2708 = vmatpush1.msra.mxu0 0.0
        %2709 = vmatprep.subr.mxu0 0.0
        %2710 = vmatpush1.msra.mxu0 0.0
        %2711 = vmatprep.subr.mxu0 0.0
        %2712 = vmatpush1.msra.mxu0 0.0
        %2713 = vmatprep.subr.mxu0 0.0
        %2714 = vmatpush1.msra.mxu0 0.0
        %2715 = vmatprep.subr.mxu0 0.0
        %2716 = vmatpush1.msra.mxu0 0.0
        %2717 = vmatprep.subr.mxu0 0.0
        %2718 = vmatpush1.msra.mxu0 0.0
        %2719 = vmatprep.subr.mxu0 0.0
        %2720 = vmatpush1.msra.mxu0 0.0
        %2721 = vmatprep.subr.mxu0 0.0
        %2722 = vmatpush1.msra.mxu0 0.0
        %2723 = vmatprep.subr.mxu0 0.0
        %v2724 = vand.u32 %v2692, 4294901760
        %2725 = vmatpush1.msra.mxu0 %v2724
        %2726 = vmatprep.subr.mxu0 0.0
        %v2727 = vand.u32 %v2691, 4294901760
        %2728 = vmatpush1.msra.mxu0 %v2727
        %2729 = vmatprep.subr.mxu0 0.0
        %v2730 = vand.u32 %v2690, 4294901760
        %2731 = vmatpush1.msra.mxu0 %v2730
        %2732 = vmatprep.subr.mxu0 0.0
        %v2733 = vand.u32 %v2689, 4294901760
        %2734 = vmatpush1.msra.mxu0 %v2733
        %2735 = vmatprep.subr.mxu0 0.0
        %2736 = vmatpush2.msra.mxu0 0.0
        %2737 = vmatprep.subr.mxu0 0.0
        %2738 = vmatpush2.msra.mxu0 0.0
        %2739 = vmatprep.subr.mxu0 0.0
        %2740 = vmatpush2.msra.mxu0 0.0
        %2741 = vmatprep.subr.mxu0 0.0
        %2742 = vmatpush2.msra.mxu0 0.0
        %2743 = vmatprep.subr.mxu0 0.0
        %2744 = vmatpush2.msra.mxu0 0.0
        %2745 = vmatprep.subr.mxu0 0.0
        %2746 = vmatpush2.msra.mxu0 0.0
        %2747 = vmatprep.subr.mxu0 0.0
        %2748 = vmatpush2.msra.mxu0 0.0
        %2749 = vmatprep.subr.mxu0 0.0
        %2750 = vmatpush2.msra.mxu0 0.0
        %2751 = vmatprep.subr.mxu0 0.0
        %2752 = vmatpush2.msra.mxu0 0.0
        %2753 = vmatprep.subr.mxu0 0.0
        %2754 = vmatpush2.msra.mxu0 0.0
        %2755 = vmatprep.subr.mxu0 0.0
        %2756 = vmatpush2.msra.mxu0 0.0
        %2757 = vmatprep.subr.mxu0 0.0
        %2758 = vmatpush2.msra.mxu0 0.0
        %2759 = vmatprep.subr.mxu0 0.0
        %2760 = vmatpush2.msra.mxu0 0.0
        %2761 = vmatprep.subr.mxu0 0.0
        %2762 = vmatpush2.msra.mxu0 0.0
        %2763 = vmatprep.subr.mxu0 0.0
        %2764 = vmatpush2.msra.mxu0 0.0
        %2765 = vmatprep.subr.mxu0 0.0
        %2766 = vmatpush2.msra.mxu0 0.0
        %2767 = vmatprep.mubr.f32.mxu0 0.0
        %v2768 = vand.u32 %v2694, 4294901760
        %v2769 = vsub.f32 %v2694, %v2768
        %v2770 = vand.u32 %v2769, 4294901760
        %v2771 = vsub.f32 %v2769, %v2770
        %v2772 = vand.u32 %v2771, 4294901760
        %2773 = vmatmul.mubr.f32.gmra.mxu0 %v2772
        %v2774 = vpop.f32.mrf.mxu0
        %v2775 = vadd.f32 0.0, %v2774
        %v2776 = vpop.f32.mrf.mxu0
        %2777 = vmatprep.mubr.f32.mxu0 0.0
        %v2778 = vand.u32 %v2697, 4294901760
        %v2779 = vsub.f32 %v2697, %v2778
        %v2780 = vand.u32 %v2779, 4294901760
        %v2781 = vsub.f32 %v2779, %v2780
        %v2782 = vand.u32 %v2781, 4294901760
        %2783 = vmatmul.mubr.f32.gmra.mxu0 %v2782
        %v2784 = vpop.f32.mrf.mxu0
        %v2785 = vadd.f32 0.0, %v2784
        %v2786 = vpop.f32.mrf.mxu0
        %2787 = vdwg.mxu0
        %2788 = vmatprep.subr.mxu0 0.0
        %2789 = vmatpush1.msra.mxu0 0.0
        %2790 = vmatprep.subr.mxu0 0.0
        %2791 = vmatpush1.msra.mxu0 0.0
        %2792 = vmatprep.subr.mxu0 0.0
        %2793 = vmatpush1.msra.mxu0 0.0
        %2794 = vmatprep.subr.mxu0 0.0
        %2795 = vmatpush1.msra.mxu0 0.0
        %2796 = vmatprep.subr.mxu0 0.0
        %2797 = vmatpush1.msra.mxu0 0.0
        %2798 = vmatprep.subr.mxu0 0.0
        %2799 = vmatpush1.msra.mxu0 0.0
        %2800 = vmatprep.subr.mxu0 0.0
        %2801 = vmatpush1.msra.mxu0 0.0
        %2802 = vmatprep.subr.mxu0 0.0
        %2803 = vmatpush1.msra.mxu0 0.0
        %2804 = vmatprep.subr.mxu0 0.0
        %2805 = vmatpush1.msra.mxu0 0.0
        %2806 = vmatprep.subr.mxu0 0.0
        %2807 = vmatpush1.msra.mxu0 0.0
        %2808 = vmatprep.subr.mxu0 0.0
        %2809 = vmatpush1.msra.mxu0 0.0
        %2810 = vmatprep.subr.mxu0 0.0
        %2811 = vmatpush1.msra.mxu0 0.0
        %2812 = vmatprep.subr.mxu0 0.0
        %v2813 = vand.u32 %v2692, 4294901760
        %v2814 = vsub.f32 %v2692, %v2813
        %v2815 = vand.u32 %v2814, 4294901760
        %v2816 = vsub.f32 %v2814, %v2815
        %v2817 = vand.u32 %v2816, 4294901760
        %2818 = vmatpush1.msra.mxu0 %v2817
        %2819 = vmatprep.subr.mxu0 0.0
        %v2820 = vand.u32 %v2691, 4294901760
        %v2821 = vsub.f32 %v2691, %v2820
        %v2822 = vand.u32 %v2821, 4294901760
        %v2823 = vsub.f32 %v2821, %v2822
        %v2824 = vand.u32 %v2823, 4294901760
        %2825 = vmatpush1.msra.mxu0 %v2824
        %2826 = vmatprep.subr.mxu0 0.0
        %v2827 = vand.u32 %v2690, 4294901760
        %v2828 = vsub.f32 %v2690, %v2827
        %v2829 = vand.u32 %v2828, 4294901760
        %v2830 = vsub.f32 %v2828, %v2829
        %v2831 = vand.u32 %v2830, 4294901760
        %2832 = vmatpush1.msra.mxu0 %v2831
        %2833 = vmatprep.subr.mxu0 0.0
        %v2834 = vand.u32 %v2689, 4294901760
        %v2835 = vsub.f32 %v2689, %v2834
        %v2836 = vand.u32 %v2835, 4294901760
        %v2837 = vsub.f32 %v2835, %v2836
        %v2838 = vand.u32 %v2837, 4294901760
        %2839 = vmatpush1.msra.mxu0 %v2838
        %2840 = vmatprep.subr.mxu0 0.0
        %2841 = vmatpush2.msra.mxu0 0.0
        %2842 = vmatprep.subr.mxu0 0.0
        %2843 = vmatpush2.msra.mxu0 0.0
        %2844 = vmatprep.subr.mxu0 0.0
        %2845 = vmatpush2.msra.mxu0 0.0
        %2846 = vmatprep.subr.mxu0 0.0
        %2847 = vmatpush2.msra.mxu0 0.0
        %2848 = vmatprep.subr.mxu0 0.0
        %2849 = vmatpush2.msra.mxu0 0.0
        %2850 = vmatprep.subr.mxu0 0.0
        %2851 = vmatpush2.msra.mxu0 0.0
        %2852 = vmatprep.subr.mxu0 0.0
        %2853 = vmatpush2.msra.mxu0 0.0
        %2854 = vmatprep.subr.mxu0 0.0
        %2855 = vmatpush2.msra.mxu0 0.0
        %2856 = vmatprep.subr.mxu0 0.0
        %2857 = vmatpush2.msra.mxu0 0.0
        %2858 = vmatprep.subr.mxu0 0.0
        %2859 = vmatpush2.msra.mxu0 0.0
        %2860 = vmatprep.subr.mxu0 0.0
        %2861 = vmatpush2.msra.mxu0 0.0
        %2862 = vmatprep.subr.mxu0 0.0
        %2863 = vmatpush2.msra.mxu0 0.0
        %2864 = vmatprep.subr.mxu0 0.0
        %2865 = vmatpush2.msra.mxu0 0.0
        %2866 = vmatprep.subr.mxu0 0.0
        %2867 = vmatpush2.msra.mxu0 0.0
        %2868 = vmatprep.subr.mxu0 0.0
        %2869 = vmatpush2.msra.mxu0 0.0
        %2870 = vmatprep.subr.mxu0 0.0
        %2871 = vmatpush2.msra.mxu0 0.0
        %2872 = vmatprep.mubr.f32.mxu0 0.0
        %v2873 = vand.u32 %v2694, 4294901760
        %2874 = vmatmul.mubr.f32.gmra.mxu0 %v2873
        %v2875 = vpop.f32.mrf.mxu0
        %v2876 = vadd.f32 %v2775, %v2875
        %v2877 = vpop.f32.mrf.mxu0
        %2878 = vmatprep.mubr.f32.mxu0 0.0
        %v2879 = vand.u32 %v2697, 4294901760
        %2880 = vmatmul.mubr.f32.gmra.mxu0 %v2879
        %v2881 = vpop.f32.mrf.mxu0
        %v2882 = vadd.f32 %v2785, %v2881
        %v2883 = vpop.f32.mrf.mxu0
        %2884 = vdwg.mxu0
        %2885 = vmatprep.subr.mxu0 0.0
        %2886 = vmatpush1.msra.mxu0 0.0
        %2887 = vmatprep.subr.mxu0 0.0
        %2888 = vmatpush1.msra.mxu0 0.0
        %2889 = vmatprep.subr.mxu0 0.0
        %2890 = vmatpush1.msra.mxu0 0.0
        %2891 = vmatprep.subr.mxu0 0.0
        %2892 = vmatpush1.msra.mxu0 0.0
        %2893 = vmatprep.subr.mxu0 0.0
        %2894 = vmatpush1.msra.mxu0 0.0
        %2895 = vmatprep.subr.mxu0 0.0
        %2896 = vmatpush1.msra.mxu0 0.0
        %2897 = vmatprep.subr.mxu0 0.0
        %2898 = vmatpush1.msra.mxu0 0.0
        %2899 = vmatprep.subr.mxu0 0.0
        %2900 = vmatpush1.msra.mxu0 0.0
        %2901 = vmatprep.subr.mxu0 0.0
        %2902 = vmatpush1.msra.mxu0 0.0
        %2903 = vmatprep.subr.mxu0 0.0
        %2904 = vmatpush1.msra.mxu0 0.0
        %2905 = vmatprep.subr.mxu0 0.0
        %2906 = vmatpush1.msra.mxu0 0.0
        %2907 = vmatprep.subr.mxu0 0.0
        %2908 = vmatpush1.msra.mxu0 0.0
        %2909 = vmatprep.subr.mxu0 0.0
        %v2910 = vand.u32 %v2692, 4294901760
        %v2911 = vsub.f32 %v2692, %v2910
        %2912 = vmatpush1.msra.mxu0 %v2911
        %2913 = vmatprep.subr.mxu0 0.0
        %v2914 = vand.u32 %v2691, 4294901760
        %v2915 = vsub.f32 %v2691, %v2914
        %2916 = vmatpush1.msra.mxu0 %v2915
        %2917 = vmatprep.subr.mxu0 0.0
        %v2918 = vand.u32 %v2690, 4294901760
        %v2919 = vsub.f32 %v2690, %v2918
        %2920 = vmatpush1.msra.mxu0 %v2919
        %2921 = vmatprep.subr.mxu0 0.0
        %v2922 = vand.u32 %v2689, 4294901760
        %v2923 = vsub.f32 %v2689, %v2922
        %2924 = vmatpush1.msra.mxu0 %v2923
        %2925 = vmatprep.subr.mxu0 0.0
        %2926 = vmatpush2.msra.mxu0 0.0
        %2927 = vmatprep.subr.mxu0 0.0
        %2928 = vmatpush2.msra.mxu0 0.0
        %2929 = vmatprep.subr.mxu0 0.0
        %2930 = vmatpush2.msra.mxu0 0.0
        %2931 = vmatprep.subr.mxu0 0.0
        %2932 = vmatpush2.msra.mxu0 0.0
        %2933 = vmatprep.subr.mxu0 0.0
        %2934 = vmatpush2.msra.mxu0 0.0
        %2935 = vmatprep.subr.mxu0 0.0
        %2936 = vmatpush2.msra.mxu0 0.0
        %2937 = vmatprep.subr.mxu0 0.0
        %2938 = vmatpush2.msra.mxu0 0.0
        %2939 = vmatprep.subr.mxu0 0.0
        %2940 = vmatpush2.msra.mxu0 0.0
        %2941 = vmatprep.subr.mxu0 0.0
        %2942 = vmatpush2.msra.mxu0 0.0
        %2943 = vmatprep.subr.mxu0 0.0
        %2944 = vmatpush2.msra.mxu0 0.0
        %2945 = vmatprep.subr.mxu0 0.0
        %2946 = vmatpush2.msra.mxu0 0.0
        %2947 = vmatprep.subr.mxu0 0.0
        %2948 = vmatpush2.msra.mxu0 0.0
        %2949 = vmatprep.subr.mxu0 0.0
        %2950 = vmatpush2.msra.mxu0 0.0
        %2951 = vmatprep.subr.mxu0 0.0
        %2952 = vmatpush2.msra.mxu0 0.0
        %2953 = vmatprep.subr.mxu0 0.0
        %2954 = vmatpush2.msra.mxu0 0.0
        %2955 = vmatprep.subr.mxu0 0.0
        %2956 = vmatpush2.msra.mxu0 0.0
        %2957 = vmatprep.mubr.f32.mxu0 0.0
        %v2958 = vand.u32 %v2694, 4294901760
        %v2959 = vsub.f32 %v2694, %v2958
        %2960 = vmatmul.mubr.f32.gmra.mxu0 %v2959
        %v2961 = vpop.f32.mrf.mxu0
        %v2962 = vadd.f32 %v2876, %v2961
        %v2963 = vpop.f32.mrf.mxu0
        %2964 = vmatprep.mubr.f32.mxu0 0.0
        %v2965 = vand.u32 %v2697, 4294901760
        %v2966 = vsub.f32 %v2697, %v2965
        %2967 = vmatmul.mubr.f32.gmra.mxu0 %v2966
        %v2968 = vpop.f32.mrf.mxu0
        %v2969 = vadd.f32 %v2882, %v2968
        %v2970 = vpop.f32.mrf.mxu0
        %2971 = vdwg.mxu0
        %2972 = vmatprep.subr.mxu0 0.0
        %2973 = vmatpush1.msra.mxu0 0.0
        %2974 = vmatprep.subr.mxu0 0.0
        %2975 = vmatpush1.msra.mxu0 0.0
        %2976 = vmatprep.subr.mxu0 0.0
        %2977 = vmatpush1.msra.mxu0 0.0
        %2978 = vmatprep.subr.mxu0 0.0
        %2979 = vmatpush1.msra.mxu0 0.0
        %2980 = vmatprep.subr.mxu0 0.0
        %2981 = vmatpush1.msra.mxu0 0.0
        %2982 = vmatprep.subr.mxu0 0.0
        %2983 = vmatpush1.msra.mxu0 0.0
        %2984 = vmatprep.subr.mxu0 0.0
        %2985 = vmatpush1.msra.mxu0 0.0
        %2986 = vmatprep.subr.mxu0 0.0
        %2987 = vmatpush1.msra.mxu0 0.0
        %2988 = vmatprep.subr.mxu0 0.0
        %2989 = vmatpush1.msra.mxu0 0.0
        %2990 = vmatprep.subr.mxu0 0.0
        %2991 = vmatpush1.msra.mxu0 0.0
        %2992 = vmatprep.subr.mxu0 0.0
        %2993 = vmatpush1.msra.mxu0 0.0
        %2994 = vmatprep.subr.mxu0 0.0
        %2995 = vmatpush1.msra.mxu0 0.0
        %2996 = vmatprep.subr.mxu0 0.0
        %v2997 = vand.u32 %v2692, 4294901760
        %2998 = vmatpush1.msra.mxu0 %v2997
        %2999 = vmatprep.subr.mxu0 0.0
        %v3000 = vand.u32 %v2691, 4294901760
        %3001 = vmatpush1.msra.mxu0 %v3000
        %3002 = vmatprep.subr.mxu0 0.0
        %v3003 = vand.u32 %v2690, 4294901760
        %3004 = vmatpush1.msra.mxu0 %v3003
        %3005 = vmatprep.subr.mxu0 0.0
        %v3006 = vand.u32 %v2689, 4294901760
        %3007 = vmatpush1.msra.mxu0 %v3006
        %3008 = vmatprep.subr.mxu0 0.0
        %3009 = vmatpush2.msra.mxu0 0.0
        %3010 = vmatprep.subr.mxu0 0.0
        %3011 = vmatpush2.msra.mxu0 0.0
        %3012 = vmatprep.subr.mxu0 0.0
        %3013 = vmatpush2.msra.mxu0 0.0
        %3014 = vmatprep.subr.mxu0 0.0
        %3015 = vmatpush2.msra.mxu0 0.0
        %3016 = vmatprep.subr.mxu0 0.0
        %3017 = vmatpush2.msra.mxu0 0.0
        %3018 = vmatprep.subr.mxu0 0.0
        %3019 = vmatpush2.msra.mxu0 0.0
        %3020 = vmatprep.subr.mxu0 0.0
        %3021 = vmatpush2.msra.mxu0 0.0
        %3022 = vmatprep.subr.mxu0 0.0
        %3023 = vmatpush2.msra.mxu0 0.0
        %3024 = vmatprep.subr.mxu0 0.0
        %3025 = vmatpush2.msra.mxu0 0.0
        %3026 = vmatprep.subr.mxu0 0.0
        %3027 = vmatpush2.msra.mxu0 0.0
        %3028 = vmatprep.subr.mxu0 0.0
        %3029 = vmatpush2.msra.mxu0 0.0
        %3030 = vmatprep.subr.mxu0 0.0
        %3031 = vmatpush2.msra.mxu0 0.0
        %3032 = vmatprep.subr.mxu0 0.0
        %3033 = vmatpush2.msra.mxu0 0.0
        %3034 = vmatprep.subr.mxu0 0.0
        %3035 = vmatpush2.msra.mxu0 0.0
        %3036 = vmatprep.subr.mxu0 0.0
        %3037 = vmatpush2.msra.mxu0 0.0
        %3038 = vmatprep.subr.mxu0 0.0
        %3039 = vmatpush2.msra.mxu0 0.0
        %3040 = vmatprep.mubr.f32.mxu0 0.0
        %v3041 = vand.u32 %v2694, 4294901760
        %v3042 = vsub.f32 %v2694, %v3041
        %v3043 = vand.u32 %v3042, 4294901760
        %3044 = vmatmul.mubr.f32.gmra.mxu0 %v3043
        %v3045 = vpop.f32.mrf.mxu0
        %v3046 = vadd.f32 %v2962, %v3045
        %v3047 = vpop.f32.mrf.mxu0
        %3048 = vmatprep.mubr.f32.mxu0 0.0
        %v3049 = vand.u32 %v2697, 4294901760
        %v3050 = vsub.f32 %v2697, %v3049
        %v3051 = vand.u32 %v3050, 4294901760
        %3052 = vmatmul.mubr.f32.gmra.mxu0 %v3051
        %v3053 = vpop.f32.mrf.mxu0
        %v3054 = vadd.f32 %v2969, %v3053
        %v3055 = vpop.f32.mrf.mxu0
        %3056 = vdwg.mxu0
        %3057 = vmatprep.subr.mxu0 0.0
        %3058 = vmatpush1.msra.mxu0 0.0
        %3059 = vmatprep.subr.mxu0 0.0
        %3060 = vmatpush1.msra.mxu0 0.0
        %3061 = vmatprep.subr.mxu0 0.0
        %3062 = vmatpush1.msra.mxu0 0.0
        %3063 = vmatprep.subr.mxu0 0.0
        %3064 = vmatpush1.msra.mxu0 0.0
        %3065 = vmatprep.subr.mxu0 0.0
        %3066 = vmatpush1.msra.mxu0 0.0
        %3067 = vmatprep.subr.mxu0 0.0
        %3068 = vmatpush1.msra.mxu0 0.0
        %3069 = vmatprep.subr.mxu0 0.0
        %3070 = vmatpush1.msra.mxu0 0.0
        %3071 = vmatprep.subr.mxu0 0.0
        %3072 = vmatpush1.msra.mxu0 0.0
        %3073 = vmatprep.subr.mxu0 0.0
        %3074 = vmatpush1.msra.mxu0 0.0
        %3075 = vmatprep.subr.mxu0 0.0
        %3076 = vmatpush1.msra.mxu0 0.0
        %3077 = vmatprep.subr.mxu0 0.0
        %3078 = vmatpush1.msra.mxu0 0.0
        %3079 = vmatprep.subr.mxu0 0.0
        %3080 = vmatpush1.msra.mxu0 0.0
        %3081 = vmatprep.subr.mxu0 0.0
        %v3082 = vand.u32 %v2692, 4294901760
        %v3083 = vsub.f32 %v2692, %v3082
        %v3084 = vand.u32 %v3083, 4294901760
        %3085 = vmatpush1.msra.mxu0 %v3084
        %3086 = vmatprep.subr.mxu0 0.0
        %v3087 = vand.u32 %v2691, 4294901760
        %v3088 = vsub.f32 %v2691, %v3087
        %v3089 = vand.u32 %v3088, 4294901760
        %3090 = vmatpush1.msra.mxu0 %v3089
        %3091 = vmatprep.subr.mxu0 0.0
        %v3092 = vand.u32 %v2690, 4294901760
        %v3093 = vsub.f32 %v2690, %v3092
        %v3094 = vand.u32 %v3093, 4294901760
        %3095 = vmatpush1.msra.mxu0 %v3094
        %3096 = vmatprep.subr.mxu0 0.0
        %v3097 = vand.u32 %v2689, 4294901760
        %v3098 = vsub.f32 %v2689, %v3097
        %v3099 = vand.u32 %v3098, 4294901760
        %3100 = vmatpush1.msra.mxu0 %v3099
        %3101 = vmatprep.subr.mxu0 0.0
        %3102 = vmatpush2.msra.mxu0 0.0
        %3103 = vmatprep.subr.mxu0 0.0
        %3104 = vmatpush2.msra.mxu0 0.0
        %3105 = vmatprep.subr.mxu0 0.0
        %3106 = vmatpush2.msra.mxu0 0.0
        %3107 = vmatprep.subr.mxu0 0.0
        %3108 = vmatpush2.msra.mxu0 0.0
        %3109 = vmatprep.subr.mxu0 0.0
        %3110 = vmatpush2.msra.mxu0 0.0
        %3111 = vmatprep.subr.mxu0 0.0
        %3112 = vmatpush2.msra.mxu0 0.0
        %3113 = vmatprep.subr.mxu0 0.0
        %3114 = vmatpush2.msra.mxu0 0.0
        %3115 = vmatprep.subr.mxu0 0.0
        %3116 = vmatpush2.msra.mxu0 0.0
        %3117 = vmatprep.subr.mxu0 0.0
        %3118 = vmatpush2.msra.mxu0 0.0
        %3119 = vmatprep.subr.mxu0 0.0
        %3120 = vmatpush2.msra.mxu0 0.0
        %3121 = vmatprep.subr.mxu0 0.0
        %3122 = vmatpush2.msra.mxu0 0.0
        %3123 = vmatprep.subr.mxu0 0.0
        %3124 = vmatpush2.msra.mxu0 0.0
        %3125 = vmatprep.subr.mxu0 0.0
        %3126 = vmatpush2.msra.mxu0 0.0
        %3127 = vmatprep.subr.mxu0 0.0
        %3128 = vmatpush2.msra.mxu0 0.0
        %3129 = vmatprep.subr.mxu0 0.0
        %3130 = vmatpush2.msra.mxu0 0.0
        %3131 = vmatprep.subr.mxu0 0.0
        %3132 = vmatpush2.msra.mxu0 0.0
        %3133 = vmatprep.mubr.f32.mxu0 0.0
        %v3134 = vand.u32 %v2694, 4294901760
        %3135 = vmatmul.mubr.f32.gmra.mxu0 %v3134
        %v3136 = vpop.f32.mrf.mxu0
        %v3137 = vadd.f32 %v3046, %v3136
        %v3138 = vpop.f32.mrf.mxu0
        %3139 = vmatprep.mubr.f32.mxu0 0.0
        %v3140 = vand.u32 %v2697, 4294901760
        %3141 = vmatmul.mubr.f32.gmra.mxu0 %v3140
        %v3142 = vpop.f32.mrf.mxu0
        %v3143 = vadd.f32 %v3054, %v3142
        %v3144 = vpop.f32.mrf.mxu0
        %3145 = vdwg.mxu0
        %3146 = vmatprep.subr.mxu0 0.0
        %3147 = vmatpush1.msra.mxu0 0.0
        %3148 = vmatprep.subr.mxu0 0.0
        %3149 = vmatpush1.msra.mxu0 0.0
        %3150 = vmatprep.subr.mxu0 0.0
        %3151 = vmatpush1.msra.mxu0 0.0
        %3152 = vmatprep.subr.mxu0 0.0
        %3153 = vmatpush1.msra.mxu0 0.0
        %3154 = vmatprep.subr.mxu0 0.0
        %3155 = vmatpush1.msra.mxu0 0.0
        %3156 = vmatprep.subr.mxu0 0.0
        %3157 = vmatpush1.msra.mxu0 0.0
        %3158 = vmatprep.subr.mxu0 0.0
        %3159 = vmatpush1.msra.mxu0 0.0
        %3160 = vmatprep.subr.mxu0 0.0
        %3161 = vmatpush1.msra.mxu0 0.0
        %3162 = vmatprep.subr.mxu0 0.0
        %3163 = vmatpush1.msra.mxu0 0.0
        %3164 = vmatprep.subr.mxu0 0.0
        %3165 = vmatpush1.msra.mxu0 0.0
        %3166 = vmatprep.subr.mxu0 0.0
        %3167 = vmatpush1.msra.mxu0 0.0
        %3168 = vmatprep.subr.mxu0 0.0
        %3169 = vmatpush1.msra.mxu0 0.0
        %3170 = vmatprep.subr.mxu0 0.0
        %v3171 = vand.u32 %v2692, 4294901760
        %3172 = vmatpush1.msra.mxu0 %v3171
        %3173 = vmatprep.subr.mxu0 0.0
        %v3174 = vand.u32 %v2691, 4294901760
        %3175 = vmatpush1.msra.mxu0 %v3174
        %3176 = vmatprep.subr.mxu0 0.0
        %v3177 = vand.u32 %v2690, 4294901760
        %3178 = vmatpush1.msra.mxu0 %v3177
        %3179 = vmatprep.subr.mxu0 0.0
        %v3180 = vand.u32 %v2689, 4294901760
        %3181 = vmatpush1.msra.mxu0 %v3180
        %3182 = vmatprep.subr.mxu0 0.0
        %3183 = vmatpush2.msra.mxu0 0.0
        %3184 = vmatprep.subr.mxu0 0.0
        %3185 = vmatpush2.msra.mxu0 0.0
        %3186 = vmatprep.subr.mxu0 0.0
        %3187 = vmatpush2.msra.mxu0 0.0
        %3188 = vmatprep.subr.mxu0 0.0
        %3189 = vmatpush2.msra.mxu0 0.0
        %3190 = vmatprep.subr.mxu0 0.0
        %3191 = vmatpush2.msra.mxu0 0.0
        %3192 = vmatprep.subr.mxu0 0.0
        %3193 = vmatpush2.msra.mxu0 0.0
        %3194 = vmatprep.subr.mxu0 0.0
        %3195 = vmatpush2.msra.mxu0 0.0
        %3196 = vmatprep.subr.mxu0 0.0
        %3197 = vmatpush2.msra.mxu0 0.0
        %3198 = vmatprep.subr.mxu0 0.0
        %3199 = vmatpush2.msra.mxu0 0.0
        %3200 = vmatprep.subr.mxu0 0.0
        %3201 = vmatpush2.msra.mxu0 0.0
        %3202 = vmatprep.subr.mxu0 0.0
        %3203 = vmatpush2.msra.mxu0 0.0
        %3204 = vmatprep.subr.mxu0 0.0
        %3205 = vmatpush2.msra.mxu0 0.0
        %3206 = vmatprep.subr.mxu0 0.0
        %3207 = vmatpush2.msra.mxu0 0.0
        %3208 = vmatprep.subr.mxu0 0.0
        %3209 = vmatpush2.msra.mxu0 0.0
        %3210 = vmatprep.subr.mxu0 0.0
        %3211 = vmatpush2.msra.mxu0 0.0
        %3212 = vmatprep.subr.mxu0 0.0
        %3213 = vmatpush2.msra.mxu0 0.0
        %3214 = vmatprep.mubr.f32.mxu0 0.0
        %v3215 = vand.u32 %v2694, 4294901760
        %3216 = vmatmul.mubr.f32.gmra.mxu0 %v3215
        %v3217 = vpop.f32.mrf.mxu0
        %v3218 = vadd.f32 %v3137, %v3217
        %v3219 = vpop.f32.mrf.mxu0
        %3220 = vmatprep.mubr.f32.mxu0 0.0
        %v3221 = vand.u32 %v2697, 4294901760
        %3222 = vmatmul.mubr.f32.gmra.mxu0 %v3221
        %v3223 = vpop.f32.mrf.mxu0
        %v3224 = vadd.f32 %v3143, %v3223
        %v3225 = vpop.f32.mrf.mxu0
        %3226 = vdwg.mxu0
        %v3227 = vadd.f32 %v2684, %v3218
        %v3228 = vadd.f32 %v2685, %v3224
        %v3229 = vld [vmem:[#allocation2 + $0x5] sm:$0xff]
        %v3230 = vld [vmem:[#allocation2 + $0xd] sm:$0xff]
        %s3231 = scalar_lea.vmem %s1, 160
        %v3232 = vld [vmem:[%s3231] sm:$0xff]
        %v3233 = vld [vmem:[%s3231 + $0x8] sm:$0xff]
        %v3234 = vld [vmem:[%s3231 + $0x10] sm:$0xff]
        %v3235 = vld [vmem:[%s3231 + $0x18] sm:$0xff]
        %v3237 = vsel %vm531, %v3229, 0
        %v3240 = vsel %vm531, %v3230, 0
        %3242 = vmatprep.subr.mxu0 0.0
        %3243 = vmatpush1.msra.mxu0 0.0
        %3244 = vmatprep.subr.mxu0 0.0
        %3245 = vmatpush1.msra.mxu0 0.0
        %3246 = vmatprep.subr.mxu0 0.0
        %3247 = vmatpush1.msra.mxu0 0.0
        %3248 = vmatprep.subr.mxu0 0.0
        %3249 = vmatpush1.msra.mxu0 0.0
        %3250 = vmatprep.subr.mxu0 0.0
        %3251 = vmatpush1.msra.mxu0 0.0
        %3252 = vmatprep.subr.mxu0 0.0
        %3253 = vmatpush1.msra.mxu0 0.0
        %3254 = vmatprep.subr.mxu0 0.0
        %3255 = vmatpush1.msra.mxu0 0.0
        %3256 = vmatprep.subr.mxu0 0.0
        %3257 = vmatpush1.msra.mxu0 0.0
        %3258 = vmatprep.subr.mxu0 0.0
        %3259 = vmatpush1.msra.mxu0 0.0
        %3260 = vmatprep.subr.mxu0 0.0
        %3261 = vmatpush1.msra.mxu0 0.0
        %3262 = vmatprep.subr.mxu0 0.0
        %3263 = vmatpush1.msra.mxu0 0.0
        %3264 = vmatprep.subr.mxu0 0.0
        %3265 = vmatpush1.msra.mxu0 0.0
        %3266 = vmatprep.subr.mxu0 0.0
        %v3267 = vand.u32 %v3235, 4294901760
        %3268 = vmatpush1.msra.mxu0 %v3267
        %3269 = vmatprep.subr.mxu0 0.0
        %v3270 = vand.u32 %v3234, 4294901760
        %3271 = vmatpush1.msra.mxu0 %v3270
        %3272 = vmatprep.subr.mxu0 0.0
        %v3273 = vand.u32 %v3233, 4294901760
        %3274 = vmatpush1.msra.mxu0 %v3273
        %3275 = vmatprep.subr.mxu0 0.0
        %v3276 = vand.u32 %v3232, 4294901760
        %3277 = vmatpush1.msra.mxu0 %v3276
        %3278 = vmatprep.subr.mxu0 0.0
        %3279 = vmatpush2.msra.mxu0 0.0
        %3280 = vmatprep.subr.mxu0 0.0
        %3281 = vmatpush2.msra.mxu0 0.0
        %3282 = vmatprep.subr.mxu0 0.0
        %3283 = vmatpush2.msra.mxu0 0.0
        %3284 = vmatprep.subr.mxu0 0.0
        %3285 = vmatpush2.msra.mxu0 0.0
        %3286 = vmatprep.subr.mxu0 0.0
        %3287 = vmatpush2.msra.mxu0 0.0
        %3288 = vmatprep.subr.mxu0 0.0
        %3289 = vmatpush2.msra.mxu0 0.0
        %3290 = vmatprep.subr.mxu0 0.0
        %3291 = vmatpush2.msra.mxu0 0.0
        %3292 = vmatprep.subr.mxu0 0.0
        %3293 = vmatpush2.msra.mxu0 0.0
        %3294 = vmatprep.subr.mxu0 0.0
        %3295 = vmatpush2.msra.mxu0 0.0
        %3296 = vmatprep.subr.mxu0 0.0
        %3297 = vmatpush2.msra.mxu0 0.0
        %3298 = vmatprep.subr.mxu0 0.0
        %3299 = vmatpush2.msra.mxu0 0.0
        %3300 = vmatprep.subr.mxu0 0.0
        %3301 = vmatpush2.msra.mxu0 0.0
        %3302 = vmatprep.subr.mxu0 0.0
        %3303 = vmatpush2.msra.mxu0 0.0
        %3304 = vmatprep.subr.mxu0 0.0
        %3305 = vmatpush2.msra.mxu0 0.0
        %3306 = vmatprep.subr.mxu0 0.0
        %3307 = vmatpush2.msra.mxu0 0.0
        %3308 = vmatprep.subr.mxu0 0.0
        %3309 = vmatpush2.msra.mxu0 0.0
        %3310 = vmatprep.mubr.f32.mxu0 0.0
        %v3311 = vand.u32 %v3237, 4294901760
        %v3312 = vsub.f32 %v3237, %v3311
        %v3313 = vand.u32 %v3312, 4294901760
        %v3314 = vsub.f32 %v3312, %v3313
        %v3315 = vand.u32 %v3314, 4294901760
        %3316 = vmatmul.mubr.f32.gmra.mxu0 %v3315
        %v3317 = vpop.f32.mrf.mxu0
        %v3318 = vadd.f32 0.0, %v3317
        %v3319 = vpop.f32.mrf.mxu0
        %3320 = vmatprep.mubr.f32.mxu0 0.0
        %v3321 = vand.u32 %v3240, 4294901760
        %v3322 = vsub.f32 %v3240, %v3321
        %v3323 = vand.u32 %v3322, 4294901760
        %v3324 = vsub.f32 %v3322, %v3323
        %v3325 = vand.u32 %v3324, 4294901760
        %3326 = vmatmul.mubr.f32.gmra.mxu0 %v3325
        %v3327 = vpop.f32.mrf.mxu0
        %v3328 = vadd.f32 0.0, %v3327
        %v3329 = vpop.f32.mrf.mxu0
        %3330 = vdwg.mxu0
        %3331 = vmatprep.subr.mxu0 0.0
        %3332 = vmatpush1.msra.mxu0 0.0
        %3333 = vmatprep.subr.mxu0 0.0
        %3334 = vmatpush1.msra.mxu0 0.0
        %3335 = vmatprep.subr.mxu0 0.0
        %3336 = vmatpush1.msra.mxu0 0.0
        %3337 = vmatprep.subr.mxu0 0.0
        %3338 = vmatpush1.msra.mxu0 0.0
        %3339 = vmatprep.subr.mxu0 0.0
        %3340 = vmatpush1.msra.mxu0 0.0
        %3341 = vmatprep.subr.mxu0 0.0
        %3342 = vmatpush1.msra.mxu0 0.0
        %3343 = vmatprep.subr.mxu0 0.0
        %3344 = vmatpush1.msra.mxu0 0.0
        %3345 = vmatprep.subr.mxu0 0.0
        %3346 = vmatpush1.msra.mxu0 0.0
        %3347 = vmatprep.subr.mxu0 0.0
        %3348 = vmatpush1.msra.mxu0 0.0
        %3349 = vmatprep.subr.mxu0 0.0
        %3350 = vmatpush1.msra.mxu0 0.0
        %3351 = vmatprep.subr.mxu0 0.0
        %3352 = vmatpush1.msra.mxu0 0.0
        %3353 = vmatprep.subr.mxu0 0.0
        %3354 = vmatpush1.msra.mxu0 0.0
        %3355 = vmatprep.subr.mxu0 0.0
        %v3356 = vand.u32 %v3235, 4294901760
        %v3357 = vsub.f32 %v3235, %v3356
        %v3358 = vand.u32 %v3357, 4294901760
        %v3359 = vsub.f32 %v3357, %v3358
        %v3360 = vand.u32 %v3359, 4294901760
        %3361 = vmatpush1.msra.mxu0 %v3360
        %3362 = vmatprep.subr.mxu0 0.0
        %v3363 = vand.u32 %v3234, 4294901760
        %v3364 = vsub.f32 %v3234, %v3363
        %v3365 = vand.u32 %v3364, 4294901760
        %v3366 = vsub.f32 %v3364, %v3365
        %v3367 = vand.u32 %v3366, 4294901760
        %3368 = vmatpush1.msra.mxu0 %v3367
        %3369 = vmatprep.subr.mxu0 0.0
        %v3370 = vand.u32 %v3233, 4294901760
        %v3371 = vsub.f32 %v3233, %v3370
        %v3372 = vand.u32 %v3371, 4294901760
        %v3373 = vsub.f32 %v3371, %v3372
        %v3374 = vand.u32 %v3373, 4294901760
        %3375 = vmatpush1.msra.mxu0 %v3374
        %3376 = vmatprep.subr.mxu0 0.0
        %v3377 = vand.u32 %v3232, 4294901760
        %v3378 = vsub.f32 %v3232, %v3377
        %v3379 = vand.u32 %v3378, 4294901760
        %v3380 = vsub.f32 %v3378, %v3379
        %v3381 = vand.u32 %v3380, 4294901760
        %3382 = vmatpush1.msra.mxu0 %v3381
        %3383 = vmatprep.subr.mxu0 0.0
        %3384 = vmatpush2.msra.mxu0 0.0
        %3385 = vmatprep.subr.mxu0 0.0
        %3386 = vmatpush2.msra.mxu0 0.0
        %3387 = vmatprep.subr.mxu0 0.0
        %3388 = vmatpush2.msra.mxu0 0.0
        %3389 = vmatprep.subr.mxu0 0.0
        %3390 = vmatpush2.msra.mxu0 0.0
        %3391 = vmatprep.subr.mxu0 0.0
        %3392 = vmatpush2.msra.mxu0 0.0
        %3393 = vmatprep.subr.mxu0 0.0
        %3394 = vmatpush2.msra.mxu0 0.0
        %3395 = vmatprep.subr.mxu0 0.0
        %3396 = vmatpush2.msra.mxu0 0.0
        %3397 = vmatprep.subr.mxu0 0.0
        %3398 = vmatpush2.msra.mxu0 0.0
        %3399 = vmatprep.subr.mxu0 0.0
        %3400 = vmatpush2.msra.mxu0 0.0
        %3401 = vmatprep.subr.mxu0 0.0
        %3402 = vmatpush2.msra.mxu0 0.0
        %3403 = vmatprep.subr.mxu0 0.0
        %3404 = vmatpush2.msra.mxu0 0.0
        %3405 = vmatprep.subr.mxu0 0.0
        %3406 = vmatpush2.msra.mxu0 0.0
        %3407 = vmatprep.subr.mxu0 0.0
        %3408 = vmatpush2.msra.mxu0 0.0
        %3409 = vmatprep.subr.mxu0 0.0
        %3410 = vmatpush2.msra.mxu0 0.0
        %3411 = vmatprep.subr.mxu0 0.0
        %3412 = vmatpush2.msra.mxu0 0.0
        %3413 = vmatprep.subr.mxu0 0.0
        %3414 = vmatpush2.msra.mxu0 0.0
        %3415 = vmatprep.mubr.f32.mxu0 0.0
        %v3416 = vand.u32 %v3237, 4294901760
        %3417 = vmatmul.mubr.f32.gmra.mxu0 %v3416
        %v3418 = vpop.f32.mrf.mxu0
        %v3419 = vadd.f32 %v3318, %v3418
        %v3420 = vpop.f32.mrf.mxu0
        %3421 = vmatprep.mubr.f32.mxu0 0.0
        %v3422 = vand.u32 %v3240, 4294901760
        %3423 = vmatmul.mubr.f32.gmra.mxu0 %v3422
        %v3424 = vpop.f32.mrf.mxu0
        %v3425 = vadd.f32 %v3328, %v3424
        %v3426 = vpop.f32.mrf.mxu0
        %3427 = vdwg.mxu0
        %3428 = vmatprep.subr.mxu0 0.0
        %3429 = vmatpush1.msra.mxu0 0.0
        %3430 = vmatprep.subr.mxu0 0.0
        %3431 = vmatpush1.msra.mxu0 0.0
        %3432 = vmatprep.subr.mxu0 0.0
        %3433 = vmatpush1.msra.mxu0 0.0
        %3434 = vmatprep.subr.mxu0 0.0
        %3435 = vmatpush1.msra.mxu0 0.0
        %3436 = vmatprep.subr.mxu0 0.0
        %3437 = vmatpush1.msra.mxu0 0.0
        %3438 = vmatprep.subr.mxu0 0.0
        %3439 = vmatpush1.msra.mxu0 0.0
        %3440 = vmatprep.subr.mxu0 0.0
        %3441 = vmatpush1.msra.mxu0 0.0
        %3442 = vmatprep.subr.mxu0 0.0
        %3443 = vmatpush1.msra.mxu0 0.0
        %3444 = vmatprep.subr.mxu0 0.0
        %3445 = vmatpush1.msra.mxu0 0.0
        %3446 = vmatprep.subr.mxu0 0.0
        %3447 = vmatpush1.msra.mxu0 0.0
        %3448 = vmatprep.subr.mxu0 0.0
        %3449 = vmatpush1.msra.mxu0 0.0
        %3450 = vmatprep.subr.mxu0 0.0
        %3451 = vmatpush1.msra.mxu0 0.0
        %3452 = vmatprep.subr.mxu0 0.0
        %v3453 = vand.u32 %v3235, 4294901760
        %v3454 = vsub.f32 %v3235, %v3453
        %3455 = vmatpush1.msra.mxu0 %v3454
        %3456 = vmatprep.subr.mxu0 0.0
        %v3457 = vand.u32 %v3234, 4294901760
        %v3458 = vsub.f32 %v3234, %v3457
        %3459 = vmatpush1.msra.mxu0 %v3458
        %3460 = vmatprep.subr.mxu0 0.0
        %v3461 = vand.u32 %v3233, 4294901760
        %v3462 = vsub.f32 %v3233, %v3461
        %3463 = vmatpush1.msra.mxu0 %v3462
        %3464 = vmatprep.subr.mxu0 0.0
        %v3465 = vand.u32 %v3232, 4294901760
        %v3466 = vsub.f32 %v3232, %v3465
        %3467 = vmatpush1.msra.mxu0 %v3466
        %3468 = vmatprep.subr.mxu0 0.0
        %3469 = vmatpush2.msra.mxu0 0.0
        %3470 = vmatprep.subr.mxu0 0.0
        %3471 = vmatpush2.msra.mxu0 0.0
        %3472 = vmatprep.subr.mxu0 0.0
        %3473 = vmatpush2.msra.mxu0 0.0
        %3474 = vmatprep.subr.mxu0 0.0
        %3475 = vmatpush2.msra.mxu0 0.0
        %3476 = vmatprep.subr.mxu0 0.0
        %3477 = vmatpush2.msra.mxu0 0.0
        %3478 = vmatprep.subr.mxu0 0.0
        %3479 = vmatpush2.msra.mxu0 0.0
        %3480 = vmatprep.subr.mxu0 0.0
        %3481 = vmatpush2.msra.mxu0 0.0
        %3482 = vmatprep.subr.mxu0 0.0
        %3483 = vmatpush2.msra.mxu0 0.0
        %3484 = vmatprep.subr.mxu0 0.0
        %3485 = vmatpush2.msra.mxu0 0.0
        %3486 = vmatprep.subr.mxu0 0.0
        %3487 = vmatpush2.msra.mxu0 0.0
        %3488 = vmatprep.subr.mxu0 0.0
        %3489 = vmatpush2.msra.mxu0 0.0
        %3490 = vmatprep.subr.mxu0 0.0
        %3491 = vmatpush2.msra.mxu0 0.0
        %3492 = vmatprep.subr.mxu0 0.0
        %3493 = vmatpush2.msra.mxu0 0.0
        %3494 = vmatprep.subr.mxu0 0.0
        %3495 = vmatpush2.msra.mxu0 0.0
        %3496 = vmatprep.subr.mxu0 0.0
        %3497 = vmatpush2.msra.mxu0 0.0
        %3498 = vmatprep.subr.mxu0 0.0
        %3499 = vmatpush2.msra.mxu0 0.0
        %3500 = vmatprep.mubr.f32.mxu0 0.0
        %v3501 = vand.u32 %v3237, 4294901760
        %v3502 = vsub.f32 %v3237, %v3501
        %3503 = vmatmul.mubr.f32.gmra.mxu0 %v3502
        %v3504 = vpop.f32.mrf.mxu0
        %v3505 = vadd.f32 %v3419, %v3504
        %v3506 = vpop.f32.mrf.mxu0
        %3507 = vmatprep.mubr.f32.mxu0 0.0
        %v3508 = vand.u32 %v3240, 4294901760
        %v3509 = vsub.f32 %v3240, %v3508
        %3510 = vmatmul.mubr.f32.gmra.mxu0 %v3509
        %v3511 = vpop.f32.mrf.mxu0
        %v3512 = vadd.f32 %v3425, %v3511
        %v3513 = vpop.f32.mrf.mxu0
        %3514 = vdwg.mxu0
        %3515 = vmatprep.subr.mxu0 0.0
        %3516 = vmatpush1.msra.mxu0 0.0
        %3517 = vmatprep.subr.mxu0 0.0
        %3518 = vmatpush1.msra.mxu0 0.0
        %3519 = vmatprep.subr.mxu0 0.0
        %3520 = vmatpush1.msra.mxu0 0.0
        %3521 = vmatprep.subr.mxu0 0.0
        %3522 = vmatpush1.msra.mxu0 0.0
        %3523 = vmatprep.subr.mxu0 0.0
        %3524 = vmatpush1.msra.mxu0 0.0
        %3525 = vmatprep.subr.mxu0 0.0
        %3526 = vmatpush1.msra.mxu0 0.0
        %3527 = vmatprep.subr.mxu0 0.0
        %3528 = vmatpush1.msra.mxu0 0.0
        %3529 = vmatprep.subr.mxu0 0.0
        %3530 = vmatpush1.msra.mxu0 0.0
        %3531 = vmatprep.subr.mxu0 0.0
        %3532 = vmatpush1.msra.mxu0 0.0
        %3533 = vmatprep.subr.mxu0 0.0
        %3534 = vmatpush1.msra.mxu0 0.0
        %3535 = vmatprep.subr.mxu0 0.0
        %3536 = vmatpush1.msra.mxu0 0.0
        %3537 = vmatprep.subr.mxu0 0.0
        %3538 = vmatpush1.msra.mxu0 0.0
        %3539 = vmatprep.subr.mxu0 0.0
        %v3540 = vand.u32 %v3235, 4294901760
        %3541 = vmatpush1.msra.mxu0 %v3540
        %3542 = vmatprep.subr.mxu0 0.0
        %v3543 = vand.u32 %v3234, 4294901760
        %3544 = vmatpush1.msra.mxu0 %v3543
        %3545 = vmatprep.subr.mxu0 0.0
        %v3546 = vand.u32 %v3233, 4294901760
        %3547 = vmatpush1.msra.mxu0 %v3546
        %3548 = vmatprep.subr.mxu0 0.0
        %v3549 = vand.u32 %v3232, 4294901760
        %3550 = vmatpush1.msra.mxu0 %v3549
        %3551 = vmatprep.subr.mxu0 0.0
        %3552 = vmatpush2.msra.mxu0 0.0
        %3553 = vmatprep.subr.mxu0 0.0
        %3554 = vmatpush2.msra.mxu0 0.0
        %3555 = vmatprep.subr.mxu0 0.0
        %3556 = vmatpush2.msra.mxu0 0.0
        %3557 = vmatprep.subr.mxu0 0.0
        %3558 = vmatpush2.msra.mxu0 0.0
        %3559 = vmatprep.subr.mxu0 0.0
        %3560 = vmatpush2.msra.mxu0 0.0
        %3561 = vmatprep.subr.mxu0 0.0
        %3562 = vmatpush2.msra.mxu0 0.0
        %3563 = vmatprep.subr.mxu0 0.0
        %3564 = vmatpush2.msra.mxu0 0.0
        %3565 = vmatprep.subr.mxu0 0.0
        %3566 = vmatpush2.msra.mxu0 0.0
        %3567 = vmatprep.subr.mxu0 0.0
        %3568 = vmatpush2.msra.mxu0 0.0
        %3569 = vmatprep.subr.mxu0 0.0
        %3570 = vmatpush2.msra.mxu0 0.0
        %3571 = vmatprep.subr.mxu0 0.0
        %3572 = vmatpush2.msra.mxu0 0.0
        %3573 = vmatprep.subr.mxu0 0.0
        %3574 = vmatpush2.msra.mxu0 0.0
        %3575 = vmatprep.subr.mxu0 0.0
        %3576 = vmatpush2.msra.mxu0 0.0
        %3577 = vmatprep.subr.mxu0 0.0
        %3578 = vmatpush2.msra.mxu0 0.0
        %3579 = vmatprep.subr.mxu0 0.0
        %3580 = vmatpush2.msra.mxu0 0.0
        %3581 = vmatprep.subr.mxu0 0.0
        %3582 = vmatpush2.msra.mxu0 0.0
        %3583 = vmatprep.mubr.f32.mxu0 0.0
        %v3584 = vand.u32 %v3237, 4294901760
        %v3585 = vsub.f32 %v3237, %v3584
        %v3586 = vand.u32 %v3585, 4294901760
        %3587 = vmatmul.mubr.f32.gmra.mxu0 %v3586
        %v3588 = vpop.f32.mrf.mxu0
        %v3589 = vadd.f32 %v3505, %v3588
        %v3590 = vpop.f32.mrf.mxu0
        %3591 = vmatprep.mubr.f32.mxu0 0.0
        %v3592 = vand.u32 %v3240, 4294901760
        %v3593 = vsub.f32 %v3240, %v3592
        %v3594 = vand.u32 %v3593, 4294901760
        %3595 = vmatmul.mubr.f32.gmra.mxu0 %v3594
        %v3596 = vpop.f32.mrf.mxu0
        %v3597 = vadd.f32 %v3512, %v3596
        %v3598 = vpop.f32.mrf.mxu0
        %3599 = vdwg.mxu0
        %3600 = vmatprep.subr.mxu0 0.0
        %3601 = vmatpush1.msra.mxu0 0.0
        %3602 = vmatprep.subr.mxu0 0.0
        %3603 = vmatpush1.msra.mxu0 0.0
        %3604 = vmatprep.subr.mxu0 0.0
        %3605 = vmatpush1.msra.mxu0 0.0
        %3606 = vmatprep.subr.mxu0 0.0
        %3607 = vmatpush1.msra.mxu0 0.0
        %3608 = vmatprep.subr.mxu0 0.0
        %3609 = vmatpush1.msra.mxu0 0.0
        %3610 = vmatprep.subr.mxu0 0.0
        %3611 = vmatpush1.msra.mxu0 0.0
        %3612 = vmatprep.subr.mxu0 0.0
        %3613 = vmatpush1.msra.mxu0 0.0
        %3614 = vmatprep.subr.mxu0 0.0
        %3615 = vmatpush1.msra.mxu0 0.0
        %3616 = vmatprep.subr.mxu0 0.0
        %3617 = vmatpush1.msra.mxu0 0.0
        %3618 = vmatprep.subr.mxu0 0.0
        %3619 = vmatpush1.msra.mxu0 0.0
        %3620 = vmatprep.subr.mxu0 0.0
        %3621 = vmatpush1.msra.mxu0 0.0
        %3622 = vmatprep.subr.mxu0 0.0
        %3623 = vmatpush1.msra.mxu0 0.0
        %3624 = vmatprep.subr.mxu0 0.0
        %v3625 = vand.u32 %v3235, 4294901760
        %v3626 = vsub.f32 %v3235, %v3625
        %v3627 = vand.u32 %v3626, 4294901760
        %3628 = vmatpush1.msra.mxu0 %v3627
        %3629 = vmatprep.subr.mxu0 0.0
        %v3630 = vand.u32 %v3234, 4294901760
        %v3631 = vsub.f32 %v3234, %v3630
        %v3632 = vand.u32 %v3631, 4294901760
        %3633 = vmatpush1.msra.mxu0 %v3632
        %3634 = vmatprep.subr.mxu0 0.0
        %v3635 = vand.u32 %v3233, 4294901760
        %v3636 = vsub.f32 %v3233, %v3635
        %v3637 = vand.u32 %v3636, 4294901760
        %3638 = vmatpush1.msra.mxu0 %v3637
        %3639 = vmatprep.subr.mxu0 0.0
        %v3640 = vand.u32 %v3232, 4294901760
        %v3641 = vsub.f32 %v3232, %v3640
        %v3642 = vand.u32 %v3641, 4294901760
        %3643 = vmatpush1.msra.mxu0 %v3642
        %3644 = vmatprep.subr.mxu0 0.0
        %3645 = vmatpush2.msra.mxu0 0.0
        %3646 = vmatprep.subr.mxu0 0.0
        %3647 = vmatpush2.msra.mxu0 0.0
        %3648 = vmatprep.subr.mxu0 0.0
        %3649 = vmatpush2.msra.mxu0 0.0
        %3650 = vmatprep.subr.mxu0 0.0
        %3651 = vmatpush2.msra.mxu0 0.0
        %3652 = vmatprep.subr.mxu0 0.0
        %3653 = vmatpush2.msra.mxu0 0.0
        %3654 = vmatprep.subr.mxu0 0.0
        %3655 = vmatpush2.msra.mxu0 0.0
        %3656 = vmatprep.subr.mxu0 0.0
        %3657 = vmatpush2.msra.mxu0 0.0
        %3658 = vmatprep.subr.mxu0 0.0
        %3659 = vmatpush2.msra.mxu0 0.0
        %3660 = vmatprep.subr.mxu0 0.0
        %3661 = vmatpush2.msra.mxu0 0.0
        %3662 = vmatprep.subr.mxu0 0.0
        %3663 = vmatpush2.msra.mxu0 0.0
        %3664 = vmatprep.subr.mxu0 0.0
        %3665 = vmatpush2.msra.mxu0 0.0
        %3666 = vmatprep.subr.mxu0 0.0
        %3667 = vmatpush2.msra.mxu0 0.0
        %3668 = vmatprep.subr.mxu0 0.0
        %3669 = vmatpush2.msra.mxu0 0.0
        %3670 = vmatprep.subr.mxu0 0.0
        %3671 = vmatpush2.msra.mxu0 0.0
        %3672 = vmatprep.subr.mxu0 0.0
        %3673 = vmatpush2.msra.mxu0 0.0
        %3674 = vmatprep.subr.mxu0 0.0
        %3675 = vmatpush2.msra.mxu0 0.0
        %3676 = vmatprep.mubr.f32.mxu0 0.0
        %v3677 = vand.u32 %v3237, 4294901760
        %3678 = vmatmul.mubr.f32.gmra.mxu0 %v3677
        %v3679 = vpop.f32.mrf.mxu0
        %v3680 = vadd.f32 %v3589, %v3679
        %v3681 = vpop.f32.mrf.mxu0
        %3682 = vmatprep.mubr.f32.mxu0 0.0
        %v3683 = vand.u32 %v3240, 4294901760
        %3684 = vmatmul.mubr.f32.gmra.mxu0 %v3683
        %v3685 = vpop.f32.mrf.mxu0
        %v3686 = vadd.f32 %v3597, %v3685
        %v3687 = vpop.f32.mrf.mxu0
        %3688 = vdwg.mxu0
        %3689 = vmatprep.subr.mxu0 0.0
        %3690 = vmatpush1.msra.mxu0 0.0
        %3691 = vmatprep.subr.mxu0 0.0
        %3692 = vmatpush1.msra.mxu0 0.0
        %3693 = vmatprep.subr.mxu0 0.0
        %3694 = vmatpush1.msra.mxu0 0.0
        %3695 = vmatprep.subr.mxu0 0.0
        %3696 = vmatpush1.msra.mxu0 0.0
        %3697 = vmatprep.subr.mxu0 0.0
        %3698 = vmatpush1.msra.mxu0 0.0
        %3699 = vmatprep.subr.mxu0 0.0
        %3700 = vmatpush1.msra.mxu0 0.0
        %3701 = vmatprep.subr.mxu0 0.0
        %3702 = vmatpush1.msra.mxu0 0.0
        %3703 = vmatprep.subr.mxu0 0.0
        %3704 = vmatpush1.msra.mxu0 0.0
        %3705 = vmatprep.subr.mxu0 0.0
        %3706 = vmatpush1.msra.mxu0 0.0
        %3707 = vmatprep.subr.mxu0 0.0
        %3708 = vmatpush1.msra.mxu0 0.0
        %3709 = vmatprep.subr.mxu0 0.0
        %3710 = vmatpush1.msra.mxu0 0.0
        %3711 = vmatprep.subr.mxu0 0.0
        %3712 = vmatpush1.msra.mxu0 0.0
        %3713 = vmatprep.subr.mxu0 0.0
        %v3714 = vand.u32 %v3235, 4294901760
        %3715 = vmatpush1.msra.mxu0 %v3714
        %3716 = vmatprep.subr.mxu0 0.0
        %v3717 = vand.u32 %v3234, 4294901760
        %3718 = vmatpush1.msra.mxu0 %v3717
        %3719 = vmatprep.subr.mxu0 0.0
        %v3720 = vand.u32 %v3233, 4294901760
        %3721 = vmatpush1.msra.mxu0 %v3720
        %3722 = vmatprep.subr.mxu0 0.0
        %v3723 = vand.u32 %v3232, 4294901760
        %3724 = vmatpush1.msra.mxu0 %v3723
        %3725 = vmatprep.subr.mxu0 0.0
        %3726 = vmatpush2.msra.mxu0 0.0
        %3727 = vmatprep.subr.mxu0 0.0
        %3728 = vmatpush2.msra.mxu0 0.0
        %3729 = vmatprep.subr.mxu0 0.0
        %3730 = vmatpush2.msra.mxu0 0.0
        %3731 = vmatprep.subr.mxu0 0.0
        %3732 = vmatpush2.msra.mxu0 0.0
        %3733 = vmatprep.subr.mxu0 0.0
        %3734 = vmatpush2.msra.mxu0 0.0
        %3735 = vmatprep.subr.mxu0 0.0
        %3736 = vmatpush2.msra.mxu0 0.0
        %3737 = vmatprep.subr.mxu0 0.0
        %3738 = vmatpush2.msra.mxu0 0.0
        %3739 = vmatprep.subr.mxu0 0.0
        %3740 = vmatpush2.msra.mxu0 0.0
        %3741 = vmatprep.subr.mxu0 0.0
        %3742 = vmatpush2.msra.mxu0 0.0
        %3743 = vmatprep.subr.mxu0 0.0
        %3744 = vmatpush2.msra.mxu0 0.0
        %3745 = vmatprep.subr.mxu0 0.0
        %3746 = vmatpush2.msra.mxu0 0.0
        %3747 = vmatprep.subr.mxu0 0.0
        %3748 = vmatpush2.msra.mxu0 0.0
        %3749 = vmatprep.subr.mxu0 0.0
        %3750 = vmatpush2.msra.mxu0 0.0
        %3751 = vmatprep.subr.mxu0 0.0
        %3752 = vmatpush2.msra.mxu0 0.0
        %3753 = vmatprep.subr.mxu0 0.0
        %3754 = vmatpush2.msra.mxu0 0.0
        %3755 = vmatprep.subr.mxu0 0.0
        %3756 = vmatpush2.msra.mxu0 0.0
        %3757 = vmatprep.mubr.f32.mxu0 0.0
        %v3758 = vand.u32 %v3237, 4294901760
        %3759 = vmatmul.mubr.f32.gmra.mxu0 %v3758
        %v3760 = vpop.f32.mrf.mxu0
        %v3761 = vadd.f32 %v3680, %v3760
        %v3762 = vpop.f32.mrf.mxu0
        %3763 = vmatprep.mubr.f32.mxu0 0.0
        %v3764 = vand.u32 %v3240, 4294901760
        %3765 = vmatmul.mubr.f32.gmra.mxu0 %v3764
        %v3766 = vpop.f32.mrf.mxu0
        %v3767 = vadd.f32 %v3686, %v3766
        %v3768 = vpop.f32.mrf.mxu0
        %3769 = vdwg.mxu0
        %v3770 = vadd.f32 %v3227, %v3761
        %v3771 = vadd.f32 %v3228, %v3767
        %v3772 = vld [vmem:[#allocation2 + $0x6] sm:$0xff]
        %v3773 = vld [vmem:[#allocation2 + $0xe] sm:$0xff]
        %s3774 = scalar_lea.vmem %s1, 192
        %v3775 = vld [vmem:[%s3774] sm:$0xff]
        %v3776 = vld [vmem:[%s3774 + $0x8] sm:$0xff]
        %v3777 = vld [vmem:[%s3774 + $0x10] sm:$0xff]
        %v3778 = vld [vmem:[%s3774 + $0x18] sm:$0xff]
        %v3780 = vsel %vm531, %v3772, 0
        %v3783 = vsel %vm531, %v3773, 0
        %3785 = vmatprep.subr.mxu0 0.0
        %3786 = vmatpush1.msra.mxu0 0.0
        %3787 = vmatprep.subr.mxu0 0.0
        %3788 = vmatpush1.msra.mxu0 0.0
        %3789 = vmatprep.subr.mxu0 0.0
        %3790 = vmatpush1.msra.mxu0 0.0
        %3791 = vmatprep.subr.mxu0 0.0
        %3792 = vmatpush1.msra.mxu0 0.0
        %3793 = vmatprep.subr.mxu0 0.0
        %3794 = vmatpush1.msra.mxu0 0.0
        %3795 = vmatprep.subr.mxu0 0.0
        %3796 = vmatpush1.msra.mxu0 0.0
        %3797 = vmatprep.subr.mxu0 0.0
        %3798 = vmatpush1.msra.mxu0 0.0
        %3799 = vmatprep.subr.mxu0 0.0
        %3800 = vmatpush1.msra.mxu0 0.0
        %3801 = vmatprep.subr.mxu0 0.0
        %3802 = vmatpush1.msra.mxu0 0.0
        %3803 = vmatprep.subr.mxu0 0.0
        %3804 = vmatpush1.msra.mxu0 0.0
        %3805 = vmatprep.subr.mxu0 0.0
        %3806 = vmatpush1.msra.mxu0 0.0
        %3807 = vmatprep.subr.mxu0 0.0
        %3808 = vmatpush1.msra.mxu0 0.0
        %3809 = vmatprep.subr.mxu0 0.0
        %v3810 = vand.u32 %v3778, 4294901760
        %3811 = vmatpush1.msra.mxu0 %v3810
        %3812 = vmatprep.subr.mxu0 0.0
        %v3813 = vand.u32 %v3777, 4294901760
        %3814 = vmatpush1.msra.mxu0 %v3813
        %3815 = vmatprep.subr.mxu0 0.0
        %v3816 = vand.u32 %v3776, 4294901760
        %3817 = vmatpush1.msra.mxu0 %v3816
        %3818 = vmatprep.subr.mxu0 0.0
        %v3819 = vand.u32 %v3775, 4294901760
        %3820 = vmatpush1.msra.mxu0 %v3819
        %3821 = vmatprep.subr.mxu0 0.0
        %3822 = vmatpush2.msra.mxu0 0.0
        %3823 = vmatprep.subr.mxu0 0.0
        %3824 = vmatpush2.msra.mxu0 0.0
        %3825 = vmatprep.subr.mxu0 0.0
        %3826 = vmatpush2.msra.mxu0 0.0
        %3827 = vmatprep.subr.mxu0 0.0
        %3828 = vmatpush2.msra.mxu0 0.0
        %3829 = vmatprep.subr.mxu0 0.0
        %3830 = vmatpush2.msra.mxu0 0.0
        %3831 = vmatprep.subr.mxu0 0.0
        %3832 = vmatpush2.msra.mxu0 0.0
        %3833 = vmatprep.subr.mxu0 0.0
        %3834 = vmatpush2.msra.mxu0 0.0
        %3835 = vmatprep.subr.mxu0 0.0
        %3836 = vmatpush2.msra.mxu0 0.0
        %3837 = vmatprep.subr.mxu0 0.0
        %3838 = vmatpush2.msra.mxu0 0.0
        %3839 = vmatprep.subr.mxu0 0.0
        %3840 = vmatpush2.msra.mxu0 0.0
        %3841 = vmatprep.subr.mxu0 0.0
        %3842 = vmatpush2.msra.mxu0 0.0
        %3843 = vmatprep.subr.mxu0 0.0
        %3844 = vmatpush2.msra.mxu0 0.0
        %3845 = vmatprep.subr.mxu0 0.0
        %3846 = vmatpush2.msra.mxu0 0.0
        %3847 = vmatprep.subr.mxu0 0.0
        %3848 = vmatpush2.msra.mxu0 0.0
        %3849 = vmatprep.subr.mxu0 0.0
        %3850 = vmatpush2.msra.mxu0 0.0
        %3851 = vmatprep.subr.mxu0 0.0
        %3852 = vmatpush2.msra.mxu0 0.0
        %3853 = vmatprep.mubr.f32.mxu0 0.0
        %v3854 = vand.u32 %v3780, 4294901760
        %v3855 = vsub.f32 %v3780, %v3854
        %v3856 = vand.u32 %v3855, 4294901760
        %v3857 = vsub.f32 %v3855, %v3856
        %v3858 = vand.u32 %v3857, 4294901760
        %3859 = vmatmul.mubr.f32.gmra.mxu0 %v3858
        %v3860 = vpop.f32.mrf.mxu0
        %v3861 = vadd.f32 0.0, %v3860
        %v3862 = vpop.f32.mrf.mxu0
        %3863 = vmatprep.mubr.f32.mxu0 0.0
        %v3864 = vand.u32 %v3783, 4294901760
        %v3865 = vsub.f32 %v3783, %v3864
        %v3866 = vand.u32 %v3865, 4294901760
        %v3867 = vsub.f32 %v3865, %v3866
        %v3868 = vand.u32 %v3867, 4294901760
        %3869 = vmatmul.mubr.f32.gmra.mxu0 %v3868
        %v3870 = vpop.f32.mrf.mxu0
        %v3871 = vadd.f32 0.0, %v3870
        %v3872 = vpop.f32.mrf.mxu0
        %3873 = vdwg.mxu0
        %3874 = vmatprep.subr.mxu0 0.0
        %3875 = vmatpush1.msra.mxu0 0.0
        %3876 = vmatprep.subr.mxu0 0.0
        %3877 = vmatpush1.msra.mxu0 0.0
        %3878 = vmatprep.subr.mxu0 0.0
        %3879 = vmatpush1.msra.mxu0 0.0
        %3880 = vmatprep.subr.mxu0 0.0
        %3881 = vmatpush1.msra.mxu0 0.0
        %3882 = vmatprep.subr.mxu0 0.0
        %3883 = vmatpush1.msra.mxu0 0.0
        %3884 = vmatprep.subr.mxu0 0.0
        %3885 = vmatpush1.msra.mxu0 0.0
        %3886 = vmatprep.subr.mxu0 0.0
        %3887 = vmatpush1.msra.mxu0 0.0
        %3888 = vmatprep.subr.mxu0 0.0
        %3889 = vmatpush1.msra.mxu0 0.0
        %3890 = vmatprep.subr.mxu0 0.0
        %3891 = vmatpush1.msra.mxu0 0.0
        %3892 = vmatprep.subr.mxu0 0.0
        %3893 = vmatpush1.msra.mxu0 0.0
        %3894 = vmatprep.subr.mxu0 0.0
        %3895 = vmatpush1.msra.mxu0 0.0
        %3896 = vmatprep.subr.mxu0 0.0
        %3897 = vmatpush1.msra.mxu0 0.0
        %3898 = vmatprep.subr.mxu0 0.0
        %v3899 = vand.u32 %v3778, 4294901760
        %v3900 = vsub.f32 %v3778, %v3899
        %v3901 = vand.u32 %v3900, 4294901760
        %v3902 = vsub.f32 %v3900, %v3901
        %v3903 = vand.u32 %v3902, 4294901760
        %3904 = vmatpush1.msra.mxu0 %v3903
        %3905 = vmatprep.subr.mxu0 0.0
        %v3906 = vand.u32 %v3777, 4294901760
        %v3907 = vsub.f32 %v3777, %v3906
        %v3908 = vand.u32 %v3907, 4294901760
        %v3909 = vsub.f32 %v3907, %v3908
        %v3910 = vand.u32 %v3909, 4294901760
        %3911 = vmatpush1.msra.mxu0 %v3910
        %3912 = vmatprep.subr.mxu0 0.0
        %v3913 = vand.u32 %v3776, 4294901760
        %v3914 = vsub.f32 %v3776, %v3913
        %v3915 = vand.u32 %v3914, 4294901760
        %v3916 = vsub.f32 %v3914, %v3915
        %v3917 = vand.u32 %v3916, 4294901760
        %3918 = vmatpush1.msra.mxu0 %v3917
        %3919 = vmatprep.subr.mxu0 0.0
        %v3920 = vand.u32 %v3775, 4294901760
        %v3921 = vsub.f32 %v3775, %v3920
        %v3922 = vand.u32 %v3921, 4294901760
        %v3923 = vsub.f32 %v3921, %v3922
        %v3924 = vand.u32 %v3923, 4294901760
        %3925 = vmatpush1.msra.mxu0 %v3924
        %3926 = vmatprep.subr.mxu0 0.0
        %3927 = vmatpush2.msra.mxu0 0.0
        %3928 = vmatprep.subr.mxu0 0.0
        %3929 = vmatpush2.msra.mxu0 0.0
        %3930 = vmatprep.subr.mxu0 0.0
        %3931 = vmatpush2.msra.mxu0 0.0
        %3932 = vmatprep.subr.mxu0 0.0
        %3933 = vmatpush2.msra.mxu0 0.0
        %3934 = vmatprep.subr.mxu0 0.0
        %3935 = vmatpush2.msra.mxu0 0.0
        %3936 = vmatprep.subr.mxu0 0.0
        %3937 = vmatpush2.msra.mxu0 0.0
        %3938 = vmatprep.subr.mxu0 0.0
        %3939 = vmatpush2.msra.mxu0 0.0
        %3940 = vmatprep.subr.mxu0 0.0
        %3941 = vmatpush2.msra.mxu0 0.0
        %3942 = vmatprep.subr.mxu0 0.0
        %3943 = vmatpush2.msra.mxu0 0.0
        %3944 = vmatprep.subr.mxu0 0.0
        %3945 = vmatpush2.msra.mxu0 0.0
        %3946 = vmatprep.subr.mxu0 0.0
        %3947 = vmatpush2.msra.mxu0 0.0
        %3948 = vmatprep.subr.mxu0 0.0
        %3949 = vmatpush2.msra.mxu0 0.0
        %3950 = vmatprep.subr.mxu0 0.0
        %3951 = vmatpush2.msra.mxu0 0.0
        %3952 = vmatprep.subr.mxu0 0.0
        %3953 = vmatpush2.msra.mxu0 0.0
        %3954 = vmatprep.subr.mxu0 0.0
        %3955 = vmatpush2.msra.mxu0 0.0
        %3956 = vmatprep.subr.mxu0 0.0
        %3957 = vmatpush2.msra.mxu0 0.0
        %3958 = vmatprep.mubr.f32.mxu0 0.0
        %v3959 = vand.u32 %v3780, 4294901760
        %3960 = vmatmul.mubr.f32.gmra.mxu0 %v3959
        %v3961 = vpop.f32.mrf.mxu0
        %v3962 = vadd.f32 %v3861, %v3961
        %v3963 = vpop.f32.mrf.mxu0
        %3964 = vmatprep.mubr.f32.mxu0 0.0
        %v3965 = vand.u32 %v3783, 4294901760
        %3966 = vmatmul.mubr.f32.gmra.mxu0 %v3965
        %v3967 = vpop.f32.mrf.mxu0
        %v3968 = vadd.f32 %v3871, %v3967
        %v3969 = vpop.f32.mrf.mxu0
        %3970 = vdwg.mxu0
        %3971 = vmatprep.subr.mxu0 0.0
        %3972 = vmatpush1.msra.mxu0 0.0
        %3973 = vmatprep.subr.mxu0 0.0
        %3974 = vmatpush1.msra.mxu0 0.0
        %3975 = vmatprep.subr.mxu0 0.0
        %3976 = vmatpush1.msra.mxu0 0.0
        %3977 = vmatprep.subr.mxu0 0.0
        %3978 = vmatpush1.msra.mxu0 0.0
        %3979 = vmatprep.subr.mxu0 0.0
        %3980 = vmatpush1.msra.mxu0 0.0
        %3981 = vmatprep.subr.mxu0 0.0
        %3982 = vmatpush1.msra.mxu0 0.0
        %3983 = vmatprep.subr.mxu0 0.0
        %3984 = vmatpush1.msra.mxu0 0.0
        %3985 = vmatprep.subr.mxu0 0.0
        %3986 = vmatpush1.msra.mxu0 0.0
        %3987 = vmatprep.subr.mxu0 0.0
        %3988 = vmatpush1.msra.mxu0 0.0
        %3989 = vmatprep.subr.mxu0 0.0
        %3990 = vmatpush1.msra.mxu0 0.0
        %3991 = vmatprep.subr.mxu0 0.0
        %3992 = vmatpush1.msra.mxu0 0.0
        %3993 = vmatprep.subr.mxu0 0.0
        %3994 = vmatpush1.msra.mxu0 0.0
        %3995 = vmatprep.subr.mxu0 0.0
        %v3996 = vand.u32 %v3778, 4294901760
        %v3997 = vsub.f32 %v3778, %v3996
        %3998 = vmatpush1.msra.mxu0 %v3997
        %3999 = vmatprep.subr.mxu0 0.0
        %v4000 = vand.u32 %v3777, 4294901760
        %v4001 = vsub.f32 %v3777, %v4000
        %4002 = vmatpush1.msra.mxu0 %v4001
        %4003 = vmatprep.subr.mxu0 0.0
        %v4004 = vand.u32 %v3776, 4294901760
        %v4005 = vsub.f32 %v3776, %v4004
        %4006 = vmatpush1.msra.mxu0 %v4005
        %4007 = vmatprep.subr.mxu0 0.0
        %v4008 = vand.u32 %v3775, 4294901760
        %v4009 = vsub.f32 %v3775, %v4008
        %4010 = vmatpush1.msra.mxu0 %v4009
        %4011 = vmatprep.subr.mxu0 0.0
        %4012 = vmatpush2.msra.mxu0 0.0
        %4013 = vmatprep.subr.mxu0 0.0
        %4014 = vmatpush2.msra.mxu0 0.0
        %4015 = vmatprep.subr.mxu0 0.0
        %4016 = vmatpush2.msra.mxu0 0.0
        %4017 = vmatprep.subr.mxu0 0.0
        %4018 = vmatpush2.msra.mxu0 0.0
        %4019 = vmatprep.subr.mxu0 0.0
        %4020 = vmatpush2.msra.mxu0 0.0
        %4021 = vmatprep.subr.mxu0 0.0
        %4022 = vmatpush2.msra.mxu0 0.0
        %4023 = vmatprep.subr.mxu0 0.0
        %4024 = vmatpush2.msra.mxu0 0.0
        %4025 = vmatprep.subr.mxu0 0.0
        %4026 = vmatpush2.msra.mxu0 0.0
        %4027 = vmatprep.subr.mxu0 0.0
        %4028 = vmatpush2.msra.mxu0 0.0
        %4029 = vmatprep.subr.mxu0 0.0
        %4030 = vmatpush2.msra.mxu0 0.0
        %4031 = vmatprep.subr.mxu0 0.0
        %4032 = vmatpush2.msra.mxu0 0.0
        %4033 = vmatprep.subr.mxu0 0.0
        %4034 = vmatpush2.msra.mxu0 0.0
        %4035 = vmatprep.subr.mxu0 0.0
        %4036 = vmatpush2.msra.mxu0 0.0
        %4037 = vmatprep.subr.mxu0 0.0
        %4038 = vmatpush2.msra.mxu0 0.0
        %4039 = vmatprep.subr.mxu0 0.0
        %4040 = vmatpush2.msra.mxu0 0.0
        %4041 = vmatprep.subr.mxu0 0.0
        %4042 = vmatpush2.msra.mxu0 0.0
        %4043 = vmatprep.mubr.f32.mxu0 0.0
        %v4044 = vand.u32 %v3780, 4294901760
        %v4045 = vsub.f32 %v3780, %v4044
        %4046 = vmatmul.mubr.f32.gmra.mxu0 %v4045
        %v4047 = vpop.f32.mrf.mxu0
        %v4048 = vadd.f32 %v3962, %v4047
        %v4049 = vpop.f32.mrf.mxu0
        %4050 = vmatprep.mubr.f32.mxu0 0.0
        %v4051 = vand.u32 %v3783, 4294901760
        %v4052 = vsub.f32 %v3783, %v4051
        %4053 = vmatmul.mubr.f32.gmra.mxu0 %v4052
        %v4054 = vpop.f32.mrf.mxu0
        %v4055 = vadd.f32 %v3968, %v4054
        %v4056 = vpop.f32.mrf.mxu0
        %4057 = vdwg.mxu0
        %4058 = vmatprep.subr.mxu0 0.0
        %4059 = vmatpush1.msra.mxu0 0.0
        %4060 = vmatprep.subr.mxu0 0.0
        %4061 = vmatpush1.msra.mxu0 0.0
        %4062 = vmatprep.subr.mxu0 0.0
        %4063 = vmatpush1.msra.mxu0 0.0
        %4064 = vmatprep.subr.mxu0 0.0
        %4065 = vmatpush1.msra.mxu0 0.0
        %4066 = vmatprep.subr.mxu0 0.0
        %4067 = vmatpush1.msra.mxu0 0.0
        %4068 = vmatprep.subr.mxu0 0.0
        %4069 = vmatpush1.msra.mxu0 0.0
        %4070 = vmatprep.subr.mxu0 0.0
        %4071 = vmatpush1.msra.mxu0 0.0
        %4072 = vmatprep.subr.mxu0 0.0
        %4073 = vmatpush1.msra.mxu0 0.0
        %4074 = vmatprep.subr.mxu0 0.0
        %4075 = vmatpush1.msra.mxu0 0.0
        %4076 = vmatprep.subr.mxu0 0.0
        %4077 = vmatpush1.msra.mxu0 0.0
        %4078 = vmatprep.subr.mxu0 0.0
        %4079 = vmatpush1.msra.mxu0 0.0
        %4080 = vmatprep.subr.mxu0 0.0
        %4081 = vmatpush1.msra.mxu0 0.0
        %4082 = vmatprep.subr.mxu0 0.0
        %v4083 = vand.u32 %v3778, 4294901760
        %4084 = vmatpush1.msra.mxu0 %v4083
        %4085 = vmatprep.subr.mxu0 0.0
        %v4086 = vand.u32 %v3777, 4294901760
        %4087 = vmatpush1.msra.mxu0 %v4086
        %4088 = vmatprep.subr.mxu0 0.0
        %v4089 = vand.u32 %v3776, 4294901760
        %4090 = vmatpush1.msra.mxu0 %v4089
        %4091 = vmatprep.subr.mxu0 0.0
        %v4092 = vand.u32 %v3775, 4294901760
        %4093 = vmatpush1.msra.mxu0 %v4092
        %4094 = vmatprep.subr.mxu0 0.0
        %4095 = vmatpush2.msra.mxu0 0.0
        %4096 = vmatprep.subr.mxu0 0.0
        %4097 = vmatpush2.msra.mxu0 0.0
        %4098 = vmatprep.subr.mxu0 0.0
        %4099 = vmatpush2.msra.mxu0 0.0
        %4100 = vmatprep.subr.mxu0 0.0
        %4101 = vmatpush2.msra.mxu0 0.0
        %4102 = vmatprep.subr.mxu0 0.0
        %4103 = vmatpush2.msra.mxu0 0.0
        %4104 = vmatprep.subr.mxu0 0.0
        %4105 = vmatpush2.msra.mxu0 0.0
        %4106 = vmatprep.subr.mxu0 0.0
        %4107 = vmatpush2.msra.mxu0 0.0
        %4108 = vmatprep.subr.mxu0 0.0
        %4109 = vmatpush2.msra.mxu0 0.0
        %4110 = vmatprep.subr.mxu0 0.0
        %4111 = vmatpush2.msra.mxu0 0.0
        %4112 = vmatprep.subr.mxu0 0.0
        %4113 = vmatpush2.msra.mxu0 0.0
        %4114 = vmatprep.subr.mxu0 0.0
        %4115 = vmatpush2.msra.mxu0 0.0
        %4116 = vmatprep.subr.mxu0 0.0
        %4117 = vmatpush2.msra.mxu0 0.0
        %4118 = vmatprep.subr.mxu0 0.0
        %4119 = vmatpush2.msra.mxu0 0.0
        %4120 = vmatprep.subr.mxu0 0.0
        %4121 = vmatpush2.msra.mxu0 0.0
        %4122 = vmatprep.subr.mxu0 0.0
        %4123 = vmatpush2.msra.mxu0 0.0
        %4124 = vmatprep.subr.mxu0 0.0
        %4125 = vmatpush2.msra.mxu0 0.0
        %4126 = vmatprep.mubr.f32.mxu0 0.0
        %v4127 = vand.u32 %v3780, 4294901760
        %v4128 = vsub.f32 %v3780, %v4127
        %v4129 = vand.u32 %v4128, 4294901760
        %4130 = vmatmul.mubr.f32.gmra.mxu0 %v4129
        %v4131 = vpop.f32.mrf.mxu0
        %v4132 = vadd.f32 %v4048, %v4131
        %v4133 = vpop.f32.mrf.mxu0
        %4134 = vmatprep.mubr.f32.mxu0 0.0
        %v4135 = vand.u32 %v3783, 4294901760
        %v4136 = vsub.f32 %v3783, %v4135
        %v4137 = vand.u32 %v4136, 4294901760
        %4138 = vmatmul.mubr.f32.gmra.mxu0 %v4137
        %v4139 = vpop.f32.mrf.mxu0
        %v4140 = vadd.f32 %v4055, %v4139
        %v4141 = vpop.f32.mrf.mxu0
        %4142 = vdwg.mxu0
        %4143 = vmatprep.subr.mxu0 0.0
        %4144 = vmatpush1.msra.mxu0 0.0
        %4145 = vmatprep.subr.mxu0 0.0
        %4146 = vmatpush1.msra.mxu0 0.0
        %4147 = vmatprep.subr.mxu0 0.0
        %4148 = vmatpush1.msra.mxu0 0.0
        %4149 = vmatprep.subr.mxu0 0.0
        %4150 = vmatpush1.msra.mxu0 0.0
        %4151 = vmatprep.subr.mxu0 0.0
        %4152 = vmatpush1.msra.mxu0 0.0
        %4153 = vmatprep.subr.mxu0 0.0
        %4154 = vmatpush1.msra.mxu0 0.0
        %4155 = vmatprep.subr.mxu0 0.0
        %4156 = vmatpush1.msra.mxu0 0.0
        %4157 = vmatprep.subr.mxu0 0.0
        %4158 = vmatpush1.msra.mxu0 0.0
        %4159 = vmatprep.subr.mxu0 0.0
        %4160 = vmatpush1.msra.mxu0 0.0
        %4161 = vmatprep.subr.mxu0 0.0
        %4162 = vmatpush1.msra.mxu0 0.0
        %4163 = vmatprep.subr.mxu0 0.0
        %4164 = vmatpush1.msra.mxu0 0.0
        %4165 = vmatprep.subr.mxu0 0.0
        %4166 = vmatpush1.msra.mxu0 0.0
        %4167 = vmatprep.subr.mxu0 0.0
        %v4168 = vand.u32 %v3778, 4294901760
        %v4169 = vsub.f32 %v3778, %v4168
        %v4170 = vand.u32 %v4169, 4294901760
        %4171 = vmatpush1.msra.mxu0 %v4170
        %4172 = vmatprep.subr.mxu0 0.0
        %v4173 = vand.u32 %v3777, 4294901760
        %v4174 = vsub.f32 %v3777, %v4173
        %v4175 = vand.u32 %v4174, 4294901760
        %4176 = vmatpush1.msra.mxu0 %v4175
        %4177 = vmatprep.subr.mxu0 0.0
        %v4178 = vand.u32 %v3776, 4294901760
        %v4179 = vsub.f32 %v3776, %v4178
        %v4180 = vand.u32 %v4179, 4294901760
        %4181 = vmatpush1.msra.mxu0 %v4180
        %4182 = vmatprep.subr.mxu0 0.0
        %v4183 = vand.u32 %v3775, 4294901760
        %v4184 = vsub.f32 %v3775, %v4183
        %v4185 = vand.u32 %v4184, 4294901760
        %4186 = vmatpush1.msra.mxu0 %v4185
        %4187 = vmatprep.subr.mxu0 0.0
        %4188 = vmatpush2.msra.mxu0 0.0
        %4189 = vmatprep.subr.mxu0 0.0
        %4190 = vmatpush2.msra.mxu0 0.0
        %4191 = vmatprep.subr.mxu0 0.0
        %4192 = vmatpush2.msra.mxu0 0.0
        %4193 = vmatprep.subr.mxu0 0.0
        %4194 = vmatpush2.msra.mxu0 0.0
        %4195 = vmatprep.subr.mxu0 0.0
        %4196 = vmatpush2.msra.mxu0 0.0
        %4197 = vmatprep.subr.mxu0 0.0
        %4198 = vmatpush2.msra.mxu0 0.0
        %4199 = vmatprep.subr.mxu0 0.0
        %4200 = vmatpush2.msra.mxu0 0.0
        %4201 = vmatprep.subr.mxu0 0.0
        %4202 = vmatpush2.msra.mxu0 0.0
        %4203 = vmatprep.subr.mxu0 0.0
        %4204 = vmatpush2.msra.mxu0 0.0
        %4205 = vmatprep.subr.mxu0 0.0
        %4206 = vmatpush2.msra.mxu0 0.0
        %4207 = vmatprep.subr.mxu0 0.0
        %4208 = vmatpush2.msra.mxu0 0.0
        %4209 = vmatprep.subr.mxu0 0.0
        %4210 = vmatpush2.msra.mxu0 0.0
        %4211 = vmatprep.subr.mxu0 0.0
        %4212 = vmatpush2.msra.mxu0 0.0
        %4213 = vmatprep.subr.mxu0 0.0
        %4214 = vmatpush2.msra.mxu0 0.0
        %4215 = vmatprep.subr.mxu0 0.0
        %4216 = vmatpush2.msra.mxu0 0.0
        %4217 = vmatprep.subr.mxu0 0.0
        %4218 = vmatpush2.msra.mxu0 0.0
        %4219 = vmatprep.mubr.f32.mxu0 0.0
        %v4220 = vand.u32 %v3780, 4294901760
        %4221 = vmatmul.mubr.f32.gmra.mxu0 %v4220
        %v4222 = vpop.f32.mrf.mxu0
        %v4223 = vadd.f32 %v4132, %v4222
        %v4224 = vpop.f32.mrf.mxu0
        %4225 = vmatprep.mubr.f32.mxu0 0.0
        %v4226 = vand.u32 %v3783, 4294901760
        %4227 = vmatmul.mubr.f32.gmra.mxu0 %v4226
        %v4228 = vpop.f32.mrf.mxu0
        %v4229 = vadd.f32 %v4140, %v4228
        %v4230 = vpop.f32.mrf.mxu0
        %4231 = vdwg.mxu0
        %4232 = vmatprep.subr.mxu0 0.0
        %4233 = vmatpush1.msra.mxu0 0.0
        %4234 = vmatprep.subr.mxu0 0.0
        %4235 = vmatpush1.msra.mxu0 0.0
        %4236 = vmatprep.subr.mxu0 0.0
        %4237 = vmatpush1.msra.mxu0 0.0
        %4238 = vmatprep.subr.mxu0 0.0
        %4239 = vmatpush1.msra.mxu0 0.0
        %4240 = vmatprep.subr.mxu0 0.0
        %4241 = vmatpush1.msra.mxu0 0.0
        %4242 = vmatprep.subr.mxu0 0.0
        %4243 = vmatpush1.msra.mxu0 0.0
        %4244 = vmatprep.subr.mxu0 0.0
        %4245 = vmatpush1.msra.mxu0 0.0
        %4246 = vmatprep.subr.mxu0 0.0
        %4247 = vmatpush1.msra.mxu0 0.0
        %4248 = vmatprep.subr.mxu0 0.0
        %4249 = vmatpush1.msra.mxu0 0.0
        %4250 = vmatprep.subr.mxu0 0.0
        %4251 = vmatpush1.msra.mxu0 0.0
        %4252 = vmatprep.subr.mxu0 0.0
        %4253 = vmatpush1.msra.mxu0 0.0
        %4254 = vmatprep.subr.mxu0 0.0
        %4255 = vmatpush1.msra.mxu0 0.0
        %4256 = vmatprep.subr.mxu0 0.0
        %v4257 = vand.u32 %v3778, 4294901760
        %4258 = vmatpush1.msra.mxu0 %v4257
        %4259 = vmatprep.subr.mxu0 0.0
        %v4260 = vand.u32 %v3777, 4294901760
        %4261 = vmatpush1.msra.mxu0 %v4260
        %4262 = vmatprep.subr.mxu0 0.0
        %v4263 = vand.u32 %v3776, 4294901760
        %4264 = vmatpush1.msra.mxu0 %v4263
        %4265 = vmatprep.subr.mxu0 0.0
        %v4266 = vand.u32 %v3775, 4294901760
        %4267 = vmatpush1.msra.mxu0 %v4266
        %4268 = vmatprep.subr.mxu0 0.0
        %4269 = vmatpush2.msra.mxu0 0.0
        %4270 = vmatprep.subr.mxu0 0.0
        %4271 = vmatpush2.msra.mxu0 0.0
        %4272 = vmatprep.subr.mxu0 0.0
        %4273 = vmatpush2.msra.mxu0 0.0
        %4274 = vmatprep.subr.mxu0 0.0
        %4275 = vmatpush2.msra.mxu0 0.0
        %4276 = vmatprep.subr.mxu0 0.0
        %4277 = vmatpush2.msra.mxu0 0.0
        %4278 = vmatprep.subr.mxu0 0.0
        %4279 = vmatpush2.msra.mxu0 0.0
        %4280 = vmatprep.subr.mxu0 0.0
        %4281 = vmatpush2.msra.mxu0 0.0
        %4282 = vmatprep.subr.mxu0 0.0
        %4283 = vmatpush2.msra.mxu0 0.0
        %4284 = vmatprep.subr.mxu0 0.0
        %4285 = vmatpush2.msra.mxu0 0.0
        %4286 = vmatprep.subr.mxu0 0.0
        %4287 = vmatpush2.msra.mxu0 0.0
        %4288 = vmatprep.subr.mxu0 0.0
        %4289 = vmatpush2.msra.mxu0 0.0
        %4290 = vmatprep.subr.mxu0 0.0
        %4291 = vmatpush2.msra.mxu0 0.0
        %4292 = vmatprep.subr.mxu0 0.0
        %4293 = vmatpush2.msra.mxu0 0.0
        %4294 = vmatprep.subr.mxu0 0.0
        %4295 = vmatpush2.msra.mxu0 0.0
        %4296 = vmatprep.subr.mxu0 0.0
        %4297 = vmatpush2.msra.mxu0 0.0
        %4298 = vmatprep.subr.mxu0 0.0
        %4299 = vmatpush2.msra.mxu0 0.0
        %4300 = vmatprep.mubr.f32.mxu0 0.0
        %v4301 = vand.u32 %v3780, 4294901760
        %4302 = vmatmul.mubr.f32.gmra.mxu0 %v4301
        %v4303 = vpop.f32.mrf.mxu0
        %v4304 = vadd.f32 %v4223, %v4303
        %v4305 = vpop.f32.mrf.mxu0
        %4306 = vmatprep.mubr.f32.mxu0 0.0
        %v4307 = vand.u32 %v3783, 4294901760
        %4308 = vmatmul.mubr.f32.gmra.mxu0 %v4307
        %v4309 = vpop.f32.mrf.mxu0
        %v4310 = vadd.f32 %v4229, %v4309
        %v4311 = vpop.f32.mrf.mxu0
        %4312 = vdwg.mxu0
        %v4313 = vadd.f32 %v3770, %v4304
        %v4314 = vadd.f32 %v3771, %v4310
        %vm4315 = vcmask 130048
        %4316 = vst.msk [vmem:[#allocation4] sm:$0xff] %vm4315, %v4313
        %4317 = vst.msk [vmem:[#allocation4 + $0x8] sm:$0xff] %vm4315, %v4314
        %v4318 = vld [vmem:[#allocation4] sm:$0x1]
        %4319 = vst.msk [vmem:[#allocation3] sm:$0x1] %vm229, %v4318
        %v4320 = vld [vmem:[#allocation4 + $0x1] sm:$0x1]
        %v4323 = vunpack.c.l.s4 1983009808
        %v4324 = vunpack.c.0.s8 %v4323
        %v4325 = vlaneseq
        %v4326 = vshrl.u32 %v4325, 7
        %v4327 = vsub.s32 %v4324, %v4326
        %v4328 = vrot.slane %v4320, %v4327
        %4329 = vrot.lane.b32.xlu0 %v4328, 16
        %v4330 = vpop.permute.xlu0 %4329
        %4332 = vst.msk [vmem:[#allocation3] sm:$0x1] %vm240, %v4330
        %v4333 = vld [vmem:[#allocation4 + $0x2] sm:$0x1]
        %v4336 = vunpack.c.l.s4 1983009808
        %v4337 = vunpack.c.0.s8 %v4336
        %v4338 = vlaneseq
        %v4339 = vshrl.u32 %v4338, 7
        %v4340 = vsub.s32 %v4337, %v4339
        %v4341 = vrot.slane %v4333, %v4340
        %4342 = vrot.lane.b32.xlu0 %v4341, 32
        %v4343 = vpop.permute.xlu0 %4342
        %vm4345 = vcmask 385280
        %4346 = vst.msk [vmem:[#allocation3] sm:$0x1] %vm4345, %v4343
        %v4347 = vld [vmem:[#allocation4 + $0x3] sm:$0x1]
        %v4350 = vunpack.c.l.s4 1983009808
        %v4351 = vunpack.c.0.s8 %v4350
        %v4352 = vlaneseq
        %v4353 = vshrl.u32 %v4352, 7
        %v4354 = vsub.s32 %v4351, %v4353
        %v4355 = vrot.slane %v4347, %v4354
        %4356 = vrot.lane.b32.xlu0 %v4355, 48
        %v4357 = vpop.permute.xlu0 %4356
        %vm4359 = vcmask 516480
        %4360 = vst.msk [vmem:[#allocation3] sm:$0x1] %vm4359, %v4357
        %v4361 = vld [vmem:[#allocation4 + $0x4] sm:$0x1]
        %v4364 = vunpack.c.l.s4 1983009808
        %v4365 = vunpack.c.0.s8 %v4364
        %v4366 = vlaneseq
        %v4367 = vshrl.u32 %v4366, 7
        %v4368 = vsub.s32 %v4365, %v4367
        %v4369 = vrot.slane %v4361, %v4368
        %4370 = vrot.lane.b32.xlu0 %v4369, 64
        %v4371 = vpop.permute.xlu0 %4370
        %vm4373 = vcmask 647680
        %4374 = vst.msk [vmem:[#allocation3] sm:$0x1] %vm4373, %v4371
        %v4375 = vld [vmem:[#allocation4 + $0x5] sm:$0x1]
        %v4378 = vunpack.c.l.s4 1983009808
        %v4379 = vunpack.c.0.s8 %v4378
        %v4380 = vlaneseq
        %v4381 = vshrl.u32 %v4380, 7
        %v4382 = vsub.s32 %v4379, %v4381
        %v4383 = vrot.slane %v4375, %v4382
        %4384 = vrot.lane.b32.xlu0 %v4383, 80
        %v4385 = vpop.permute.xlu0 %4384
        %vm4387 = vcmask 778880
        %4388 = vst.msk [vmem:[#allocation3] sm:$0x1] %vm4387, %v4385
        %v4389 = vld [vmem:[#allocation4 + $0x6] sm:$0x1]
        %v4392 = vunpack.c.l.s4 1983009808
        %v4393 = vunpack.c.0.s8 %v4392
        %v4394 = vlaneseq
        %v4395 = vshrl.u32 %v4394, 7
        %v4396 = vsub.s32 %v4393, %v4395
        %v4397 = vrot.slane %v4389, %v4396
        %4398 = vrot.lane.b32.xlu0 %v4397, 96
        %v4399 = vpop.permute.xlu0 %4398
        %vm4401 = vcmask 910080
        %4402 = vst.msk [vmem:[#allocation3] sm:$0x1] %vm4401, %v4399
        %v4403 = vld [vmem:[#allocation4 + $0x7] sm:$0x1]
        %v4406 = vunpack.c.l.s4 1983009808
        %v4407 = vunpack.c.0.s8 %v4406
        %v4408 = vlaneseq
        %v4409 = vshrl.u32 %v4408, 7
        %v4410 = vsub.s32 %v4407, %v4409
        %v4411 = vrot.slane %v4403, %v4410
        %4412 = vrot.lane.b32.xlu0 %v4411, 112
        %v4413 = vpop.permute.xlu0 %4412
        %vm4415 = vcmask 1041280
        %4416 = vst.msk [vmem:[#allocation3] sm:$0x1] %vm4415, %v4413
        %v4417 = vld [vmem:[#allocation4 + $0x8] sm:$0x1]
        %4418 = vst.msk [vmem:[#allocation3 + $0x2] sm:$0x1] %vm229, %v4417
        %v4419 = vld [vmem:[#allocation4 + $0x9] sm:$0x1]
        %v4422 = vunpack.c.l.s4 1983009808
        %v4423 = vunpack.c.0.s8 %v4422
        %v4424 = vlaneseq
        %v4425 = vshrl.u32 %v4424, 7
        %v4426 = vsub.s32 %v4423, %v4425
        %v4427 = vrot.slane %v4419, %v4426
        %4428 = vrot.lane.b32.xlu0 %v4427, 16
        %v4429 = vpop.permute.xlu0 %4428
        %4431 = vst.msk [vmem:[#allocation3 + $0x2] sm:$0x1] %vm240, %v4429
        %v4432 = vld [vmem:[#allocation4 + $0xa] sm:$0x1]
        %v4435 = vunpack.c.l.s4 1983009808
        %v4436 = vunpack.c.0.s8 %v4435
        %v4437 = vlaneseq
        %v4438 = vshrl.u32 %v4437, 7
        %v4439 = vsub.s32 %v4436, %v4438
        %v4440 = vrot.slane %v4432, %v4439
        %4441 = vrot.lane.b32.xlu0 %v4440, 32
        %v4442 = vpop.permute.xlu0 %4441
        %4444 = vst.msk [vmem:[#allocation3 + $0x2] sm:$0x1] %vm4345, %v4442
        %v4445 = vld [vmem:[#allocation4 + $0xb] sm:$0x1]
        %v4448 = vunpack.c.l.s4 1983009808
        %v4449 = vunpack.c.0.s8 %v4448
        %v4450 = vlaneseq
        %v4451 = vshrl.u32 %v4450, 7
        %v4452 = vsub.s32 %v4449, %v4451
        %v4453 = vrot.slane %v4445, %v4452
        %4454 = vrot.lane.b32.xlu0 %v4453, 48
        %v4455 = vpop.permute.xlu0 %4454
        %4457 = vst.msk [vmem:[#allocation3 + $0x2] sm:$0x1] %vm4359, %v4455
        %v4458 = vld [vmem:[#allocation4 + $0xc] sm:$0x1]
        %v4461 = vunpack.c.l.s4 1983009808
        %v4462 = vunpack.c.0.s8 %v4461
        %v4463 = vlaneseq
        %v4464 = vshrl.u32 %v4463, 7
        %v4465 = vsub.s32 %v4462, %v4464
        %v4466 = vrot.slane %v4458, %v4465
        %4467 = vrot.lane.b32.xlu0 %v4466, 64
        %v4468 = vpop.permute.xlu0 %4467
        %4470 = vst.msk [vmem:[#allocation3 + $0x2] sm:$0x1] %vm4373, %v4468
        %v4471 = vld [vmem:[#allocation4 + $0xd] sm:$0x1]
        %v4474 = vunpack.c.l.s4 1983009808
        %v4475 = vunpack.c.0.s8 %v4474
        %v4476 = vlaneseq
        %v4477 = vshrl.u32 %v4476, 7
        %v4478 = vsub.s32 %v4475, %v4477
        %v4479 = vrot.slane %v4471, %v4478
        %4480 = vrot.lane.b32.xlu0 %v4479, 80
        %v4481 = vpop.permute.xlu0 %4480
        %4483 = vst.msk [vmem:[#allocation3 + $0x2] sm:$0x1] %vm4387, %v4481
        %v4484 = vld [vmem:[#allocation4 + $0xe] sm:$0x1]
        %v4487 = vunpack.c.l.s4 1983009808
        %v4488 = vunpack.c.0.s8 %v4487
        %v4489 = vlaneseq
        %v4490 = vshrl.u32 %v4489, 7
        %v4491 = vsub.s32 %v4488, %v4490
        %v4492 = vrot.slane %v4484, %v4491
        %4493 = vrot.lane.b32.xlu0 %v4492, 96
        %v4494 = vpop.permute.xlu0 %4493
        %4496 = vst.msk [vmem:[#allocation3 + $0x2] sm:$0x1] %vm4401, %v4494
        %v4497 = vld [vmem:[#allocation4 + $0xf] sm:$0x1]
        %v4500 = vunpack.c.l.s4 1983009808
        %v4501 = vunpack.c.0.s8 %v4500
        %v4502 = vlaneseq
        %v4503 = vshrl.u32 %v4502, 7
        %v4504 = vsub.s32 %v4501, %v4503
        %v4505 = vrot.slane %v4497, %v4504
        %4506 = vrot.lane.b32.xlu0 %v4505, 112
        %v4507 = vpop.permute.xlu0 %4506
        %4509 = vst.msk [vmem:[#allocation3 + $0x2] sm:$0x1] %vm4415, %v4507
        %v4510 = vld [vmem:[#allocation3] ss:$2 sm:$0x3]
        %v4511 = vxor.u32 %v4510, 2147483648
        %v4512 = vmul.f32 %v4511, 1.442695
        %v4513 = vpow.pop %v4512
        %v4514 = vadd.f32 %v4513, 1.0
        %v4515 = vrcp.pop %v4514
        %v4516 = vmul.f32 1.0, %v4515
        %v4517 = vld [vmem:[%s144] sm:$0xff]
        %v4519 = vlaneseq
        %v4520 = vshrl.u32 %v4519, 7
        %v4521 = vsub.s32 0, %v4520
        %v4522 = vrot.slane %v4516, %v4521
        %v4523 = vlaneseq
        %v4524 = vshrl.u32 %v4523, 7
        %v4525 = vsub.s32 1, %v4524
        %v4526 = vrot.slane %v4516, %v4525
        %v4527 = vcombine.low %v4522, %v4526
        %v4529 = vmul.f32 %v4517, %v4527
        %s4530 = smul.addr %s142, 4
        %s4531 = scalar_lea.vmem %s136, %s4530 [#allocation5]
        %4532 = vst [vmem:[%s4531] sm:$0xff] %v4529
        %s4533 = sand.u32 %s71, 1
        %s4534 = scalar_lea.sflag [#allocation6], %s4533
        %s4535 = sand.u32 %s71, 1
        %s4536 = smul.addr %s4535, 8
        %s4537 = scalar_lea.vmem [#allocation5], %s4536
        // Predicated region
        $region29: #{tpu_custom_call.1} parent=27 // pred_check
          %p4538 = pneg %p81
        $region30: #{tpu_custom_call.1} parent=27 // pred_check_branch
          %4540 = sbr.rel (%p4538) target = $region32
        $region31: #{tpu_custom_call.1} parent=27 // pred_region
          %s4542 = ssub.s32 128, 128
          %4543 = vsyncadd %s4534, %s4542
          %s4544 = smul.addr %s16, 2
          %s4545 = smul.addr %s4544, 64
          %s4546 = scalar_lea.hbm %s2, %s4545
          %s4548 = sshll.u32 %s4537, 4
          %s4549 = int_to_ptr.vmem [resolvable:$true] %s4548
          %4551 = dma.vmem_to_hbm [thread:$0]  %s4549, 128, %s4546, %s4534
        $region32: #{tpu_custom_call.1} parent=27 // pred_fallthru
          _
      $region28: #{tpu_custom_call.1} parent=5 // pred_fallthru
        _
      %p4552 = scmp.le.s32.totalorder 2, %s11
      // Predicated region
      $region33: #{tpu_custom_call.1} parent=5 // pred_check
        %p4553 = pneg %p4552
      $region34: #{tpu_custom_call.1} parent=5 // pred_check_branch
        %4555 = sbr.rel (%p4553) target = $region36
      $region35: #{tpu_custom_call.1} parent=5 // pred_region
        %s4556 = ssub.s32 %s11, 2
        // Predicated region
        $region37: #{tpu_custom_call.1} parent=35 // pred_check
          %p4557 = pneg %p87
        $region38: #{tpu_custom_call.1} parent=35 // pred_check_branch
          %4559 = sbr.rel (%p4557) target = $region40
        $region39: #{tpu_custom_call.1} parent=35 // pred_region
          %s4560 = sand.u32 %s72, 1
          %s4561 = scalar_lea.sflag [#allocation6], %s4560
          %s4562 = sand.u32 %s72, 1
          %s4563 = smul.addr %s4562, 8
          %s4564 = scalar_lea.vmem [#allocation5], %s4563
          %4565 = dma.done %s4561, 128
        $region40: #{tpu_custom_call.1} parent=35 // pred_fallthru
          _
      $region36: #{tpu_custom_call.1} parent=5 // pred_fallthru
        _
    $region6: #{tpu_custom_call.1} parent=1 // loop_footer
      %s15 = sadd.s32 1, %s11
    $region7: #{tpu_custom_call.1} parent=1 // loop_footer_branch
      %10 = sbr.rel target = $region3
    $region8: #{tpu_custom_call.1} parent=1 // loop_exit
      _
    %4566 = vsyncpa [#allocation6], 1
    %s4567 = scalar_lea.sflag [#allocation6], 1
    %4568 = vsyncpa %s4567, 1

</llo_original>
